<compile_context>
chip_gen: v7x
topology: tpu7x:2x2x1
jax: 0.10.0
libtpu: 0.0.40
codegen_flags: <defaults>
</compile_context>

<pallas_src>
import functools

import jax
import jax.numpy as jnp
import numpy as np
from jax.experimental import pallas as pl
from jax.experimental.pallas import tpu as pltpu


def _basic_block_kernel(x_ref, w1_ref, w2_ref, s1_ref, b1_ref, s2_ref, b2_ref,
                        o_ref, pad_ref, col_ref, *, H, W, C, no_relu, cdt):
    """Fused BasicBlock for one batch element.

    x_ref:  (1, H, W, C)   NHWC input tile
    w*_ref: (9*C, C)       conv weights, im2col row order (dy*3+dx)*C + c
    s*_ref: (1, C)         folded BN scale (gamma / sqrt(var+eps)), f32
    b*_ref: (1, C)         folded BN bias  (beta - mean*scale), f32
    o_ref:  (1, H, W, C)   output tile
    pad_ref: (H+2, W+2, C) zero-halo padded activation (reused by both convs), cdt
    col_ref: (H+2, W, 3*C) 3-tap (dx-only) im2col buffer (reused by both convs), cdt
    """
    f32 = jnp.float32

    # --- border-only zeroing of the halo (interior is overwritten every step; ---
    # --- re-done each step so per-core scratch under megacore stays correct). ---
    pad_ref[0:1, :, :] = jnp.zeros((1, W + 2, C), cdt)
    pad_ref[H + 1:H + 2, :, :] = jnp.zeros((1, W + 2, C), cdt)
    pad_ref[1:H + 1, 0:1, :] = jnp.zeros((H, 1, C), cdt)
    pad_ref[1:H + 1, W + 1:W + 2, :] = jnp.zeros((H, 1, C), cdt)

    def conv3x3(w_ref):
        # 3-tap im2col: only dx shifts are materialized; dy shifts are free
        # first-dim slice offsets into col_ref.
        for dx in range(3):
            col_ref[:, :, dx * C:(dx + 1) * C] = pad_ref[:, dx:dx + W, :]
        acc = jnp.dot(col_ref[0:H].reshape(H * W, 3 * C), w_ref[0:3 * C, :],
                      preferred_element_type=f32)
        for dy in range(1, 3):
            acc += jnp.dot(col_ref[dy:dy + H].reshape(H * W, 3 * C),
                           w_ref[3 * dy * C:3 * (dy + 1) * C, :],
                           preferred_element_type=f32)
        return acc                                   # (H*W, C) f32

    # ---- conv1 + BN1 + ReLU (activation never leaves VMEM) --------------------
    pad_ref[1:H + 1, 1:W + 1, :] = x_ref[0].astype(cdt)
    y1 = jnp.maximum(conv3x3(w1_ref) * s1_ref[...] + b1_ref[...], 0.0)

    # ---- conv2 + BN2 + residual (+ ReLU); pad/col scratches are reused --------
    pad_ref[1:H + 1, 1:W + 1, :] = y1.reshape(H, W, C).astype(cdt)
    y2 = conv3x3(w2_ref) * s2_ref[...] + b2_ref[...]
    y2 = y2 + x_ref[0].reshape(H * W, C).astype(f32)          # residual (Cin == C)
    if not no_relu:
        y2 = jnp.maximum(y2, 0.0)
    o_ref[0] = y2.reshape(H, W, C).astype(o_ref.dtype)


def basic_block_forward(x_nhwc, params, no_relu=False,
                        compute_dtype=jnp.float32):
    """BasicBlock forward.  x_nhwc: (N, H, W, C) f32.  Returns NHWC."""
    N, H, W, Cin = x_nhwc.shape
    w1, w2 = params["w1"], params["w2"]              # (9*Cin, C1), (9*C1, C2)
    C1, C2 = w1.shape[1], w2.shape[1]
    assert w1.shape[0] == 9 * Cin and w2.shape[0] == 9 * C1
    assert Cin == C1 == C2, "no-downsample BasicBlock requires inplanes == planes"
    C = Cin

    w1c = w1.astype(compute_dtype)
    w2c = w2.astype(compute_dtype)
    s1 = params["scale1"].reshape(1, C).astype(jnp.float32)
    b1 = params["bias1"].reshape(1, C).astype(jnp.float32)
    s2 = params["scale2"].reshape(1, C).astype(jnp.float32)
    b2 = params["bias2"].reshape(1, C).astype(jnp.float32)

    kernel = functools.partial(_basic_block_kernel, H=H, W=W, C=C,
                               no_relu=no_relu, cdt=compute_dtype)

    it = jnp.dtype(compute_dtype).itemsize
    xit = jnp.dtype(x_nhwc.dtype).itemsize
    # VMEM footprint: aliased scratches + double-buffered I/O blocks + weights.
    scratch_bytes = ((H + 2) * (W + 2) * C + (H + 2) * W * 3 * C) * it
    io_bytes = 2 * 2 * H * W * C * xit
    w_bytes = 2 * 2 * 9 * C * C * it
    needed = scratch_bytes + io_bytes + w_bytes + 4 * C * 4 * 2
    vmem_limit = int(min(max(2 * needed, 32 * 1024 * 1024), 96 * 1024 * 1024))

    flops = 2 * 9 * N * H * W * (C * C + C * C)
    bytes_accessed = (N * H * W * C * xit * 2
                      + (w1c.size + w2c.size) * it
                      + (s1.size + b1.size + s2.size + b2.size) * 4)

    out_nhwc = pl.pallas_call(
        kernel,
        out_shape=jax.ShapeDtypeStruct((N, H, W, C), x_nhwc.dtype),
        grid=(N,),
        in_specs=[
            pl.BlockSpec((1, H, W, C), lambda b: (b, 0, 0, 0)),
            pl.BlockSpec((9 * C, C), lambda b: (0, 0)),
            pl.BlockSpec((9 * C, C), lambda b: (0, 0)),
            pl.BlockSpec((1, C), lambda b: (0, 0)),
            pl.BlockSpec((1, C), lambda b: (0, 0)),
            pl.BlockSpec((1, C), lambda b: (0, 0)),
            pl.BlockSpec((1, C), lambda b: (0, 0)),
        ],
        out_specs=pl.BlockSpec((1, H, W, C), lambda b: (b, 0, 0, 0)),
        scratch_shapes=[
            pltpu.VMEM((H + 2, W + 2, C), compute_dtype),     # padded act (aliased)
            pltpu.VMEM((H + 2, W, 3 * C), compute_dtype),     # 3-tap im2col (aliased)
        ],
        compiler_params=pltpu.CompilerParams(
            dimension_semantics=("parallel",),                # batch across TCs
            vmem_limit_bytes=vmem_limit,
        ),
        cost_estimate=pl.CostEstimate(flops=flops, transcendentals=0,
                                      bytes_accessed=bytes_accessed),
    )(x_nhwc, w1c, w2c, s1, b1, s2, b2)
    return out_nhwc


# ----------------------------- parameters / reference ---------------------------

def _fold_bn(gamma, beta, running_mean, running_var, eps=1e-5):
    scale = gamma / jnp.sqrt(running_var + eps)
    bias = beta - running_mean * scale
    return scale, bias


def _oihw_to_im2col(w_oihw):
    # (Cout, Cin, 3, 3) -> (dy, dx, Cin, Cout) -> (9*Cin, Cout); row = (dy*3+dx)*Cin + c
    co, ci, kh, kw = w_oihw.shape
    return jnp.transpose(w_oihw, (2, 3, 1, 0)).reshape(kh * kw * ci, co)


def make_params(key, inplanes, planes):
    k1, k2, k3, k4, k5, k6 = jax.random.split(key, 6)
    w1 = jax.random.normal(k1, (planes, inplanes, 3, 3), jnp.float32) * 0.1
    w2 = jax.random.normal(k2, (planes, planes, 3, 3), jnp.float32) * 0.1
    g1 = 1.0 + 0.1 * jax.random.normal(k3, (planes,), jnp.float32)
    b1 = 0.1 * jax.random.normal(k4, (planes,), jnp.float32)
    g2 = 1.0 + 0.1 * jax.random.normal(k5, (planes,), jnp.float32)
    b2 = 0.1 * jax.random.normal(k6, (planes,), jnp.float32)
    rm = jnp.zeros((planes,), jnp.float32)
    rv = jnp.ones((planes,), jnp.float32)
    s1, bb1 = _fold_bn(g1, b1, rm, rv)
    s2, bb2 = _fold_bn(g2, b2, rm, rv)
    return {
        "w1_oihw": w1, "w2_oihw": w2,
        "w1": _oihw_to_im2col(w1), "w2": _oihw_to_im2col(w2),
        "scale1": s1, "bias1": bb1, "scale2": s2, "bias2": bb2,
    }


def reference_forward(x_nhwc, params, no_relu=False):
    """Pure-JAX NHWC reference (same math as the PyTorch module in eval mode)."""
    def conv(x, w_oihw):
        w_hwio = jnp.transpose(w_oihw, (2, 3, 1, 0))
        return jax.lax.conv_general_dilated(
            x, w_hwio, window_strides=(1, 1), padding=((1, 1), (1, 1)),
            dimension_numbers=("NHWC", "HWIO", "NHWC"))

    def bn(x, scale, bias):
        return x * scale[None, None, None, :] + bias[None, None, None, :]

    out = jnp.maximum(bn(conv(x_nhwc, params["w1_oihw"]),
                         params["scale1"], params["bias1"]), 0.0)
    out = bn(conv(out, params["w2_oihw"]), params["scale2"], params["bias2"])
    out = out + x_nhwc
    return out if no_relu else jnp.maximum(out, 0.0)


if __name__ == "__main__":
    key = jax.random.PRNGKey(0)
    kx, kp = jax.random.split(key)

    # NHWC end-to-end (equivalent to NCHW (2, 4, 16, 16) for the PyTorch module).
    N, H, W, C = 2, 16, 16, 4           # inplanes == planes, stride=1, no downsample
    x = jax.random.normal(kx, (N, H, W, C), jnp.float32)
    params = make_params(kp, inplanes=C, planes=C)

    ref = jax.block_until_ready(reference_forward(x, params, no_relu=False))

    # Strict semantic check: f32 matmul path vs. f32 reference.
    out_f32 = jax.block_until_ready(
        basic_block_forward(x, params, no_relu=False, compute_dtype=jnp.float32))
    np.testing.assert_allclose(np.asarray(out_f32), np.asarray(ref),
                               atol=1e-4, rtol=1e-4)

    # bf16 matmul operands (recommended on v6e/v7x): f32 accumulate + f32 epilogue,
    # only conv inputs/weights are rounded -> loose tolerance vs. f32 reference.
    out_bf16 = jax.block_until_ready(
        basic_block_forward(x, params, no_relu=False, compute_dtype=jnp.bfloat16))
    np.testing.assert_allclose(np.asarray(out_bf16), np.asarray(ref),
                               atol=5e-2, rtol=5e-2)

    print("KERNEL_OK")
</pallas_src>

<mosaic_0001>
module attributes {stable_mosaic.version = 11 : i64} {
  func.func @_basic_block_kernel(%arg0: i32, %arg1: memref<1x16x16x4xf32, #tpu.memory_space<vmem>>, %arg2: memref<36x4xf32, #tpu.memory_space<vmem>>, %arg3: memref<36x4xf32, #tpu.memory_space<vmem>>, %arg4: memref<1x4xf32, #tpu.memory_space<vmem>>, %arg5: memref<1x4xf32, #tpu.memory_space<vmem>>, %arg6: memref<1x4xf32, #tpu.memory_space<vmem>>, %arg7: memref<1x4xf32, #tpu.memory_space<vmem>>, %arg8: memref<1x16x16x4xf32, #tpu.memory_space<vmem>>, %arg9: memref<18x18x4xf32, #tpu.memory_space<vmem>>, %arg10: memref<18x16x12xf32, #tpu.memory_space<vmem>>) attributes {dimension_semantics = [#tpu.dimension_semantics<parallel>], iteration_bounds = array<i64: 2>, scalar_prefetch = 0 : i64, scratch_operands = 2 : i64, tpu.core_type = #tpu.core_type<tc>, window_params = [{transform_indices = @transform_0, window_bounds = array<i64: 1, 16, 16, 4>}, {pipeline_mode = #tpu.pipeline_mode<synchronous>, transform_indices = @transform_1, window_bounds = array<i64: 36, 4>}, {pipeline_mode = #tpu.pipeline_mode<synchronous>, transform_indices = @transform_2, window_bounds = array<i64: 36, 4>}, {pipeline_mode = #tpu.pipeline_mode<synchronous>, transform_indices = @transform_3, window_bounds = array<i64: 1, 4>}, {pipeline_mode = #tpu.pipeline_mode<synchronous>, transform_indices = @transform_4, window_bounds = array<i64: 1, 4>}, {pipeline_mode = #tpu.pipeline_mode<synchronous>, transform_indices = @transform_5, window_bounds = array<i64: 1, 4>}, {pipeline_mode = #tpu.pipeline_mode<synchronous>, transform_indices = @transform_6, window_bounds = array<i64: 1, 4>}, {transform_indices = @transform_7, window_bounds = array<i64: 1, 16, 16, 4>}]} {
    %cst = arith.constant 0.000000e+00 : f32
    %0 = vector.broadcast %cst : f32 to vector<1x18x4xf32>
    %c0 = arith.constant 0 : index
    %c0_0 = arith.constant 0 : index
    %c0_1 = arith.constant 0 : index
    %1 = vector.load %arg9[%c0, %c0_0, %c0_1] : memref<18x18x4xf32, #tpu.memory_space<vmem>>, vector<1x18x4xf32>
    tpu.vector_store %arg9[%c0, %c0_0, %c0_1], %0 {strides = array<i32>} : memref<18x18x4xf32, #tpu.memory_space<vmem>>, vector<1x18x4xf32>,
    %cst_2 = arith.constant 0.000000e+00 : f32
    %2 = vector.broadcast %cst_2 : f32 to vector<1x18x4xf32>
    %c17 = arith.constant 17 : index
    %c0_3 = arith.constant 0 : index
    %c0_4 = arith.constant 0 : index
    %3 = vector.load %arg9[%c17, %c0_3, %c0_4] : memref<18x18x4xf32, #tpu.memory_space<vmem>>, vector<1x18x4xf32>
    tpu.vector_store %arg9[%c17, %c0_3, %c0_4], %2 {strides = array<i32>} : memref<18x18x4xf32, #tpu.memory_space<vmem>>, vector<1x18x4xf32>,
    %cst_5 = arith.constant 0.000000e+00 : f32
    %4 = vector.broadcast %cst_5 : f32 to vector<16x1x4xf32>
    %c1 = arith.constant 1 : index
    %c0_6 = arith.constant 0 : index
    %c0_7 = arith.constant 0 : index
    %5 = vector.load %arg9[%c1, %c0_6, %c0_7] : memref<18x18x4xf32, #tpu.memory_space<vmem>>, vector<16x1x4xf32>
    tpu.vector_store %arg9[%c1, %c0_6, %c0_7], %4 {strides = array<i32>} : memref<18x18x4xf32, #tpu.memory_space<vmem>>, vector<16x1x4xf32>,
    %cst_8 = arith.constant 0.000000e+00 : f32
    %6 = vector.broadcast %cst_8 : f32 to vector<16x1x4xf32>
    %c1_9 = arith.constant 1 : index
    %c17_10 = arith.constant 17 : index
    %c0_11 = arith.constant 0 : index
    %7 = vector.load %arg9[%c1_9, %c17_10, %c0_11] : memref<18x18x4xf32, #tpu.memory_space<vmem>>, vector<16x1x4xf32>
    tpu.vector_store %arg9[%c1_9, %c17_10, %c0_11], %6 {strides = array<i32>} : memref<18x18x4xf32, #tpu.memory_space<vmem>>, vector<16x1x4xf32>,
    %c0_12 = arith.constant 0 : index
    %c0_13 = arith.constant 0 : index
    %c0_14 = arith.constant 0 : index
    %c0_15 = arith.constant 0 : index
    %8 = vector.load %arg1[%c0_12, %c0_13, %c0_14, %c0_15] : memref<1x16x16x4xf32, #tpu.memory_space<vmem>>, vector<1x16x16x4xf32>
    %9 = vector.shape_cast %8 : vector<1x16x16x4xf32> to vector<16x16x4xf32>
    %c1_16 = arith.constant 1 : index
    %c1_17 = arith.constant 1 : index
    %c0_18 = arith.constant 0 : index
    %10 = vector.load %arg9[%c1_16, %c1_17, %c0_18] : memref<18x18x4xf32, #tpu.memory_space<vmem>>, vector<16x16x4xf32>
    tpu.vector_store %arg9[%c1_16, %c1_17, %c0_18], %9 {strides = array<i32>} : memref<18x18x4xf32, #tpu.memory_space<vmem>>, vector<16x16x4xf32>,
    %c0_19 = arith.constant 0 : index
    %c0_20 = arith.constant 0 : index
    %c0_21 = arith.constant 0 : index
    %11 = vector.load %arg9[%c0_19, %c0_20, %c0_21] : memref<18x18x4xf32, #tpu.memory_space<vmem>>, vector<18x16x4xf32>
    %c0_22 = arith.constant 0 : index
    %c0_23 = arith.constant 0 : index
    %c0_24 = arith.constant 0 : index
    %12 = vector.load %arg10[%c0_22, %c0_23, %c0_24] : memref<18x16x12xf32, #tpu.memory_space<vmem>>, vector<18x16x4xf32>
    tpu.vector_store %arg10[%c0_22, %c0_23, %c0_24], %11 {strides = array<i32>} : memref<18x16x12xf32, #tpu.memory_space<vmem>>, vector<18x16x4xf32>,
    %c0_25 = arith.constant 0 : index
    %c1_26 = arith.constant 1 : index
    %c0_27 = arith.constant 0 : index
    %13 = vector.load %arg9[%c0_25, %c1_26, %c0_27] : memref<18x18x4xf32, #tpu.memory_space<vmem>>, vector<18x16x4xf32>
    %c0_28 = arith.constant 0 : index
    %c0_29 = arith.constant 0 : index
    %c4 = arith.constant 4 : index
    %14 = vector.load %arg10[%c0_28, %c0_29, %c4] : memref<18x16x12xf32, #tpu.memory_space<vmem>>, vector<18x16x4xf32>
    tpu.vector_store %arg10[%c0_28, %c0_29, %c4], %13 {strides = array<i32>} : memref<18x16x12xf32, #tpu.memory_space<vmem>>, vector<18x16x4xf32>,
    %c0_30 = arith.constant 0 : index
    %c2 = arith.constant 2 : index
    %c0_31 = arith.constant 0 : index
    %15 = vector.load %arg9[%c0_30, %c2, %c0_31] : memref<18x18x4xf32, #tpu.memory_space<vmem>>, vector<18x16x4xf32>
    %c0_32 = arith.constant 0 : index
    %c0_33 = arith.constant 0 : index
    %c8 = arith.constant 8 : index
    %16 = vector.load %arg10[%c0_32, %c0_33, %c8] : memref<18x16x12xf32, #tpu.memory_space<vmem>>, vector<18x16x4xf32>
    tpu.vector_store %arg10[%c0_32, %c0_33, %c8], %15 {strides = array<i32>} : memref<18x16x12xf32, #tpu.memory_space<vmem>>, vector<18x16x4xf32>,
    %c0_34 = arith.constant 0 : index
    %c0_35 = arith.constant 0 : index
    %c0_36 = arith.constant 0 : index
    %17 = vector.load %arg10[%c0_34, %c0_35, %c0_36] : memref<18x16x12xf32, #tpu.memory_space<vmem>>, vector<16x16x12xf32>
    %18 = vector.shape_cast %17 : vector<16x16x12xf32> to vector<256x12xf32>
    %c0_37 = arith.constant 0 : index
    %c0_38 = arith.constant 0 : index
    %19 = vector.load %arg2[%c0_37, %c0_38] : memref<36x4xf32, #tpu.memory_space<vmem>>, vector<12x4xf32>
    %cst_39 = arith.constant dense<0.000000e+00> : vector<256x4xf32>
    %20 = tpu.matmul %18, %19, %cst_39 {dimension_numbers = #tpu.dot_dimension_numbers<[1], [0], [0], [1], [0, 0, 1, 1], [], []>} : vector<256x12xf32>, vector<12x4xf32>, vector<256x4xf32> -> vector<256x4xf32>
    %c1_40 = arith.constant 1 : index
    %c0_41 = arith.constant 0 : index
    %c0_42 = arith.constant 0 : index
    %21 = vector.load %arg10[%c1_40, %c0_41, %c0_42] : memref<18x16x12xf32, #tpu.memory_space<vmem>>, vector<16x16x12xf32>
    %22 = vector.shape_cast %21 : vector<16x16x12xf32> to vector<256x12xf32>
    %c12 = arith.constant 12 : index
    %c0_43 = arith.constant 0 : index
    %23 = vector.load %arg2[%c12, %c0_43] : memref<36x4xf32, #tpu.memory_space<vmem>>, vector<12x4xf32>
    %cst_44 = arith.constant dense<0.000000e+00> : vector<256x4xf32>
    %24 = tpu.matmul %22, %23, %cst_44 {dimension_numbers = #tpu.dot_dimension_numbers<[1], [0], [0], [1], [0, 0, 1, 1], [], []>} : vector<256x12xf32>, vector<12x4xf32>, vector<256x4xf32> -> vector<256x4xf32>
    %25 = arith.addf %20, %24 : vector<256x4xf32>
    %c2_45 = arith.constant 2 : index
    %c0_46 = arith.constant 0 : index
    %c0_47 = arith.constant 0 : index
    %26 = vector.load %arg10[%c2_45, %c0_46, %c0_47] : memref<18x16x12xf32, #tpu.memory_space<vmem>>, vector<16x16x12xf32>
    %27 = vector.shape_cast %26 : vector<16x16x12xf32> to vector<256x12xf32>
    %c24 = arith.constant 24 : index
    %c0_48 = arith.constant 0 : index
    %28 = vector.load %arg2[%c24, %c0_48] : memref<36x4xf32, #tpu.memory_space<vmem>>, vector<12x4xf32>
    %cst_49 = arith.constant dense<0.000000e+00> : vector<256x4xf32>
    %29 = tpu.matmul %27, %28, %cst_49 {dimension_numbers = #tpu.dot_dimension_numbers<[1], [0], [0], [1], [0, 0, 1, 1], [], []>} : vector<256x12xf32>, vector<12x4xf32>, vector<256x4xf32> -> vector<256x4xf32>
    %30 = arith.addf %25, %29 : vector<256x4xf32>
    %c0_50 = arith.constant 0 : index
    %c0_51 = arith.constant 0 : index
    %31 = vector.load %arg4[%c0_50, %c0_51] : memref<1x4xf32, #tpu.memory_space<vmem>>, vector<1x4xf32>
    %32 = vector.broadcast %31 : vector<1x4xf32> to vector<256x4xf32>
    %33 = arith.mulf %30, %32 : vector<256x4xf32>
    %c0_52 = arith.constant 0 : index
    %c0_53 = arith.constant 0 : index
    %34 = vector.load %arg5[%c0_52, %c0_53] : memref<1x4xf32, #tpu.memory_space<vmem>>, vector<1x4xf32>
    %35 = vector.broadcast %34 : vector<1x4xf32> to vector<256x4xf32>
    %36 = arith.addf %33, %35 : vector<256x4xf32>
    %cst_54 = arith.constant 0.000000e+00 : f32
    %37 = vector.broadcast %cst_54 : f32 to vector<256x4xf32>
    %38 = arith.maximumf %36, %37 : vector<256x4xf32>
    %39 = vector.shape_cast %38 : vector<256x4xf32> to vector<16x16x4xf32>
    %c1_55 = arith.constant 1 : index
    %c1_56 = arith.constant 1 : index
    %c0_57 = arith.constant 0 : index
    %40 = vector.load %arg9[%c1_55, %c1_56, %c0_57] : memref<18x18x4xf32, #tpu.memory_space<vmem>>, vector<16x16x4xf32>
    tpu.vector_store %arg9[%c1_55, %c1_56, %c0_57], %39 {strides = array<i32>} : memref<18x18x4xf32, #tpu.memory_space<vmem>>, vector<16x16x4xf32>,
    %c0_58 = arith.constant 0 : index
    %c0_59 = arith.constant 0 : index
    %c0_60 = arith.constant 0 : index
    %41 = vector.load %arg9[%c0_58, %c0_59, %c0_60] : memref<18x18x4xf32, #tpu.memory_space<vmem>>, vector<18x16x4xf32>
    %c0_61 = arith.constant 0 : index
    %c0_62 = arith.constant 0 : index
    %c0_63 = arith.constant 0 : index
    %42 = vector.load %arg10[%c0_61, %c0_62, %c0_63] : memref<18x16x12xf32, #tpu.memory_space<vmem>>, vector<18x16x4xf32>
    tpu.vector_store %arg10[%c0_61, %c0_62, %c0_63], %41 {strides = array<i32>} : memref<18x16x12xf32, #tpu.memory_space<vmem>>, vector<18x16x4xf32>,
    %c0_64 = arith.constant 0 : index
    %c1_65 = arith.constant 1 : index
    %c0_66 = arith.constant 0 : index
    %43 = vector.load %arg9[%c0_64, %c1_65, %c0_66] : memref<18x18x4xf32, #tpu.memory_space<vmem>>, vector<18x16x4xf32>
    %c0_67 = arith.constant 0 : index
    %c0_68 = arith.constant 0 : index
    %c4_69 = arith.constant 4 : index
    %44 = vector.load %arg10[%c0_67, %c0_68, %c4_69] : memref<18x16x12xf32, #tpu.memory_space<vmem>>, vector<18x16x4xf32>
    tpu.vector_store %arg10[%c0_67, %c0_68, %c4_69], %43 {strides = array<i32>} : memref<18x16x12xf32, #tpu.memory_space<vmem>>, vector<18x16x4xf32>,
    %c0_70 = arith.constant 0 : index
    %c2_71 = arith.constant 2 : index
    %c0_72 = arith.constant 0 : index
    %45 = vector.load %arg9[%c0_70, %c2_71, %c0_72] : memref<18x18x4xf32, #tpu.memory_space<vmem>>, vector<18x16x4xf32>
    %c0_73 = arith.constant 0 : index
    %c0_74 = arith.constant 0 : index
    %c8_75 = arith.constant 8 : index
    %46 = vector.load %arg10[%c0_73, %c0_74, %c8_75] : memref<18x16x12xf32, #tpu.memory_space<vmem>>, vector<18x16x4xf32>
    tpu.vector_store %arg10[%c0_73, %c0_74, %c8_75], %45 {strides = array<i32>} : memref<18x16x12xf32, #tpu.memory_space<vmem>>, vector<18x16x4xf32>,
    %c0_76 = arith.constant 0 : index
    %c0_77 = arith.constant 0 : index
    %c0_78 = arith.constant 0 : index
    %47 = vector.load %arg10[%c0_76, %c0_77, %c0_78] : memref<18x16x12xf32, #tpu.memory_space<vmem>>, vector<16x16x12xf32>
    %48 = vector.shape_cast %47 : vector<16x16x12xf32> to vector<256x12xf32>
    %c0_79 = arith.constant 0 : index
    %c0_80 = arith.constant 0 : index
    %49 = vector.load %arg3[%c0_79, %c0_80] : memref<36x4xf32, #tpu.memory_space<vmem>>, vector<12x4xf32>
    %cst_81 = arith.constant dense<0.000000e+00> : vector<256x4xf32>
    %50 = tpu.matmul %48, %49, %cst_81 {dimension_numbers = #tpu.dot_dimension_numbers<[1], [0], [0], [1], [0, 0, 1, 1], [], []>} : vector<256x12xf32>, vector<12x4xf32>, vector<256x4xf32> -> vector<256x4xf32>
    %c1_82 = arith.constant 1 : index
    %c0_83 = arith.constant 0 : index
    %c0_84 = arith.constant 0 : index
    %51 = vector.load %arg10[%c1_82, %c0_83, %c0_84] : memref<18x16x12xf32, #tpu.memory_space<vmem>>, vector<16x16x12xf32>
    %52 = vector.shape_cast %51 : vector<16x16x12xf32> to vector<256x12xf32>
    %c12_85 = arith.constant 12 : index
    %c0_86 = arith.constant 0 : index
    %53 = vector.load %arg3[%c12_85, %c0_86] : memref<36x4xf32, #tpu.memory_space<vmem>>, vector<12x4xf32>
    %cst_87 = arith.constant dense<0.000000e+00> : vector<256x4xf32>
    %54 = tpu.matmul %52, %53, %cst_87 {dimension_numbers = #tpu.dot_dimension_numbers<[1], [0], [0], [1], [0, 0, 1, 1], [], []>} : vector<256x12xf32>, vector<12x4xf32>, vector<256x4xf32> -> vector<256x4xf32>
    %55 = arith.addf %50, %54 : vector<256x4xf32>
    %c2_88 = arith.constant 2 : index
    %c0_89 = arith.constant 0 : index
    %c0_90 = arith.constant 0 : index
    %56 = vector.load %arg10[%c2_88, %c0_89, %c0_90] : memref<18x16x12xf32, #tpu.memory_space<vmem>>, vector<16x16x12xf32>
    %57 = vector.shape_cast %56 : vector<16x16x12xf32> to vector<256x12xf32>
    %c24_91 = arith.constant 24 : index
    %c0_92 = arith.constant 0 : index
    %58 = vector.load %arg3[%c24_91, %c0_92] : memref<36x4xf32, #tpu.memory_space<vmem>>, vector<12x4xf32>
    %cst_93 = arith.constant dense<0.000000e+00> : vector<256x4xf32>
    %59 = tpu.matmul %57, %58, %cst_93 {dimension_numbers = #tpu.dot_dimension_numbers<[1], [0], [0], [1], [0, 0, 1, 1], [], []>} : vector<256x12xf32>, vector<12x4xf32>, vector<256x4xf32> -> vector<256x4xf32>
    %60 = arith.addf %55, %59 : vector<256x4xf32>
    %c0_94 = arith.constant 0 : index
    %c0_95 = arith.constant 0 : index
    %61 = vector.load %arg6[%c0_94, %c0_95] : memref<1x4xf32, #tpu.memory_space<vmem>>, vector<1x4xf32>
    %62 = vector.broadcast %61 : vector<1x4xf32> to vector<256x4xf32>
    %63 = arith.mulf %60, %62 : vector<256x4xf32>
    %c0_96 = arith.constant 0 : index
    %c0_97 = arith.constant 0 : index
    %64 = vector.load %arg7[%c0_96, %c0_97] : memref<1x4xf32, #tpu.memory_space<vmem>>, vector<1x4xf32>
    %65 = vector.broadcast %64 : vector<1x4xf32> to vector<256x4xf32>
    %66 = arith.addf %63, %65 : vector<256x4xf32>
    %c0_98 = arith.constant 0 : index
    %c0_99 = arith.constant 0 : index
    %c0_100 = arith.constant 0 : index
    %c0_101 = arith.constant 0 : index
    %67 = vector.load %arg1[%c0_98, %c0_99, %c0_100, %c0_101] : memref<1x16x16x4xf32, #tpu.memory_space<vmem>>, vector<1x16x16x4xf32>
    %68 = vector.shape_cast %67 : vector<1x16x16x4xf32> to vector<16x16x4xf32>
    %69 = vector.shape_cast %68 : vector<16x16x4xf32> to vector<256x4xf32>
    %70 = arith.addf %66, %69 : vector<256x4xf32>
    %cst_102 = arith.constant 0.000000e+00 : f32
    %71 = vector.broadcast %cst_102 : f32 to vector<256x4xf32>
    %72 = arith.maximumf %70, %71 : vector<256x4xf32>
    %73 = vector.shape_cast %72 : vector<256x4xf32> to vector<16x16x4xf32>
    %c0_103 = arith.constant 0 : index
    %c0_104 = arith.constant 0 : index
    %c0_105 = arith.constant 0 : index
    %c0_106 = arith.constant 0 : index
    %74 = vector.load %arg8[%c0_103, %c0_104, %c0_105, %c0_106] : memref<1x16x16x4xf32, #tpu.memory_space<vmem>>, vector<1x16x16x4xf32>
    %75 = vector.shape_cast %74 : vector<1x16x16x4xf32> to vector<16x16x4xf32>
    %76 = vector.shape_cast %73 : vector<16x16x4xf32> to vector<1x16x16x4xf32>
    tpu.vector_store %arg8[%c0_103, %c0_104, %c0_105, %c0_106], %76 {strides = array<i32>} : memref<1x16x16x4xf32, #tpu.memory_space<vmem>>, vector<1x16x16x4xf32>,
    return
  }
  func.func @transform_0(%arg0: i32) -> (i32, i32, i32, i32) {
    %c0_i32 = arith.constant 0 : i32
    %c0_i32_0 = arith.constant 0 : i32
    %c0_i32_1 = arith.constant 0 : i32
    %c0_i32_2 = arith.constant 0 : i32
    return %arg0, %c0_i32, %c0_i32_0, %c0_i32_1 : i32, i32, i32, i32
  }
  func.func @transform_1(%arg0: i32) -> (i32, i32) {
    %c0_i32 = arith.constant 0 : i32
    %c0_i32_0 = arith.constant 0 : i32
    %c0_i32_1 = arith.constant 0 : i32
    return %c0_i32, %c0_i32_0 : i32, i32
  }
  func.func @transform_2(%arg0: i32) -> (i32, i32) {
    %c0_i32 = arith.constant 0 : i32
    %c0_i32_0 = arith.constant 0 : i32
    %c0_i32_1 = arith.constant 0 : i32
    return %c0_i32, %c0_i32_0 : i32, i32
  }
  func.func @transform_3(%arg0: i32) -> (i32, i32) {
    %c0_i32 = arith.constant 0 : i32
    %c0_i32_0 = arith.constant 0 : i32
    %c0_i32_1 = arith.constant 0 : i32
    return %c0_i32, %c0_i32_0 : i32, i32
  }
  func.func @transform_4(%arg0: i32) -> (i32, i32) {
    %c0_i32 = arith.constant 0 : i32
    %c0_i32_0 = arith.constant 0 : i32
    %c0_i32_1 = arith.constant 0 : i32
    return %c0_i32, %c0_i32_0 : i32, i32
  }
  func.func @transform_5(%arg0: i32) -> (i32, i32) {
    %c0_i32 = arith.constant 0 : i32
    %c0_i32_0 = arith.constant 0 : i32
    %c0_i32_1 = arith.constant 0 : i32
    return %c0_i32, %c0_i32_0 : i32, i32
  }
  func.func @transform_6(%arg0: i32) -> (i32, i32) {
    %c0_i32 = arith.constant 0 : i32
    %c0_i32_0 = arith.constant 0 : i32
    %c0_i32_1 = arith.constant 0 : i32
    return %c0_i32, %c0_i32_0 : i32, i32
  }
  func.func @transform_7(%arg0: i32) -> (i32, i32, i32, i32) {
    %c0_i32 = arith.constant 0 : i32
    %c0_i32_0 = arith.constant 0 : i32
    %c0_i32_1 = arith.constant 0 : i32
    %c0_i32_2 = arith.constant 0 : i32
    return %arg0, %c0_i32, %c0_i32_0, %c0_i32_1 : i32, i32, i32, i32
  }
}

</mosaic_0001>

<llo_original>
// kernel: tpu_custom_call.1
$region0: #{tpu_custom_call.1}
  #allocation0 [shape = 'u32[]', space=smem, size = 0x4, offset = 0x4, fixed_abs, tag = 'smem constant byte address 0x4 - core index']
  #allocation1 [shape = 'u32[144,128]{1,0:T(1,128)}', space=vmem, size = 0x12000, scoped, tag = 'internal scratch']
  #allocation2 [shape = 'f32[18,18,4]{2,1,0:T(8,128)}', space=vmem, size = 0x36000, scoped, tag = 'scratch operand']
  #allocation3 [shape = 'f32[18,16,12]{2,1,0:T(8,128)}', space=vmem, size = 0x24000, scoped, tag = 'scratch operand']
  %s0 = inlined_call_operand.vmem [shape: f32[2,16,16,4], index: 0, kind: input, shape index: {}]
  %s1 = inlined_call_operand.vmem [shape: f32[36,4], index: 1, kind: input, shape index: {}]
  %s2 = inlined_call_operand.vmem [shape: f32[36,4], index: 2, kind: input, shape index: {}]
  %s3 = inlined_call_operand.vmem [shape: f32[1,4], index: 3, kind: input, shape index: {}]
  %s4 = inlined_call_operand.vmem [shape: f32[1,4], index: 4, kind: input, shape index: {}]
  %s5 = inlined_call_operand.vmem [shape: f32[1,4], index: 5, kind: input, shape index: {}]
  %s6 = inlined_call_operand.vmem [shape: f32[1,4], index: 6, kind: input, shape index: {}]
  %s7 = inlined_call_operand.vmem [shape: f32[2,16,16,4], index: 7, kind: output, shape index: {}]
  %s8 = sld [smem:[#allocation0]]
  $region61: #{tpu_custom_call.1} parent=0
    _
  %s10 = ssub.s32 1, %s8
  %s11 = scalar_select 0, %s10, %s8
  loop: start=0, step=1, limit=4
  $region2: #{tpu_custom_call.1} parent=0 // loop_pre_header
    _
  $region3: #{tpu_custom_call.1} parent=0 // loop_header
    %s13 = sphi 0, %s17
    %p14 = scmp.ge.s32.totalorder %s13, 4
    %s23 = sphi 0, %s25
    %s26 = sphi 0, %s23
    %s27 = sphi 0, %s26
    %s43 = sphi 0, %s27
    %s47 = sphi 0, %s47
    %s49 = sphi 0, %s47
    %s50 = sphi 0, %s49
    %s64 = sphi 0, %s50
    %s68 = sphi 0, %s68
    %s70 = sphi 0, %s68
    %s71 = sphi 0, %s70
    %s85 = sphi 0, %s71
    %s89 = sphi 0, %s89
    %s91 = sphi 0, %s89
    %s92 = sphi 0, %s91
    %s106 = sphi 0, %s92
    %s110 = sphi 0, %s110
    %s112 = sphi 0, %s110
    %s113 = sphi 0, %s112
    %s127 = sphi 0, %s113
    %s131 = sphi 0, %s131
    %s133 = sphi 0, %s131
    %s134 = sphi 0, %s133
    %s148 = sphi 0, %s134
    %s152 = sphi 0, %s152
    %s154 = sphi 0, %s152
    %s155 = sphi 0, %s154
    %s169 = sphi 0, %s155
    %s175 = sphi 0, %s177
    %s178 = sphi 0, %s175
    %s179 = sphi 0, %s178
    %s195 = sphi 0, %s179
  $region4: #{tpu_custom_call.1} parent=0 // loop_header_branch
    %16 = sbr.rel (%p14) target = $region8
  $region5: #{tpu_custom_call.1} parent=0 // loop_body
    %s18 = ssub.s32 %s13, 1
    %s19 = ssub.s32 %s13, 2
    %s20 = sadd.s32 %s13, 1
    %s21 = ssub.s32 %s13, %s20
    %p22 = scmp.eq.s32.totalorder %s21, 0
    %s24 = sadd.s32 %s23, 1
    %s25 = scalar_select %p22, %s23, %s24
    %p28 = pneg %p22
    %p29 = scmp.eq.s32.totalorder %s13, 1
    %p30 = por %p28, %p29
    %p31 = scmp.ne.s32.totalorder %s23, %s26
    %p32 = scmp.eq.s32.totalorder %s13, 0
    %p33 = por %p31, %p32
    %p34 = scmp.ne.s32.totalorder %s23, %s26
    %p35 = scmp.eq.s32.totalorder %s18, 1
    %p36 = por %p34, %p35
    %p37 = scmp.ne.s32.totalorder %s26, %s27
    %p38 = scmp.eq.s32.totalorder %s18, 0
    %p39 = por %p37, %p38
    %p40 = scmp.ne.s32.totalorder %s26, %s27
    %p41 = scmp.eq.s32.totalorder %s19, 1
    %p42 = por %p40, %p41
    %p44 = scmp.ne.s32.totalorder %s27, %s43
    %p45 = scmp.eq.s32.totalorder %s19, 0
    %p46 = por %p44, %p45
    %s48 = sadd.s32 %s47, 1
    %p51 = scmp.eq.s32.totalorder %s13, 1
    %p52 = scmp.ne.s32.totalorder %s47, %s49
    %p53 = scmp.eq.s32.totalorder %s13, 0
    %p54 = por %p52, %p53
    %p55 = scmp.ne.s32.totalorder %s47, %s49
    %p56 = scmp.eq.s32.totalorder %s18, 1
    %p57 = por %p55, %p56
    %p58 = scmp.ne.s32.totalorder %s49, %s50
    %p59 = scmp.eq.s32.totalorder %s18, 0
    %p60 = por %p58, %p59
    %p61 = scmp.ne.s32.totalorder %s49, %s50
    %p62 = scmp.eq.s32.totalorder %s19, 1
    %p63 = por %p61, %p62
    %p65 = scmp.ne.s32.totalorder %s50, %s64
    %p66 = scmp.eq.s32.totalorder %s19, 0
    %p67 = por %p65, %p66
    %s69 = sadd.s32 %s68, 1
    %p72 = scmp.eq.s32.totalorder %s13, 1
    %p73 = scmp.ne.s32.totalorder %s68, %s70
    %p74 = scmp.eq.s32.totalorder %s13, 0
    %p75 = por %p73, %p74
    %p76 = scmp.ne.s32.totalorder %s68, %s70
    %p77 = scmp.eq.s32.totalorder %s18, 1
    %p78 = por %p76, %p77
    %p79 = scmp.ne.s32.totalorder %s70, %s71
    %p80 = scmp.eq.s32.totalorder %s18, 0
    %p81 = por %p79, %p80
    %p82 = scmp.ne.s32.totalorder %s70, %s71
    %p83 = scmp.eq.s32.totalorder %s19, 1
    %p84 = por %p82, %p83
    %p86 = scmp.ne.s32.totalorder %s71, %s85
    %p87 = scmp.eq.s32.totalorder %s19, 0
    %p88 = por %p86, %p87
    %s90 = sadd.s32 %s89, 1
    %p93 = scmp.eq.s32.totalorder %s13, 1
    %p94 = scmp.ne.s32.totalorder %s89, %s91
    %p95 = scmp.eq.s32.totalorder %s13, 0
    %p96 = por %p94, %p95
    %p97 = scmp.ne.s32.totalorder %s89, %s91
    %p98 = scmp.eq.s32.totalorder %s18, 1
    %p99 = por %p97, %p98
    %p100 = scmp.ne.s32.totalorder %s91, %s92
    %p101 = scmp.eq.s32.totalorder %s18, 0
    %p102 = por %p100, %p101
    %p103 = scmp.ne.s32.totalorder %s91, %s92
    %p104 = scmp.eq.s32.totalorder %s19, 1
    %p105 = por %p103, %p104
    %p107 = scmp.ne.s32.totalorder %s92, %s106
    %p108 = scmp.eq.s32.totalorder %s19, 0
    %p109 = por %p107, %p108
    %s111 = sadd.s32 %s110, 1
    %p114 = scmp.eq.s32.totalorder %s13, 1
    %p115 = scmp.ne.s32.totalorder %s110, %s112
    %p116 = scmp.eq.s32.totalorder %s13, 0
    %p117 = por %p115, %p116
    %p118 = scmp.ne.s32.totalorder %s110, %s112
    %p119 = scmp.eq.s32.totalorder %s18, 1
    %p120 = por %p118, %p119
    %p121 = scmp.ne.s32.totalorder %s112, %s113
    %p122 = scmp.eq.s32.totalorder %s18, 0
    %p123 = por %p121, %p122
    %p124 = scmp.ne.s32.totalorder %s112, %s113
    %p125 = scmp.eq.s32.totalorder %s19, 1
    %p126 = por %p124, %p125
    %p128 = scmp.ne.s32.totalorder %s113, %s127
    %p129 = scmp.eq.s32.totalorder %s19, 0
    %p130 = por %p128, %p129
    %s132 = sadd.s32 %s131, 1
    %p135 = scmp.eq.s32.totalorder %s13, 1
    %p136 = scmp.ne.s32.totalorder %s131, %s133
    %p137 = scmp.eq.s32.totalorder %s13, 0
    %p138 = por %p136, %p137
    %p139 = scmp.ne.s32.totalorder %s131, %s133
    %p140 = scmp.eq.s32.totalorder %s18, 1
    %p141 = por %p139, %p140
    %p142 = scmp.ne.s32.totalorder %s133, %s134
    %p143 = scmp.eq.s32.totalorder %s18, 0
    %p144 = por %p142, %p143
    %p145 = scmp.ne.s32.totalorder %s133, %s134
    %p146 = scmp.eq.s32.totalorder %s19, 1
    %p147 = por %p145, %p146
    %p149 = scmp.ne.s32.totalorder %s134, %s148
    %p150 = scmp.eq.s32.totalorder %s19, 0
    %p151 = por %p149, %p150
    %s153 = sadd.s32 %s152, 1
    %p156 = scmp.eq.s32.totalorder %s13, 1
    %p157 = scmp.ne.s32.totalorder %s152, %s154
    %p158 = scmp.eq.s32.totalorder %s13, 0
    %p159 = por %p157, %p158
    %p160 = scmp.ne.s32.totalorder %s152, %s154
    %p161 = scmp.eq.s32.totalorder %s18, 1
    %p162 = por %p160, %p161
    %p163 = scmp.ne.s32.totalorder %s154, %s155
    %p164 = scmp.eq.s32.totalorder %s18, 0
    %p165 = por %p163, %p164
    %p166 = scmp.ne.s32.totalorder %s154, %s155
    %p167 = scmp.eq.s32.totalorder %s19, 1
    %p168 = por %p166, %p167
    %p170 = scmp.ne.s32.totalorder %s155, %s169
    %p171 = scmp.eq.s32.totalorder %s19, 0
    %p172 = por %p170, %p171
    %s173 = ssub.s32 %s13, %s20
    %p174 = scmp.eq.s32.totalorder %s173, 0
    %s176 = sadd.s32 %s175, 1
    %s177 = scalar_select %p174, %s175, %s176
    %p180 = pneg %p174
    %p181 = scmp.eq.s32.totalorder %s13, 1
    %p182 = por %p180, %p181
    %p183 = scmp.ne.s32.totalorder %s175, %s178
    %p184 = scmp.eq.s32.totalorder %s13, 0
    %p185 = por %p183, %p184
    %p186 = scmp.ne.s32.totalorder %s175, %s178
    %p187 = scmp.eq.s32.totalorder %s18, 1
    %p188 = por %p186, %p187
    %p189 = scmp.ne.s32.totalorder %s178, %s179
    %p190 = scmp.eq.s32.totalorder %s18, 0
    %p191 = por %p189, %p190
    %p192 = scmp.ne.s32.totalorder %s178, %s179
    %p193 = scmp.eq.s32.totalorder %s19, 1
    %p194 = por %p192, %p193
    %p196 = scmp.ne.s32.totalorder %s179, %s195
    %p197 = scmp.eq.s32.totalorder %s19, 0
    %p198 = por %p196, %p197
    %p199 = scmp.le.s32.totalorder 1, %s13
    %p200 = scmp.lt.s32.totalorder %s13, 3
    %p201 = pnand %p199, %p200
    %p202 = pneg %p201
    // Predicated region
    $region9: #{tpu_custom_call.1} parent=5 // pred_check
      _
    $region10: #{tpu_custom_call.1} parent=5 // pred_check_branch
      %204 = sbr.rel (%p201) target = $region12
    $region11: #{tpu_custom_call.1} parent=5 // pred_region
      %s205 = ssub.s32 %s13, 1
      // Predicated region
      $region13: #{tpu_custom_call.1} parent=11 // pred_check
        %p206 = pneg %p60
      $region14: #{tpu_custom_call.1} parent=11 // pred_check_branch
        %208 = sbr.rel (%p206) target = $region16
      $region15: #{tpu_custom_call.1} parent=11 // pred_region
        _
      $region16: #{tpu_custom_call.1} parent=11 // pred_fallthru
        _
      // Predicated region
      $region17: #{tpu_custom_call.1} parent=11 // pred_check
        %p209 = pneg %p81
      $region18: #{tpu_custom_call.1} parent=11 // pred_check_branch
        %211 = sbr.rel (%p209) target = $region20
      $region19: #{tpu_custom_call.1} parent=11 // pred_region
        _
      $region20: #{tpu_custom_call.1} parent=11 // pred_fallthru
        _
      // Predicated region
      $region21: #{tpu_custom_call.1} parent=11 // pred_check
        %p212 = pneg %p102
      $region22: #{tpu_custom_call.1} parent=11 // pred_check_branch
        %214 = sbr.rel (%p212) target = $region24
      $region23: #{tpu_custom_call.1} parent=11 // pred_region
        _
      $region24: #{tpu_custom_call.1} parent=11 // pred_fallthru
        _
      // Predicated region
      $region25: #{tpu_custom_call.1} parent=11 // pred_check
        %p215 = pneg %p123
      $region26: #{tpu_custom_call.1} parent=11 // pred_check_branch
        %217 = sbr.rel (%p215) target = $region28
      $region27: #{tpu_custom_call.1} parent=11 // pred_region
        _
      $region28: #{tpu_custom_call.1} parent=11 // pred_fallthru
        _
      // Predicated region
      $region29: #{tpu_custom_call.1} parent=11 // pred_check
        %p218 = pneg %p144
      $region30: #{tpu_custom_call.1} parent=11 // pred_check_branch
        %220 = sbr.rel (%p218) target = $region32
      $region31: #{tpu_custom_call.1} parent=11 // pred_region
        _
      $region32: #{tpu_custom_call.1} parent=11 // pred_fallthru
        _
      // Predicated region
      $region33: #{tpu_custom_call.1} parent=11 // pred_check
        %p221 = pneg %p165
      $region34: #{tpu_custom_call.1} parent=11 // pred_check_branch
        %223 = sbr.rel (%p221) target = $region36
      $region35: #{tpu_custom_call.1} parent=11 // pred_region
        _
      $region36: #{tpu_custom_call.1} parent=11 // pred_fallthru
        _
    $region12: #{tpu_custom_call.1} parent=5 // pred_fallthru
      _
    %p224 = scmp.lt.s32.totalorder %s13, 2
    // Predicated region
    $region37: #{tpu_custom_call.1} parent=5 // pred_check
      %p225 = pneg %p224
    $region38: #{tpu_custom_call.1} parent=5 // pred_check_branch
      %227 = sbr.rel (%p225) target = $region40
    $region39: #{tpu_custom_call.1} parent=5 // pred_region
      // Predicated region
      $region41: #{tpu_custom_call.1} parent=39 // pred_check
        %p228 = pneg %p33
      $region42: #{tpu_custom_call.1} parent=39 // pred_check_branch
        %230 = sbr.rel (%p228) target = $region44
      $region43: #{tpu_custom_call.1} parent=39 // pred_region
        %p231 = scmp.lt.s32.totalorder %s13, 1
        %s232 = scalar_select %p231, %s13, 1
        %s233 = smul.addr %s232, 32
        %s234 = smul.addr %s233, 8
        %s235 = scalar_lea.vmem %s0, %s234
      $region44: #{tpu_custom_call.1} parent=39 // pred_fallthru
        _
    $region40: #{tpu_custom_call.1} parent=5 // pred_fallthru
      _
    %p236 = scmp.le.s32.totalorder 1, %s13
    %p237 = scmp.lt.s32.totalorder %s13, 3
    %p238 = pnand %p236, %p237
    %p239 = pneg %p238
    // Predicated region
    $region45: #{tpu_custom_call.1} parent=5 // pred_check
      _
    $region46: #{tpu_custom_call.1} parent=5 // pred_check_branch
      %241 = sbr.rel (%p238) target = $region48
    $region47: #{tpu_custom_call.1} parent=5 // pred_region
      %s242 = ssub.s32 %s13, 1
      %p243 = scmp.lt.s32.totalorder %s18, 1
      %s244 = scalar_select %p243, %s18, 1
      %s245 = smul.addr %s244, 32
      %s246 = smul.addr %s245, 8
      %s247 = scalar_lea.vmem %s0, %s246
      %p248 = pneg %p39
      %p249 = pneg %p36
      %p250 = pneg %p60
      %p251 = pneg %p57
      %p252 = pneg %p81
      %p253 = pneg %p78
      %p254 = pneg %p102
      %p255 = pneg %p99
      %p256 = pneg %p123
      %p257 = pneg %p120
      %p258 = pneg %p144
      %p259 = pneg %p141
      %p260 = pneg %p165
      %p261 = pneg %p162
      %p262 = pneg %p191
      %p263 = pneg %p188
      %p264 = scmp.lt.s32.totalorder %s18, 1
      %s265 = scalar_select %p264, %s18, 1
      %s266 = smul.addr %s265, 32
      %s267 = smul.addr %s266, 8
      %s268 = scalar_lea.vmem %s7, %s267
      %p269 = scmp.lt.s32.totalorder %s18, 1
      %s270 = scalar_select %p269, %s18, 1
      %s271 = smul.addr %s270, 32
      %s272 = smul.addr %s271, 8
      %s273 = scalar_lea.vmem %s0, %s272
      %p274 = scmp.lt.s32.totalorder %s18, 1
      %s275 = scalar_select %p274, %s18, 1
      %s276 = smul.addr %s275, 32
      %s277 = smul.addr %s276, 8
      %s278 = scalar_lea.vmem %s7, %s277
      %vm279 = vcmask 31744
      %280 = vst.msk [vmem:[#allocation2] sm:$0xff] %vm279, 0.0
      %281 = vst.msk [vmem:[#allocation2 + $0x8] sm:$0xff] %vm279, 0.0
      %vm282 = vcmask 25600
      %283 = vst.msk [vmem:[#allocation2 + $0x10] sm:$0x3] %vm282, 0.0
      %s284 = scalar_lea.vmem [#allocation2], 408
      %285 = vst.msk [vmem:[%s284] sm:$0xff] %vm279, 0.0
      %286 = vst.msk [vmem:[%s284 + $0x8] sm:$0xff] %vm279, 0.0
      %287 = vst.msk [vmem:[%s284 + $0x10] sm:$0x3] %vm282, 0.0
      %s288 = scalar_lea.vmem [#allocation2], 24
      %vm289 = vcmask 24576
      %290 = vst.msk [vmem:[%s288] sm:$0x1] %vm289, 0.0
      %291 = vst.msk [vmem:[%s288 + $0x18] sm:$0x1] %vm289, 0.0
      %292 = vst.msk [vmem:[%s288 + $0x30] sm:$0x1] %vm289, 0.0
      %293 = vst.msk [vmem:[%s288 + $0x48] sm:$0x1] %vm289, 0.0
      %294 = vst.msk [vmem:[%s288 + $0x60] sm:$0x1] %vm289, 0.0
      %295 = vst.msk [vmem:[%s288 + $0x78] sm:$0x1] %vm289, 0.0
      %296 = vst.msk [vmem:[%s288 + $0x90] sm:$0x1] %vm289, 0.0
      %297 = vst.msk [vmem:[%s288 + $0xa8] sm:$0x1] %vm289, 0.0
      %298 = vst.msk [vmem:[%s288 + $0xc0] sm:$0x1] %vm289, 0.0
      %299 = vst.msk [vmem:[%s288 + $0xd8] sm:$0x1] %vm289, 0.0
      %300 = vst.msk [vmem:[%s288 + $0xf0] sm:$0x1] %vm289, 0.0
      %301 = vst.msk [vmem:[%s288 + $0x108] sm:$0x1] %vm289, 0.0
      %302 = vst.msk [vmem:[%s288 + $0x120] sm:$0x1] %vm289, 0.0
      %303 = vst.msk [vmem:[%s288 + $0x138] sm:$0x1] %vm289, 0.0
      %304 = vst.msk [vmem:[%s288 + $0x150] sm:$0x1] %vm289, 0.0
      %305 = vst.msk [vmem:[%s288 + $0x168] sm:$0x1] %vm289, 0.0
      %306 = vst.msk [vmem:[%s288 + $0x11] sm:$0x1] %vm289, 0.0
      %307 = vst.msk [vmem:[%s288 + $0x29] sm:$0x1] %vm289, 0.0
      %308 = vst.msk [vmem:[%s288 + $0x41] sm:$0x1] %vm289, 0.0
      %309 = vst.msk [vmem:[%s288 + $0x59] sm:$0x1] %vm289, 0.0
      %310 = vst.msk [vmem:[%s288 + $0x71] sm:$0x1] %vm289, 0.0
      %311 = vst.msk [vmem:[%s288 + $0x89] sm:$0x1] %vm289, 0.0
      %312 = vst.msk [vmem:[%s288 + $0xa1] sm:$0x1] %vm289, 0.0
      %313 = vst.msk [vmem:[%s288 + $0xb9] sm:$0x1] %vm289, 0.0
      %314 = vst.msk [vmem:[%s288 + $0xd1] sm:$0x1] %vm289, 0.0
      %315 = vst.msk [vmem:[%s288 + $0xe9] sm:$0x1] %vm289, 0.0
      %316 = vst.msk [vmem:[%s288 + $0x101] sm:$0x1] %vm289, 0.0
      %317 = vst.msk [vmem:[%s288 + $0x119] sm:$0x1] %vm289, 0.0
      %318 = vst.msk [vmem:[%s288 + $0x131] sm:$0x1] %vm289, 0.0
      %319 = vst.msk [vmem:[%s288 + $0x149] sm:$0x1] %vm289, 0.0
      %320 = vst.msk [vmem:[%s288 + $0x161] sm:$0x1] %vm289, 0.0
      %321 = vst.msk [vmem:[%s288 + $0x179] sm:$0x1] %vm289, 0.0
      %v322 = vld [vmem:[%s273] sm:$0xff]
      %v323 = vld [vmem:[%s273 + $0x8] sm:$0xff]
      %v324 = vld [vmem:[%s273 + $0x10] sm:$0xff]
      %v325 = vld [vmem:[%s273 + $0x18] sm:$0xff]
      %v326 = vld [vmem:[%s273 + $0x20] sm:$0xff]
      %v327 = vld [vmem:[%s273 + $0x28] sm:$0xff]
      %v328 = vld [vmem:[%s273 + $0x30] sm:$0xff]
      %v329 = vld [vmem:[%s273 + $0x38] sm:$0xff]
      %v330 = vld [vmem:[%s273 + $0x40] sm:$0xff]
      %v331 = vld [vmem:[%s273 + $0x48] sm:$0xff]
      %v332 = vld [vmem:[%s273 + $0x50] sm:$0xff]
      %v333 = vld [vmem:[%s273 + $0x58] sm:$0xff]
      %v334 = vld [vmem:[%s273 + $0x60] sm:$0xff]
      %v335 = vld [vmem:[%s273 + $0x68] sm:$0xff]
      %v336 = vld [vmem:[%s273 + $0x70] sm:$0xff]
      %v337 = vld [vmem:[%s273 + $0x78] sm:$0xff]
      %v338 = vld [vmem:[%s273 + $0x80] sm:$0xff]
      %v339 = vld [vmem:[%s273 + $0x88] sm:$0xff]
      %v340 = vld [vmem:[%s273 + $0x90] sm:$0xff]
      %v341 = vld [vmem:[%s273 + $0x98] sm:$0xff]
      %v342 = vld [vmem:[%s273 + $0xa0] sm:$0xff]
      %v343 = vld [vmem:[%s273 + $0xa8] sm:$0xff]
      %v344 = vld [vmem:[%s273 + $0xb0] sm:$0xff]
      %v345 = vld [vmem:[%s273 + $0xb8] sm:$0xff]
      %v346 = vld [vmem:[%s273 + $0xc0] sm:$0xff]
      %v347 = vld [vmem:[%s273 + $0xc8] sm:$0xff]
      %v348 = vld [vmem:[%s273 + $0xd0] sm:$0xff]
      %v349 = vld [vmem:[%s273 + $0xd8] sm:$0xff]
      %v350 = vld [vmem:[%s273 + $0xe0] sm:$0xff]
      %v351 = vld [vmem:[%s273 + $0xe8] sm:$0xff]
      %v352 = vld [vmem:[%s273 + $0xf0] sm:$0xff]
      %v353 = vld [vmem:[%s273 + $0xf8] sm:$0xff]
      %354 = vst.msk [vmem:[%s288 + $0x1] sm:$0xff] %vm279, %v322
      %355 = vst.msk [vmem:[%s288 + $0x9] sm:$0xff] %vm279, %v323
      %356 = vst.msk [vmem:[%s288 + $0x19] sm:$0xff] %vm279, %v324
      %357 = vst.msk [vmem:[%s288 + $0x21] sm:$0xff] %vm279, %v325
      %358 = vst.msk [vmem:[%s288 + $0x31] sm:$0xff] %vm279, %v326
      %359 = vst.msk [vmem:[%s288 + $0x39] sm:$0xff] %vm279, %v327
      %360 = vst.msk [vmem:[%s288 + $0x49] sm:$0xff] %vm279, %v328
      %361 = vst.msk [vmem:[%s288 + $0x51] sm:$0xff] %vm279, %v329
      %362 = vst.msk [vmem:[%s288 + $0x61] sm:$0xff] %vm279, %v330
      %363 = vst.msk [vmem:[%s288 + $0x69] sm:$0xff] %vm279, %v331
      %364 = vst.msk [vmem:[%s288 + $0x79] sm:$0xff] %vm279, %v332
      %365 = vst.msk [vmem:[%s288 + $0x81] sm:$0xff] %vm279, %v333
      %366 = vst.msk [vmem:[%s288 + $0x91] sm:$0xff] %vm279, %v334
      %367 = vst.msk [vmem:[%s288 + $0x99] sm:$0xff] %vm279, %v335
      %368 = vst.msk [vmem:[%s288 + $0xa9] sm:$0xff] %vm279, %v336
      %369 = vst.msk [vmem:[%s288 + $0xb1] sm:$0xff] %vm279, %v337
      %370 = vst.msk [vmem:[%s288 + $0xc1] sm:$0xff] %vm279, %v338
      %371 = vst.msk [vmem:[%s288 + $0xc9] sm:$0xff] %vm279, %v339
      %372 = vst.msk [vmem:[%s288 + $0xd9] sm:$0xff] %vm279, %v340
      %373 = vst.msk [vmem:[%s288 + $0xe1] sm:$0xff] %vm279, %v341
      %374 = vst.msk [vmem:[%s288 + $0xf1] sm:$0xff] %vm279, %v342
      %375 = vst.msk [vmem:[%s288 + $0xf9] sm:$0xff] %vm279, %v343
      %376 = vst.msk [vmem:[%s288 + $0x109] sm:$0xff] %vm279, %v344
      %377 = vst.msk [vmem:[%s288 + $0x111] sm:$0xff] %vm279, %v345
      %378 = vst.msk [vmem:[%s288 + $0x121] sm:$0xff] %vm279, %v346
      %379 = vst.msk [vmem:[%s288 + $0x129] sm:$0xff] %vm279, %v347
      %380 = vst.msk [vmem:[%s288 + $0x139] sm:$0xff] %vm279, %v348
      %381 = vst.msk [vmem:[%s288 + $0x141] sm:$0xff] %vm279, %v349
      %382 = vst.msk [vmem:[%s288 + $0x151] sm:$0xff] %vm279, %v350
      %383 = vst.msk [vmem:[%s288 + $0x159] sm:$0xff] %vm279, %v351
      %384 = vst.msk [vmem:[%s288 + $0x169] sm:$0xff] %vm279, %v352
      %385 = vst.msk [vmem:[%s288 + $0x171] sm:$0xff] %vm279, %v353
      %v386 = vld [vmem:[#allocation2] sm:$0xff]
      %v387 = vld [vmem:[#allocation2 + $0x8] sm:$0xff]
      %v388 = vld [vmem:[#allocation2 + $0x18] sm:$0xff]
      %v389 = vld [vmem:[#allocation2 + $0x20] sm:$0xff]
      %v390 = vld [vmem:[#allocation2 + $0x30] sm:$0xff]
      %v391 = vld [vmem:[#allocation2 + $0x38] sm:$0xff]
      %v392 = vld [vmem:[#allocation2 + $0x48] sm:$0xff]
      %v393 = vld [vmem:[#allocation2 + $0x50] sm:$0xff]
      %v394 = vld [vmem:[#allocation2 + $0x60] sm:$0xff]
      %v395 = vld [vmem:[#allocation2 + $0x68] sm:$0xff]
      %v396 = vld [vmem:[#allocation2 + $0x78] sm:$0xff]
      %v397 = vld [vmem:[#allocation2 + $0x80] sm:$0xff]
      %v398 = vld [vmem:[#allocation2 + $0x90] sm:$0xff]
      %v399 = vld [vmem:[#allocation2 + $0x98] sm:$0xff]
      %v400 = vld [vmem:[#allocation2 + $0xa8] sm:$0xff]
      %v401 = vld [vmem:[#allocation2 + $0xb0] sm:$0xff]
      %v402 = vld [vmem:[#allocation2 + $0xc0] sm:$0xff]
      %v403 = vld [vmem:[#allocation2 + $0xc8] sm:$0xff]
      %v404 = vld [vmem:[#allocation2 + $0xd8] sm:$0xff]
      %v405 = vld [vmem:[#allocation2 + $0xe0] sm:$0xff]
      %v406 = vld [vmem:[#allocation2 + $0xf0] sm:$0xff]
      %v407 = vld [vmem:[#allocation2 + $0xf8] sm:$0xff]
      %v408 = vld [vmem:[#allocation2 + $0x108] sm:$0xff]
      %v409 = vld [vmem:[#allocation2 + $0x110] sm:$0xff]
      %v410 = vld [vmem:[#allocation2 + $0x120] sm:$0xff]
      %v411 = vld [vmem:[#allocation2 + $0x128] sm:$0xff]
      %v412 = vld [vmem:[#allocation2 + $0x138] sm:$0xff]
      %v413 = vld [vmem:[#allocation2 + $0x140] sm:$0xff]
      %v414 = vld [vmem:[#allocation2 + $0x150] sm:$0xff]
      %v415 = vld [vmem:[#allocation2 + $0x158] sm:$0xff]
      %v416 = vld [vmem:[#allocation2 + $0x168] sm:$0xff]
      %v417 = vld [vmem:[#allocation2 + $0x170] sm:$0xff]
      %v418 = vld [vmem:[#allocation2 + $0x180] sm:$0xff]
      %v419 = vld [vmem:[#allocation2 + $0x188] sm:$0xff]
      %v420 = vld [vmem:[#allocation2 + $0x198] sm:$0xff]
      %v421 = vld [vmem:[#allocation2 + $0x1a0] sm:$0xff]
      %422 = vst.msk [vmem:[#allocation3] sm:$0xff] %vm279, %v386
      %423 = vst.msk [vmem:[#allocation3 + $0x8] sm:$0xff] %vm279, %v387
      %424 = vst.msk [vmem:[#allocation3 + $0x10] sm:$0xff] %vm279, %v388
      %425 = vst.msk [vmem:[#allocation3 + $0x18] sm:$0xff] %vm279, %v389
      %426 = vst.msk [vmem:[#allocation3 + $0x20] sm:$0xff] %vm279, %v390
      %427 = vst.msk [vmem:[#allocation3 + $0x28] sm:$0xff] %vm279, %v391
      %428 = vst.msk [vmem:[#allocation3 + $0x30] sm:$0xff] %vm279, %v392
      %429 = vst.msk [vmem:[#allocation3 + $0x38] sm:$0xff] %vm279, %v393
      %430 = vst.msk [vmem:[#allocation3 + $0x40] sm:$0xff] %vm279, %v394
      %431 = vst.msk [vmem:[#allocation3 + $0x48] sm:$0xff] %vm279, %v395
      %432 = vst.msk [vmem:[#allocation3 + $0x50] sm:$0xff] %vm279, %v396
      %433 = vst.msk [vmem:[#allocation3 + $0x58] sm:$0xff] %vm279, %v397
      %434 = vst.msk [vmem:[#allocation3 + $0x60] sm:$0xff] %vm279, %v398
      %435 = vst.msk [vmem:[#allocation3 + $0x68] sm:$0xff] %vm279, %v399
      %436 = vst.msk [vmem:[#allocation3 + $0x70] sm:$0xff] %vm279, %v400
      %437 = vst.msk [vmem:[#allocation3 + $0x78] sm:$0xff] %vm279, %v401
      %438 = vst.msk [vmem:[#allocation3 + $0x80] sm:$0xff] %vm279, %v402
      %439 = vst.msk [vmem:[#allocation3 + $0x88] sm:$0xff] %vm279, %v403
      %440 = vst.msk [vmem:[#allocation3 + $0x90] sm:$0xff] %vm279, %v404
      %441 = vst.msk [vmem:[#allocation3 + $0x98] sm:$0xff] %vm279, %v405
      %442 = vst.msk [vmem:[#allocation3 + $0xa0] sm:$0xff] %vm279, %v406
      %443 = vst.msk [vmem:[#allocation3 + $0xa8] sm:$0xff] %vm279, %v407
      %444 = vst.msk [vmem:[#allocation3 + $0xb0] sm:$0xff] %vm279, %v408
      %445 = vst.msk [vmem:[#allocation3 + $0xb8] sm:$0xff] %vm279, %v409
      %446 = vst.msk [vmem:[#allocation3 + $0xc0] sm:$0xff] %vm279, %v410
      %447 = vst.msk [vmem:[#allocation3 + $0xc8] sm:$0xff] %vm279, %v411
      %448 = vst.msk [vmem:[#allocation3 + $0xd0] sm:$0xff] %vm279, %v412
      %449 = vst.msk [vmem:[#allocation3 + $0xd8] sm:$0xff] %vm279, %v413
      %450 = vst.msk [vmem:[#allocation3 + $0xe0] sm:$0xff] %vm279, %v414
      %451 = vst.msk [vmem:[#allocation3 + $0xe8] sm:$0xff] %vm279, %v415
      %452 = vst.msk [vmem:[#allocation3 + $0xf0] sm:$0xff] %vm279, %v416
      %453 = vst.msk [vmem:[#allocation3 + $0xf8] sm:$0xff] %vm279, %v417
      %454 = vst.msk [vmem:[#allocation3 + $0x100] sm:$0xff] %vm279, %v418
      %455 = vst.msk [vmem:[#allocation3 + $0x108] sm:$0xff] %vm279, %v419
      %456 = vst.msk [vmem:[#allocation3 + $0x110] sm:$0xff] %vm279, %v420
      %457 = vst.msk [vmem:[#allocation3 + $0x118] sm:$0xff] %vm279, %v421
      %v458 = vld [vmem:[#allocation2 + $0x1] sm:$0xff]
      %v459 = vld [vmem:[#allocation2 + $0x9] sm:$0xff]
      %v460 = vld [vmem:[#allocation2 + $0x19] sm:$0xff]
      %v461 = vld [vmem:[#allocation2 + $0x21] sm:$0xff]
      %v462 = vld [vmem:[#allocation2 + $0x31] sm:$0xff]
      %v463 = vld [vmem:[#allocation2 + $0x39] sm:$0xff]
      %v464 = vld [vmem:[#allocation2 + $0x49] sm:$0xff]
      %v465 = vld [vmem:[#allocation2 + $0x51] sm:$0xff]
      %v466 = vld [vmem:[#allocation2 + $0x61] sm:$0xff]
      %v467 = vld [vmem:[#allocation2 + $0x69] sm:$0xff]
      %v468 = vld [vmem:[#allocation2 + $0x79] sm:$0xff]
      %v469 = vld [vmem:[#allocation2 + $0x81] sm:$0xff]
      %v470 = vld [vmem:[#allocation2 + $0x91] sm:$0xff]
      %v471 = vld [vmem:[#allocation2 + $0x99] sm:$0xff]
      %v472 = vld [vmem:[#allocation2 + $0xa9] sm:$0xff]
      %v473 = vld [vmem:[#allocation2 + $0xb1] sm:$0xff]
      %v474 = vld [vmem:[#allocation2 + $0xc1] sm:$0xff]
      %v475 = vld [vmem:[#allocation2 + $0xc9] sm:$0xff]
      %v476 = vld [vmem:[#allocation2 + $0xd9] sm:$0xff]
      %v477 = vld [vmem:[#allocation2 + $0xe1] sm:$0xff]
      %v478 = vld [vmem:[#allocation2 + $0xf1] sm:$0xff]
      %v479 = vld [vmem:[#allocation2 + $0xf9] sm:$0xff]
      %v480 = vld [vmem:[#allocation2 + $0x109] sm:$0xff]
      %v481 = vld [vmem:[#allocation2 + $0x111] sm:$0xff]
      %v482 = vld [vmem:[#allocation2 + $0x121] sm:$0xff]
      %v483 = vld [vmem:[#allocation2 + $0x129] sm:$0xff]
      %v484 = vld [vmem:[#allocation2 + $0x139] sm:$0xff]
      %v485 = vld [vmem:[#allocation2 + $0x141] sm:$0xff]
      %v486 = vld [vmem:[#allocation2 + $0x151] sm:$0xff]
      %v487 = vld [vmem:[#allocation2 + $0x159] sm:$0xff]
      %v488 = vld [vmem:[#allocation2 + $0x169] sm:$0xff]
      %v489 = vld [vmem:[#allocation2 + $0x171] sm:$0xff]
      %v490 = vld [vmem:[#allocation2 + $0x181] sm:$0xff]
      %v491 = vld [vmem:[#allocation2 + $0x189] sm:$0xff]
      %v492 = vld [vmem:[#allocation2 + $0x199] sm:$0xff]
      %v493 = vld [vmem:[#allocation2 + $0x1a1] sm:$0xff]
      %530 = vrot.lane.b32.xlu0 %v458, 4
      %v531 = vpop.permute.xlu0 %530
      %532 = vrot.lane.b32.xlu0 %v459, 4
      %v533 = vpop.permute.xlu0 %532
      %534 = vrot.lane.b32.xlu0 %v460, 4
      %v535 = vpop.permute.xlu0 %534
      %536 = vrot.lane.b32.xlu0 %v461, 4
      %v537 = vpop.permute.xlu0 %536
      %538 = vrot.lane.b32.xlu0 %v462, 4
      %v539 = vpop.permute.xlu0 %538
      %540 = vrot.lane.b32.xlu0 %v463, 4
      %v541 = vpop.permute.xlu0 %540
      %542 = vrot.lane.b32.xlu0 %v464, 4
      %v543 = vpop.permute.xlu0 %542
      %544 = vrot.lane.b32.xlu0 %v465, 4
      %v545 = vpop.permute.xlu0 %544
      %546 = vrot.lane.b32.xlu0 %v466, 4
      %v547 = vpop.permute.xlu0 %546
      %548 = vrot.lane.b32.xlu0 %v467, 4
      %v549 = vpop.permute.xlu0 %548
      %550 = vrot.lane.b32.xlu0 %v468, 4
      %v551 = vpop.permute.xlu0 %550
      %552 = vrot.lane.b32.xlu0 %v469, 4
      %v553 = vpop.permute.xlu0 %552
      %554 = vrot.lane.b32.xlu0 %v470, 4
      %v555 = vpop.permute.xlu0 %554
      %556 = vrot.lane.b32.xlu0 %v471, 4
      %v557 = vpop.permute.xlu0 %556
      %558 = vrot.lane.b32.xlu0 %v472, 4
      %v559 = vpop.permute.xlu0 %558
      %560 = vrot.lane.b32.xlu0 %v473, 4
      %v561 = vpop.permute.xlu0 %560
      %562 = vrot.lane.b32.xlu0 %v474, 4
      %v563 = vpop.permute.xlu0 %562
      %564 = vrot.lane.b32.xlu0 %v475, 4
      %v565 = vpop.permute.xlu0 %564
      %566 = vrot.lane.b32.xlu0 %v476, 4
      %v567 = vpop.permute.xlu0 %566
      %568 = vrot.lane.b32.xlu0 %v477, 4
      %v569 = vpop.permute.xlu0 %568
      %570 = vrot.lane.b32.xlu0 %v478, 4
      %v571 = vpop.permute.xlu0 %570
      %572 = vrot.lane.b32.xlu0 %v479, 4
      %v573 = vpop.permute.xlu0 %572
      %574 = vrot.lane.b32.xlu0 %v480, 4
      %v575 = vpop.permute.xlu0 %574
      %576 = vrot.lane.b32.xlu0 %v481, 4
      %v577 = vpop.permute.xlu0 %576
      %578 = vrot.lane.b32.xlu0 %v482, 4
      %v579 = vpop.permute.xlu0 %578
      %580 = vrot.lane.b32.xlu0 %v483, 4
      %v581 = vpop.permute.xlu0 %580
      %582 = vrot.lane.b32.xlu0 %v484, 4
      %v583 = vpop.permute.xlu0 %582
      %584 = vrot.lane.b32.xlu0 %v485, 4
      %v585 = vpop.permute.xlu0 %584
      %586 = vrot.lane.b32.xlu0 %v486, 4
      %v587 = vpop.permute.xlu0 %586
      %588 = vrot.lane.b32.xlu0 %v487, 4
      %v589 = vpop.permute.xlu0 %588
      %590 = vrot.lane.b32.xlu0 %v488, 4
      %v591 = vpop.permute.xlu0 %590
      %592 = vrot.lane.b32.xlu0 %v489, 4
      %v593 = vpop.permute.xlu0 %592
      %594 = vrot.lane.b32.xlu0 %v490, 4
      %v595 = vpop.permute.xlu0 %594
      %596 = vrot.lane.b32.xlu0 %v491, 4
      %v597 = vpop.permute.xlu0 %596
      %598 = vrot.lane.b32.xlu0 %v492, 4
      %v599 = vpop.permute.xlu0 %598
      %600 = vrot.lane.b32.xlu0 %v493, 4
      %v601 = vpop.permute.xlu0 %600
      %vm638 = vcmask 64544
      %639 = vst.msk [vmem:[#allocation3] sm:$0xff] %vm638, %v531
      %640 = vst.msk [vmem:[#allocation3 + $0x8] sm:$0xff] %vm638, %v533
      %641 = vst.msk [vmem:[#allocation3 + $0x10] sm:$0xff] %vm638, %v535
      %642 = vst.msk [vmem:[#allocation3 + $0x18] sm:$0xff] %vm638, %v537
      %643 = vst.msk [vmem:[#allocation3 + $0x20] sm:$0xff] %vm638, %v539
      %644 = vst.msk [vmem:[#allocation3 + $0x28] sm:$0xff] %vm638, %v541
      %645 = vst.msk [vmem:[#allocation3 + $0x30] sm:$0xff] %vm638, %v543
      %646 = vst.msk [vmem:[#allocation3 + $0x38] sm:$0xff] %vm638, %v545
      %647 = vst.msk [vmem:[#allocation3 + $0x40] sm:$0xff] %vm638, %v547
      %648 = vst.msk [vmem:[#allocation3 + $0x48] sm:$0xff] %vm638, %v549
      %649 = vst.msk [vmem:[#allocation3 + $0x50] sm:$0xff] %vm638, %v551
      %650 = vst.msk [vmem:[#allocation3 + $0x58] sm:$0xff] %vm638, %v553
      %651 = vst.msk [vmem:[#allocation3 + $0x60] sm:$0xff] %vm638, %v555
      %652 = vst.msk [vmem:[#allocation3 + $0x68] sm:$0xff] %vm638, %v557
      %653 = vst.msk [vmem:[#allocation3 + $0x70] sm:$0xff] %vm638, %v559
      %654 = vst.msk [vmem:[#allocation3 + $0x78] sm:$0xff] %vm638, %v561
      %655 = vst.msk [vmem:[#allocation3 + $0x80] sm:$0xff] %vm638, %v563
      %656 = vst.msk [vmem:[#allocation3 + $0x88] sm:$0xff] %vm638, %v565
      %657 = vst.msk [vmem:[#allocation3 + $0x90] sm:$0xff] %vm638, %v567
      %658 = vst.msk [vmem:[#allocation3 + $0x98] sm:$0xff] %vm638, %v569
      %659 = vst.msk [vmem:[#allocation3 + $0xa0] sm:$0xff] %vm638, %v571
      %660 = vst.msk [vmem:[#allocation3 + $0xa8] sm:$0xff] %vm638, %v573
      %661 = vst.msk [vmem:[#allocation3 + $0xb0] sm:$0xff] %vm638, %v575
      %662 = vst.msk [vmem:[#allocation3 + $0xb8] sm:$0xff] %vm638, %v577
      %663 = vst.msk [vmem:[#allocation3 + $0xc0] sm:$0xff] %vm638, %v579
      %664 = vst.msk [vmem:[#allocation3 + $0xc8] sm:$0xff] %vm638, %v581
      %665 = vst.msk [vmem:[#allocation3 + $0xd0] sm:$0xff] %vm638, %v583
      %666 = vst.msk [vmem:[#allocation3 + $0xd8] sm:$0xff] %vm638, %v585
      %667 = vst.msk [vmem:[#allocation3 + $0xe0] sm:$0xff] %vm638, %v587
      %668 = vst.msk [vmem:[#allocation3 + $0xe8] sm:$0xff] %vm638, %v589
      %669 = vst.msk [vmem:[#allocation3 + $0xf0] sm:$0xff] %vm638, %v591
      %670 = vst.msk [vmem:[#allocation3 + $0xf8] sm:$0xff] %vm638, %v593
      %671 = vst.msk [vmem:[#allocation3 + $0x100] sm:$0xff] %vm638, %v595
      %672 = vst.msk [vmem:[#allocation3 + $0x108] sm:$0xff] %vm638, %v597
      %673 = vst.msk [vmem:[#allocation3 + $0x110] sm:$0xff] %vm638, %v599
      %674 = vst.msk [vmem:[#allocation3 + $0x118] sm:$0xff] %vm638, %v601
      %v675 = vld [vmem:[#allocation2 + $0x2] sm:$0xff]
      %v676 = vld [vmem:[#allocation2 + $0xa] sm:$0xff]
      %v677 = vld [vmem:[#allocation2 + $0x1a] sm:$0xff]
      %v678 = vld [vmem:[#allocation2 + $0x22] sm:$0xff]
      %v679 = vld [vmem:[#allocation2 + $0x32] sm:$0xff]
      %v680 = vld [vmem:[#allocation2 + $0x3a] sm:$0xff]
      %v681 = vld [vmem:[#allocation2 + $0x4a] sm:$0xff]
      %v682 = vld [vmem:[#allocation2 + $0x52] sm:$0xff]
      %v683 = vld [vmem:[#allocation2 + $0x62] sm:$0xff]
      %v684 = vld [vmem:[#allocation2 + $0x6a] sm:$0xff]
      %v685 = vld [vmem:[#allocation2 + $0x7a] sm:$0xff]
      %v686 = vld [vmem:[#allocation2 + $0x82] sm:$0xff]
      %v687 = vld [vmem:[#allocation2 + $0x92] sm:$0xff]
      %v688 = vld [vmem:[#allocation2 + $0x9a] sm:$0xff]
      %v689 = vld [vmem:[#allocation2 + $0xaa] sm:$0xff]
      %v690 = vld [vmem:[#allocation2 + $0xb2] sm:$0xff]
      %v691 = vld [vmem:[#allocation2 + $0xc2] sm:$0xff]
      %v692 = vld [vmem:[#allocation2 + $0xca] sm:$0xff]
      %v693 = vld [vmem:[#allocation2 + $0xda] sm:$0xff]
      %v694 = vld [vmem:[#allocation2 + $0xe2] sm:$0xff]
      %v695 = vld [vmem:[#allocation2 + $0xf2] sm:$0xff]
      %v696 = vld [vmem:[#allocation2 + $0xfa] sm:$0xff]
      %v697 = vld [vmem:[#allocation2 + $0x10a] sm:$0xff]
      %v698 = vld [vmem:[#allocation2 + $0x112] sm:$0xff]
      %v699 = vld [vmem:[#allocation2 + $0x122] sm:$0xff]
      %v700 = vld [vmem:[#allocation2 + $0x12a] sm:$0xff]
      %v701 = vld [vmem:[#allocation2 + $0x13a] sm:$0xff]
      %v702 = vld [vmem:[#allocation2 + $0x142] sm:$0xff]
      %v703 = vld [vmem:[#allocation2 + $0x152] sm:$0xff]
      %v704 = vld [vmem:[#allocation2 + $0x15a] sm:$0xff]
      %v705 = vld [vmem:[#allocation2 + $0x16a] sm:$0xff]
      %v706 = vld [vmem:[#allocation2 + $0x172] sm:$0xff]
      %v707 = vld [vmem:[#allocation2 + $0x182] sm:$0xff]
      %v708 = vld [vmem:[#allocation2 + $0x18a] sm:$0xff]
      %v709 = vld [vmem:[#allocation2 + $0x19a] sm:$0xff]
      %v710 = vld [vmem:[#allocation2 + $0x1a2] sm:$0xff]
      %747 = vrot.lane.b32.xlu0 %v675, 8
      %v748 = vpop.permute.xlu0 %747
      %749 = vrot.lane.b32.xlu0 %v676, 8
      %v750 = vpop.permute.xlu0 %749
      %751 = vrot.lane.b32.xlu0 %v677, 8
      %v752 = vpop.permute.xlu0 %751
      %753 = vrot.lane.b32.xlu0 %v678, 8
      %v754 = vpop.permute.xlu0 %753
      %755 = vrot.lane.b32.xlu0 %v679, 8
      %v756 = vpop.permute.xlu0 %755
      %757 = vrot.lane.b32.xlu0 %v680, 8
      %v758 = vpop.permute.xlu0 %757
      %759 = vrot.lane.b32.xlu0 %v681, 8
      %v760 = vpop.permute.xlu0 %759
      %761 = vrot.lane.b32.xlu0 %v682, 8
      %v762 = vpop.permute.xlu0 %761
      %763 = vrot.lane.b32.xlu0 %v683, 8
      %v764 = vpop.permute.xlu0 %763
      %765 = vrot.lane.b32.xlu0 %v684, 8
      %v766 = vpop.permute.xlu0 %765
      %767 = vrot.lane.b32.xlu0 %v685, 8
      %v768 = vpop.permute.xlu0 %767
      %769 = vrot.lane.b32.xlu0 %v686, 8
      %v770 = vpop.permute.xlu0 %769
      %771 = vrot.lane.b32.xlu0 %v687, 8
      %v772 = vpop.permute.xlu0 %771
      %773 = vrot.lane.b32.xlu0 %v688, 8
      %v774 = vpop.permute.xlu0 %773
      %775 = vrot.lane.b32.xlu0 %v689, 8
      %v776 = vpop.permute.xlu0 %775
      %777 = vrot.lane.b32.xlu0 %v690, 8
      %v778 = vpop.permute.xlu0 %777
      %779 = vrot.lane.b32.xlu0 %v691, 8
      %v780 = vpop.permute.xlu0 %779
      %781 = vrot.lane.b32.xlu0 %v692, 8
      %v782 = vpop.permute.xlu0 %781
      %783 = vrot.lane.b32.xlu0 %v693, 8
      %v784 = vpop.permute.xlu0 %783
      %785 = vrot.lane.b32.xlu0 %v694, 8
      %v786 = vpop.permute.xlu0 %785
      %787 = vrot.lane.b32.xlu0 %v695, 8
      %v788 = vpop.permute.xlu0 %787
      %789 = vrot.lane.b32.xlu0 %v696, 8
      %v790 = vpop.permute.xlu0 %789
      %791 = vrot.lane.b32.xlu0 %v697, 8
      %v792 = vpop.permute.xlu0 %791
      %793 = vrot.lane.b32.xlu0 %v698, 8
      %v794 = vpop.permute.xlu0 %793
      %795 = vrot.lane.b32.xlu0 %v699, 8
      %v796 = vpop.permute.xlu0 %795
      %797 = vrot.lane.b32.xlu0 %v700, 8
      %v798 = vpop.permute.xlu0 %797
      %799 = vrot.lane.b32.xlu0 %v701, 8
      %v800 = vpop.permute.xlu0 %799
      %801 = vrot.lane.b32.xlu0 %v702, 8
      %v802 = vpop.permute.xlu0 %801
      %803 = vrot.lane.b32.xlu0 %v703, 8
      %v804 = vpop.permute.xlu0 %803
      %805 = vrot.lane.b32.xlu0 %v704, 8
      %v806 = vpop.permute.xlu0 %805
      %807 = vrot.lane.b32.xlu0 %v705, 8
      %v808 = vpop.permute.xlu0 %807
      %809 = vrot.lane.b32.xlu0 %v706, 8
      %v810 = vpop.permute.xlu0 %809
      %811 = vrot.lane.b32.xlu0 %v707, 8
      %v812 = vpop.permute.xlu0 %811
      %813 = vrot.lane.b32.xlu0 %v708, 8
      %v814 = vpop.permute.xlu0 %813
      %815 = vrot.lane.b32.xlu0 %v709, 8
      %v816 = vpop.permute.xlu0 %815
      %817 = vrot.lane.b32.xlu0 %v710, 8
      %v818 = vpop.permute.xlu0 %817
      %vm855 = vcmask 97344
      %856 = vst.msk [vmem:[#allocation3] sm:$0xff] %vm855, %v748
      %857 = vst.msk [vmem:[#allocation3 + $0x8] sm:$0xff] %vm855, %v750
      %858 = vst.msk [vmem:[#allocation3 + $0x10] sm:$0xff] %vm855, %v752
      %859 = vst.msk [vmem:[#allocation3 + $0x18] sm:$0xff] %vm855, %v754
      %860 = vst.msk [vmem:[#allocation3 + $0x20] sm:$0xff] %vm855, %v756
      %861 = vst.msk [vmem:[#allocation3 + $0x28] sm:$0xff] %vm855, %v758
      %862 = vst.msk [vmem:[#allocation3 + $0x30] sm:$0xff] %vm855, %v760
      %863 = vst.msk [vmem:[#allocation3 + $0x38] sm:$0xff] %vm855, %v762
      %864 = vst.msk [vmem:[#allocation3 + $0x40] sm:$0xff] %vm855, %v764
      %865 = vst.msk [vmem:[#allocation3 + $0x48] sm:$0xff] %vm855, %v766
      %866 = vst.msk [vmem:[#allocation3 + $0x50] sm:$0xff] %vm855, %v768
      %867 = vst.msk [vmem:[#allocation3 + $0x58] sm:$0xff] %vm855, %v770
      %868 = vst.msk [vmem:[#allocation3 + $0x60] sm:$0xff] %vm855, %v772
      %869 = vst.msk [vmem:[#allocation3 + $0x68] sm:$0xff] %vm855, %v774
      %870 = vst.msk [vmem:[#allocation3 + $0x70] sm:$0xff] %vm855, %v776
      %871 = vst.msk [vmem:[#allocation3 + $0x78] sm:$0xff] %vm855, %v778
      %872 = vst.msk [vmem:[#allocation3 + $0x80] sm:$0xff] %vm855, %v780
      %873 = vst.msk [vmem:[#allocation3 + $0x88] sm:$0xff] %vm855, %v782
      %874 = vst.msk [vmem:[#allocation3 + $0x90] sm:$0xff] %vm855, %v784
      %875 = vst.msk [vmem:[#allocation3 + $0x98] sm:$0xff] %vm855, %v786
      %876 = vst.msk [vmem:[#allocation3 + $0xa0] sm:$0xff] %vm855, %v788
      %877 = vst.msk [vmem:[#allocation3 + $0xa8] sm:$0xff] %vm855, %v790
      %878 = vst.msk [vmem:[#allocation3 + $0xb0] sm:$0xff] %vm855, %v792
      %879 = vst.msk [vmem:[#allocation3 + $0xb8] sm:$0xff] %vm855, %v794
      %880 = vst.msk [vmem:[#allocation3 + $0xc0] sm:$0xff] %vm855, %v796
      %881 = vst.msk [vmem:[#allocation3 + $0xc8] sm:$0xff] %vm855, %v798
      %882 = vst.msk [vmem:[#allocation3 + $0xd0] sm:$0xff] %vm855, %v800
      %883 = vst.msk [vmem:[#allocation3 + $0xd8] sm:$0xff] %vm855, %v802
      %884 = vst.msk [vmem:[#allocation3 + $0xe0] sm:$0xff] %vm855, %v804
      %885 = vst.msk [vmem:[#allocation3 + $0xe8] sm:$0xff] %vm855, %v806
      %886 = vst.msk [vmem:[#allocation3 + $0xf0] sm:$0xff] %vm855, %v808
      %887 = vst.msk [vmem:[#allocation3 + $0xf8] sm:$0xff] %vm855, %v810
      %888 = vst.msk [vmem:[#allocation3 + $0x100] sm:$0xff] %vm855, %v812
      %889 = vst.msk [vmem:[#allocation3 + $0x108] sm:$0xff] %vm855, %v814
      %890 = vst.msk [vmem:[#allocation3 + $0x110] sm:$0xff] %vm855, %v816
      %891 = vst.msk [vmem:[#allocation3 + $0x118] sm:$0xff] %vm855, %v818
      %v892 = vld [vmem:[#allocation3] sm:$0xff]
      %v893 = vld [vmem:[#allocation3 + $0x8] sm:$0xff]
      %v894 = vld [vmem:[#allocation3 + $0x10] sm:$0xff]
      %v895 = vld [vmem:[#allocation3 + $0x18] sm:$0xff]
      %v896 = vld [vmem:[#allocation3 + $0x20] sm:$0xff]
      %v897 = vld [vmem:[#allocation3 + $0x28] sm:$0xff]
      %v898 = vld [vmem:[#allocation3 + $0x30] sm:$0xff]
      %v899 = vld [vmem:[#allocation3 + $0x38] sm:$0xff]
      %v900 = vld [vmem:[#allocation3 + $0x40] sm:$0xff]
      %v901 = vld [vmem:[#allocation3 + $0x48] sm:$0xff]
      %v902 = vld [vmem:[#allocation3 + $0x50] sm:$0xff]
      %v903 = vld [vmem:[#allocation3 + $0x58] sm:$0xff]
      %v904 = vld [vmem:[#allocation3 + $0x60] sm:$0xff]
      %v905 = vld [vmem:[#allocation3 + $0x68] sm:$0xff]
      %v906 = vld [vmem:[#allocation3 + $0x70] sm:$0xff]
      %v907 = vld [vmem:[#allocation3 + $0x78] sm:$0xff]
      %v908 = vld [vmem:[#allocation3 + $0x80] sm:$0xff]
      %v909 = vld [vmem:[#allocation3 + $0x88] sm:$0xff]
      %v910 = vld [vmem:[#allocation3 + $0x90] sm:$0xff]
      %v911 = vld [vmem:[#allocation3 + $0x98] sm:$0xff]
      %v912 = vld [vmem:[#allocation3 + $0xa0] sm:$0xff]
      %v913 = vld [vmem:[#allocation3 + $0xa8] sm:$0xff]
      %v914 = vld [vmem:[#allocation3 + $0xb0] sm:$0xff]
      %v915 = vld [vmem:[#allocation3 + $0xb8] sm:$0xff]
      %v916 = vld [vmem:[#allocation3 + $0xc0] sm:$0xff]
      %v917 = vld [vmem:[#allocation3 + $0xc8] sm:$0xff]
      %v918 = vld [vmem:[#allocation3 + $0xd0] sm:$0xff]
      %v919 = vld [vmem:[#allocation3 + $0xd8] sm:$0xff]
      %v920 = vld [vmem:[#allocation3 + $0xe0] sm:$0xff]
      %v921 = vld [vmem:[#allocation3 + $0xe8] sm:$0xff]
      %v922 = vld [vmem:[#allocation3 + $0xf0] sm:$0xff]
      %v923 = vld [vmem:[#allocation3 + $0xf8] sm:$0xff]
      %v924 = vld [vmem:[%s1] sm:$0xff]
      %v925 = vld [vmem:[%s1 + $0x8] sm:$0xf]
      %s926 = scalar_lea.vmem [#allocation3], 16
      %v927 = vld [vmem:[%s926] sm:$0xff]
      %v928 = vld [vmem:[%s926 + $0x8] sm:$0xff]
      %v929 = vld [vmem:[%s926 + $0x10] sm:$0xff]
      %v930 = vld [vmem:[%s926 + $0x18] sm:$0xff]
      %v931 = vld [vmem:[%s926 + $0x20] sm:$0xff]
      %v932 = vld [vmem:[%s926 + $0x28] sm:$0xff]
      %v933 = vld [vmem:[%s926 + $0x30] sm:$0xff]
      %v934 = vld [vmem:[%s926 + $0x38] sm:$0xff]
      %v935 = vld [vmem:[%s926 + $0x40] sm:$0xff]
      %v936 = vld [vmem:[%s926 + $0x48] sm:$0xff]
      %v937 = vld [vmem:[%s926 + $0x50] sm:$0xff]
      %v938 = vld [vmem:[%s926 + $0x58] sm:$0xff]
      %v939 = vld [vmem:[%s926 + $0x60] sm:$0xff]
      %v940 = vld [vmem:[%s926 + $0x68] sm:$0xff]
      %v941 = vld [vmem:[%s926 + $0x70] sm:$0xff]
      %v942 = vld [vmem:[%s926 + $0x78] sm:$0xff]
      %v943 = vld [vmem:[%s926 + $0x80] sm:$0xff]
      %v944 = vld [vmem:[%s926 + $0x88] sm:$0xff]
      %v945 = vld [vmem:[%s926 + $0x90] sm:$0xff]
      %v946 = vld [vmem:[%s926 + $0x98] sm:$0xff]
      %v947 = vld [vmem:[%s926 + $0xa0] sm:$0xff]
      %v948 = vld [vmem:[%s926 + $0xa8] sm:$0xff]
      %v949 = vld [vmem:[%s926 + $0xb0] sm:$0xff]
      %v950 = vld [vmem:[%s926 + $0xb8] sm:$0xff]
      %v951 = vld [vmem:[%s926 + $0xc0] sm:$0xff]
      %v952 = vld [vmem:[%s926 + $0xc8] sm:$0xff]
      %v953 = vld [vmem:[%s926 + $0xd0] sm:$0xff]
      %v954 = vld [vmem:[%s926 + $0xd8] sm:$0xff]
      %v955 = vld [vmem:[%s926 + $0xe0] sm:$0xff]
      %v956 = vld [vmem:[%s926 + $0xe8] sm:$0xff]
      %v957 = vld [vmem:[%s926 + $0xf0] sm:$0xff]
      %v958 = vld [vmem:[%s926 + $0xf8] sm:$0xff]
      %v959 = vld [vmem:[%s1 + $0xc] sm:$0xff]
      %v960 = vld [vmem:[%s1 + $0x14] sm:$0xf]
      %vm961 = vcmask 97280
      %v963 = vsel %vm961, %v927, 0
      %v966 = vsel %vm961, %v928, 0
      %v969 = vsel %vm961, %v929, 0
      %v972 = vsel %vm961, %v930, 0
      %v975 = vsel %vm961, %v931, 0
      %v978 = vsel %vm961, %v932, 0
      %v981 = vsel %vm961, %v933, 0
      %v984 = vsel %vm961, %v934, 0
      %v987 = vsel %vm961, %v935, 0
      %v990 = vsel %vm961, %v936, 0
      %v993 = vsel %vm961, %v937, 0
      %v996 = vsel %vm961, %v938, 0
      %v999 = vsel %vm961, %v939, 0
      %v1002 = vsel %vm961, %v940, 0
      %v1005 = vsel %vm961, %v941, 0
      %v1008 = vsel %vm961, %v942, 0
      %v1011 = vsel %vm961, %v943, 0
      %v1014 = vsel %vm961, %v944, 0
      %v1017 = vsel %vm961, %v945, 0
      %v1020 = vsel %vm961, %v946, 0
      %v1023 = vsel %vm961, %v947, 0
      %v1026 = vsel %vm961, %v948, 0
      %v1029 = vsel %vm961, %v949, 0
      %v1032 = vsel %vm961, %v950, 0
      %v1035 = vsel %vm961, %v951, 0
      %v1038 = vsel %vm961, %v952, 0
      %v1041 = vsel %vm961, %v953, 0
      %v1044 = vsel %vm961, %v954, 0
      %v1047 = vsel %vm961, %v955, 0
      %v1050 = vsel %vm961, %v956, 0
      %v1053 = vsel %vm961, %v957, 0
      %v1056 = vsel %vm961, %v958, 0
      %vm1058 = vcmask 1043456
      %v1060 = vsel %vm1058, %v960, 0
      %1062 = vmatprep.subr.mxu0 0.0
      %1063 = vmatpush1.msra.mxu0 %v959
      %1064 = vmatprep.subr.mxu0 0.0
      %1065 = vmatpush1.msra.mxu0 %v1060
      %1066 = vmatprep.subr.mxu0 0.0
      %1067 = vmatpush1.msra.mxu0 0.0
      %1068 = vmatprep.subr.mxu0 0.0
      %1069 = vmatpush1.msra.mxu0 0.0
      %1070 = vmatprep.subr.mxu0 0.0
      %1071 = vmatpush1.msra.mxu0 0.0
      %1072 = vmatprep.subr.mxu0 0.0
      %1073 = vmatpush1.msra.mxu0 0.0
      %1074 = vmatprep.subr.mxu0 0.0
      %1075 = vmatpush1.msra.mxu0 0.0
      %1076 = vmatprep.subr.mxu0 0.0
      %1077 = vmatpush1.msra.mxu0 0.0
      %1078 = vmatprep.subr.mxu0 0.0
      %1079 = vmatpush1.msra.mxu0 0.0
      %1080 = vmatprep.subr.mxu0 0.0
      %1081 = vmatpush1.msra.mxu0 0.0
      %1082 = vmatprep.subr.mxu0 0.0
      %1083 = vmatpush1.msra.mxu0 0.0
      %1084 = vmatprep.subr.mxu0 0.0
      %1085 = vmatpush1.msra.mxu0 0.0
      %1086 = vmatprep.subr.mxu0 0.0
      %1087 = vmatpush1.msra.mxu0 0.0
      %1088 = vmatprep.subr.mxu0 0.0
      %1089 = vmatpush1.msra.mxu0 0.0
      %1090 = vmatprep.subr.mxu0 0.0
      %1091 = vmatpush1.msra.mxu0 0.0
      %1092 = vmatprep.subr.mxu0 0.0
      %1093 = vmatpush1.msra.mxu0 0.0
      %1094 = vmatprep.subr.mxu0 0.0
      %1095 = vmatpush1.msra.mxu0 0.0
      %1096 = vmatprep.subr.mxu0 0.0
      %1097 = vmatpush1.msra.mxu0 0.0
      %1098 = vmatprep.subr.mxu0 0.0
      %1099 = vmatpush1.msra.mxu0 0.0
      %1100 = vmatprep.subr.mxu0 0.0
      %1101 = vmatpush1.msra.mxu0 0.0
      %1102 = vmatprep.subr.mxu0 0.0
      %1103 = vmatpush1.msra.mxu0 0.0
      %1104 = vmatprep.subr.mxu0 0.0
      %1105 = vmatpush1.msra.mxu0 0.0
      %1106 = vmatprep.subr.mxu0 0.0
      %1107 = vmatpush1.msra.mxu0 0.0
      %1108 = vmatprep.subr.mxu0 0.0
      %1109 = vmatpush1.msra.mxu0 0.0
      %1110 = vmatprep.subr.mxu0 0.0
      %1111 = vmatpush1.msra.mxu0 0.0
      %1112 = vmatprep.subr.mxu0 0.0
      %1113 = vmatpush1.msra.mxu0 0.0
      %1114 = vmatprep.subr.mxu0 0.0
      %1115 = vmatpush1.msra.mxu0 0.0
      %1116 = vmatprep.subr.mxu0 0.0
      %1117 = vmatpush1.msra.mxu0 0.0
      %1118 = vmatprep.subr.mxu0 0.0
      %1119 = vmatpush1.msra.mxu0 0.0
      %1120 = vmatprep.subr.mxu0 0.0
      %1121 = vmatpush1.msra.mxu0 0.0
      %1122 = vmatprep.subr.mxu0 0.0
      %1123 = vmatpush1.msra.mxu0 0.0
      %1124 = vmatprep.subr.mxu0 0.0
      %1125 = vmatpush1.msra.mxu0 0.0
      %1126 = vmatprep.mubr.f32.mxu0 0.0
      %1127 = vmatmul.mubr.f32.gmra.mrb[0].mxu0 %v963
      %v1128 = vpop.f32.mrb[0].mxu0
      %v1129 = vadd.f32 0.0, %v1128
      %v1130 = vpop.f32.mrb[0].mxu0
      %1131 = vmatprep.mubr.f32.mxu0 0.0
      %1132 = vmatmul.mubr.f32.gmra.mrb[0].mxu0 %v966
      %v1133 = vpop.f32.mrb[0].mxu0
      %v1134 = vadd.f32 0.0, %v1133
      %v1135 = vpop.f32.mrb[0].mxu0
      %1136 = vmatprep.mubr.f32.mxu0 0.0
      %1137 = vmatmul.mubr.f32.gmra.mrb[0].mxu0 %v969
      %v1138 = vpop.f32.mrb[0].mxu0
      %v1139 = vadd.f32 0.0, %v1138
      %v1140 = vpop.f32.mrb[0].mxu0
      %1141 = vmatprep.mubr.f32.mxu0 0.0
      %1142 = vmatmul.mubr.f32.gmra.mrb[0].mxu0 %v972
      %v1143 = vpop.f32.mrb[0].mxu0
      %v1144 = vadd.f32 0.0, %v1143
      %v1145 = vpop.f32.mrb[0].mxu0
      %1146 = vmatprep.mubr.f32.mxu0 0.0
      %1147 = vmatmul.mubr.f32.gmra.mrb[0].mxu0 %v975
      %v1148 = vpop.f32.mrb[0].mxu0
      %v1149 = vadd.f32 0.0, %v1148
      %v1150 = vpop.f32.mrb[0].mxu0
      %1151 = vmatprep.mubr.f32.mxu0 0.0
      %1152 = vmatmul.mubr.f32.gmra.mrb[0].mxu0 %v978
      %v1153 = vpop.f32.mrb[0].mxu0
      %v1154 = vadd.f32 0.0, %v1153
      %v1155 = vpop.f32.mrb[0].mxu0
      %1156 = vmatprep.mubr.f32.mxu0 0.0
      %1157 = vmatmul.mubr.f32.gmra.mrb[0].mxu0 %v981
      %v1158 = vpop.f32.mrb[0].mxu0
      %v1159 = vadd.f32 0.0, %v1158
      %v1160 = vpop.f32.mrb[0].mxu0
      %1161 = vmatprep.mubr.f32.mxu0 0.0
      %1162 = vmatmul.mubr.f32.gmra.mrb[0].mxu0 %v984
      %v1163 = vpop.f32.mrb[0].mxu0
      %v1164 = vadd.f32 0.0, %v1163
      %v1165 = vpop.f32.mrb[0].mxu0
      %1166 = vmatprep.mubr.f32.mxu0 0.0
      %1167 = vmatmul.mubr.f32.gmra.mrb[0].mxu0 %v987
      %v1168 = vpop.f32.mrb[0].mxu0
      %v1169 = vadd.f32 0.0, %v1168
      %v1170 = vpop.f32.mrb[0].mxu0
      %1171 = vmatprep.mubr.f32.mxu0 0.0
      %1172 = vmatmul.mubr.f32.gmra.mrb[0].mxu0 %v990
      %v1173 = vpop.f32.mrb[0].mxu0
      %v1174 = vadd.f32 0.0, %v1173
      %v1175 = vpop.f32.mrb[0].mxu0
      %1176 = vmatprep.mubr.f32.mxu0 0.0
      %1177 = vmatmul.mubr.f32.gmra.mrb[0].mxu0 %v993
      %v1178 = vpop.f32.mrb[0].mxu0
      %v1179 = vadd.f32 0.0, %v1178
      %v1180 = vpop.f32.mrb[0].mxu0
      %1181 = vmatprep.mubr.f32.mxu0 0.0
      %1182 = vmatmul.mubr.f32.gmra.mrb[0].mxu0 %v996
      %v1183 = vpop.f32.mrb[0].mxu0
      %v1184 = vadd.f32 0.0, %v1183
      %v1185 = vpop.f32.mrb[0].mxu0
      %1186 = vmatprep.mubr.f32.mxu0 0.0
      %1187 = vmatmul.mubr.f32.gmra.mrb[0].mxu0 %v999
      %v1188 = vpop.f32.mrb[0].mxu0
      %v1189 = vadd.f32 0.0, %v1188
      %v1190 = vpop.f32.mrb[0].mxu0
      %1191 = vmatprep.mubr.f32.mxu0 0.0
      %1192 = vmatmul.mubr.f32.gmra.mrb[0].mxu0 %v1002
      %v1193 = vpop.f32.mrb[0].mxu0
      %v1194 = vadd.f32 0.0, %v1193
      %v1195 = vpop.f32.mrb[0].mxu0
      %1196 = vmatprep.mubr.f32.mxu0 0.0
      %1197 = vmatmul.mubr.f32.gmra.mrb[0].mxu0 %v1005
      %v1198 = vpop.f32.mrb[0].mxu0
      %v1199 = vadd.f32 0.0, %v1198
      %v1200 = vpop.f32.mrb[0].mxu0
      %1201 = vmatprep.mubr.f32.mxu0 0.0
      %1202 = vmatmul.mubr.f32.gmra.mrb[0].mxu0 %v1008
      %v1203 = vpop.f32.mrb[0].mxu0
      %v1204 = vadd.f32 0.0, %v1203
      %v1205 = vpop.f32.mrb[0].mxu0
      %1206 = vmatprep.mubr.f32.mxu0 0.0
      %1207 = vmatmul.mubr.f32.gmra.mrb[0].mxu0 %v1011
      %v1208 = vpop.f32.mrb[0].mxu0
      %v1209 = vadd.f32 0.0, %v1208
      %v1210 = vpop.f32.mrb[0].mxu0
      %1211 = vmatprep.mubr.f32.mxu0 0.0
      %1212 = vmatmul.mubr.f32.gmra.mrb[0].mxu0 %v1014
      %v1213 = vpop.f32.mrb[0].mxu0
      %v1214 = vadd.f32 0.0, %v1213
      %v1215 = vpop.f32.mrb[0].mxu0
      %1216 = vmatprep.mubr.f32.mxu0 0.0
      %1217 = vmatmul.mubr.f32.gmra.mrb[0].mxu0 %v1017
      %v1218 = vpop.f32.mrb[0].mxu0
      %v1219 = vadd.f32 0.0, %v1218
      %v1220 = vpop.f32.mrb[0].mxu0
      %1221 = vmatprep.mubr.f32.mxu0 0.0
      %1222 = vmatmul.mubr.f32.gmra.mrb[0].mxu0 %v1020
      %v1223 = vpop.f32.mrb[0].mxu0
      %v1224 = vadd.f32 0.0, %v1223
      %v1225 = vpop.f32.mrb[0].mxu0
      %1226 = vmatprep.mubr.f32.mxu0 0.0
      %1227 = vmatmul.mubr.f32.gmra.mrb[0].mxu0 %v1023
      %v1228 = vpop.f32.mrb[0].mxu0
      %v1229 = vadd.f32 0.0, %v1228
      %v1230 = vpop.f32.mrb[0].mxu0
      %1231 = vmatprep.mubr.f32.mxu0 0.0
      %1232 = vmatmul.mubr.f32.gmra.mrb[0].mxu0 %v1026
      %v1233 = vpop.f32.mrb[0].mxu0
      %v1234 = vadd.f32 0.0, %v1233
      %v1235 = vpop.f32.mrb[0].mxu0
      %1236 = vmatprep.mubr.f32.mxu0 0.0
      %1237 = vmatmul.mubr.f32.gmra.mrb[0].mxu0 %v1029
      %v1238 = vpop.f32.mrb[0].mxu0
      %v1239 = vadd.f32 0.0, %v1238
      %v1240 = vpop.f32.mrb[0].mxu0
      %1241 = vmatprep.mubr.f32.mxu0 0.0
      %1242 = vmatmul.mubr.f32.gmra.mrb[0].mxu0 %v1032
      %v1243 = vpop.f32.mrb[0].mxu0
      %v1244 = vadd.f32 0.0, %v1243
      %v1245 = vpop.f32.mrb[0].mxu0
      %1246 = vmatprep.mubr.f32.mxu0 0.0
      %1247 = vmatmul.mubr.f32.gmra.mrb[0].mxu0 %v1035
      %v1248 = vpop.f32.mrb[0].mxu0
      %v1249 = vadd.f32 0.0, %v1248
      %v1250 = vpop.f32.mrb[0].mxu0
      %1251 = vmatprep.mubr.f32.mxu0 0.0
      %1252 = vmatmul.mubr.f32.gmra.mrb[0].mxu0 %v1038
      %v1253 = vpop.f32.mrb[0].mxu0
      %v1254 = vadd.f32 0.0, %v1253
      %v1255 = vpop.f32.mrb[0].mxu0
      %1256 = vmatprep.mubr.f32.mxu0 0.0
      %1257 = vmatmul.mubr.f32.gmra.mrb[0].mxu0 %v1041
      %v1258 = vpop.f32.mrb[0].mxu0
      %v1259 = vadd.f32 0.0, %v1258
      %v1260 = vpop.f32.mrb[0].mxu0
      %1261 = vmatprep.mubr.f32.mxu0 0.0
      %1262 = vmatmul.mubr.f32.gmra.mrb[0].mxu0 %v1044
      %v1263 = vpop.f32.mrb[0].mxu0
      %v1264 = vadd.f32 0.0, %v1263
      %v1265 = vpop.f32.mrb[0].mxu0
      %1266 = vmatprep.mubr.f32.mxu0 0.0
      %1267 = vmatmul.mubr.f32.gmra.mrb[0].mxu0 %v1047
      %v1268 = vpop.f32.mrb[0].mxu0
      %v1269 = vadd.f32 0.0, %v1268
      %v1270 = vpop.f32.mrb[0].mxu0
      %1271 = vmatprep.mubr.f32.mxu0 0.0
      %1272 = vmatmul.mubr.f32.gmra.mrb[0].mxu0 %v1050
      %v1273 = vpop.f32.mrb[0].mxu0
      %v1274 = vadd.f32 0.0, %v1273
      %v1275 = vpop.f32.mrb[0].mxu0
      %1276 = vmatprep.mubr.f32.mxu0 0.0
      %1277 = vmatmul.mubr.f32.gmra.mrb[0].mxu0 %v1053
      %v1278 = vpop.f32.mrb[0].mxu0
      %v1279 = vadd.f32 0.0, %v1278
      %v1280 = vpop.f32.mrb[0].mxu0
      %1281 = vmatprep.mubr.f32.mxu0 0.0
      %1282 = vmatmul.mubr.f32.gmra.mrb[0].mxu0 %v1056
      %v1283 = vpop.f32.mrb[0].mxu0
      %v1284 = vadd.f32 0.0, %v1283
      %v1285 = vpop.f32.mrb[0].mxu0
      %1286 = vdwg.mxu0
      %v1288 = vsel %vm961, %v892, 0
      %v1291 = vsel %vm961, %v893, 0
      %v1294 = vsel %vm961, %v894, 0
      %v1297 = vsel %vm961, %v895, 0
      %v1300 = vsel %vm961, %v896, 0
      %v1303 = vsel %vm961, %v897, 0
      %v1306 = vsel %vm961, %v898, 0
      %v1309 = vsel %vm961, %v899, 0
      %v1312 = vsel %vm961, %v900, 0
      %v1315 = vsel %vm961, %v901, 0
      %v1318 = vsel %vm961, %v902, 0
      %v1321 = vsel %vm961, %v903, 0
      %v1324 = vsel %vm961, %v904, 0
      %v1327 = vsel %vm961, %v905, 0
      %v1330 = vsel %vm961, %v906, 0
      %v1333 = vsel %vm961, %v907, 0
      %v1336 = vsel %vm961, %v908, 0
      %v1339 = vsel %vm961, %v909, 0
      %v1342 = vsel %vm961, %v910, 0
      %v1345 = vsel %vm961, %v911, 0
      %v1348 = vsel %vm961, %v912, 0
      %v1351 = vsel %vm961, %v913, 0
      %v1354 = vsel %vm961, %v914, 0
      %v1357 = vsel %vm961, %v915, 0
      %v1360 = vsel %vm961, %v916, 0
      %v1363 = vsel %vm961, %v917, 0
      %v1366 = vsel %vm961, %v918, 0
      %v1369 = vsel %vm961, %v919, 0
      %v1372 = vsel %vm961, %v920, 0
      %v1375 = vsel %vm961, %v921, 0
      %v1378 = vsel %vm961, %v922, 0
      %v1381 = vsel %vm961, %v923, 0
      %v1384 = vsel %vm1058, %v925, 0
      %1386 = vmatprep.subr.mxu0 0.0
      %1387 = vmatpush1.msra.mxu0 %v924
      %1388 = vmatprep.subr.mxu0 0.0
      %1389 = vmatpush1.msra.mxu0 %v1384
      %1390 = vmatprep.subr.mxu0 0.0
      %1391 = vmatpush1.msra.mxu0 0.0
      %1392 = vmatprep.subr.mxu0 0.0
      %1393 = vmatpush1.msra.mxu0 0.0
      %1394 = vmatprep.subr.mxu0 0.0
      %1395 = vmatpush1.msra.mxu0 0.0
      %1396 = vmatprep.subr.mxu0 0.0
      %1397 = vmatpush1.msra.mxu0 0.0
      %1398 = vmatprep.subr.mxu0 0.0
      %1399 = vmatpush1.msra.mxu0 0.0
      %1400 = vmatprep.subr.mxu0 0.0
      %1401 = vmatpush1.msra.mxu0 0.0
      %1402 = vmatprep.subr.mxu0 0.0
      %1403 = vmatpush1.msra.mxu0 0.0
      %1404 = vmatprep.subr.mxu0 0.0
      %1405 = vmatpush1.msra.mxu0 0.0
      %1406 = vmatprep.subr.mxu0 0.0
      %1407 = vmatpush1.msra.mxu0 0.0
      %1408 = vmatprep.subr.mxu0 0.0
      %1409 = vmatpush1.msra.mxu0 0.0
      %1410 = vmatprep.subr.mxu0 0.0
      %1411 = vmatpush1.msra.mxu0 0.0
      %1412 = vmatprep.subr.mxu0 0.0
      %1413 = vmatpush1.msra.mxu0 0.0
      %1414 = vmatprep.subr.mxu0 0.0
      %1415 = vmatpush1.msra.mxu0 0.0
      %1416 = vmatprep.subr.mxu0 0.0
      %1417 = vmatpush1.msra.mxu0 0.0
      %1418 = vmatprep.subr.mxu0 0.0
      %1419 = vmatpush1.msra.mxu0 0.0
      %1420 = vmatprep.subr.mxu0 0.0
      %1421 = vmatpush1.msra.mxu0 0.0
      %1422 = vmatprep.subr.mxu0 0.0
      %1423 = vmatpush1.msra.mxu0 0.0
      %1424 = vmatprep.subr.mxu0 0.0
      %1425 = vmatpush1.msra.mxu0 0.0
      %1426 = vmatprep.subr.mxu0 0.0
      %1427 = vmatpush1.msra.mxu0 0.0
      %1428 = vmatprep.subr.mxu0 0.0
      %1429 = vmatpush1.msra.mxu0 0.0
      %1430 = vmatprep.subr.mxu0 0.0
      %1431 = vmatpush1.msra.mxu0 0.0
      %1432 = vmatprep.subr.mxu0 0.0
      %1433 = vmatpush1.msra.mxu0 0.0
      %1434 = vmatprep.subr.mxu0 0.0
      %1435 = vmatpush1.msra.mxu0 0.0
      %1436 = vmatprep.subr.mxu0 0.0
      %1437 = vmatpush1.msra.mxu0 0.0
      %1438 = vmatprep.subr.mxu0 0.0
      %1439 = vmatpush1.msra.mxu0 0.0
      %1440 = vmatprep.subr.mxu0 0.0
      %1441 = vmatpush1.msra.mxu0 0.0
      %1442 = vmatprep.subr.mxu0 0.0
      %1443 = vmatpush1.msra.mxu0 0.0
      %1444 = vmatprep.subr.mxu0 0.0
      %1445 = vmatpush1.msra.mxu0 0.0
      %1446 = vmatprep.subr.mxu0 0.0
      %1447 = vmatpush1.msra.mxu0 0.0
      %1448 = vmatprep.subr.mxu0 0.0
      %1449 = vmatpush1.msra.mxu0 0.0
      %1450 = vmatprep.mubr.f32.mxu0 0.0
      %1451 = vmatmul.mubr.f32.gmra.mrb[0].mxu0 %v1288
      %v1452 = vpop.f32.mrb[0].mxu0
      %v1453 = vadd.f32 %v1129, %v1452
      %v1454 = vpop.f32.mrb[0].mxu0
      %1455 = vmatprep.mubr.f32.mxu0 0.0
      %1456 = vmatmul.mubr.f32.gmra.mrb[0].mxu0 %v1291
      %v1457 = vpop.f32.mrb[0].mxu0
      %v1458 = vadd.f32 %v1134, %v1457
      %v1459 = vpop.f32.mrb[0].mxu0
      %1460 = vmatprep.mubr.f32.mxu0 0.0
      %1461 = vmatmul.mubr.f32.gmra.mrb[0].mxu0 %v1294
      %v1462 = vpop.f32.mrb[0].mxu0
      %v1463 = vadd.f32 %v1139, %v1462
      %v1464 = vpop.f32.mrb[0].mxu0
      %1465 = vmatprep.mubr.f32.mxu0 0.0
      %1466 = vmatmul.mubr.f32.gmra.mrb[0].mxu0 %v1297
      %v1467 = vpop.f32.mrb[0].mxu0
      %v1468 = vadd.f32 %v1144, %v1467
      %v1469 = vpop.f32.mrb[0].mxu0
      %1470 = vmatprep.mubr.f32.mxu0 0.0
      %1471 = vmatmul.mubr.f32.gmra.mrb[0].mxu0 %v1300
      %v1472 = vpop.f32.mrb[0].mxu0
      %v1473 = vadd.f32 %v1149, %v1472
      %v1474 = vpop.f32.mrb[0].mxu0
      %1475 = vmatprep.mubr.f32.mxu0 0.0
      %1476 = vmatmul.mubr.f32.gmra.mrb[0].mxu0 %v1303
      %v1477 = vpop.f32.mrb[0].mxu0
      %v1478 = vadd.f32 %v1154, %v1477
      %v1479 = vpop.f32.mrb[0].mxu0
      %1480 = vmatprep.mubr.f32.mxu0 0.0
      %1481 = vmatmul.mubr.f32.gmra.mrb[0].mxu0 %v1306
      %v1482 = vpop.f32.mrb[0].mxu0
      %v1483 = vadd.f32 %v1159, %v1482
      %v1484 = vpop.f32.mrb[0].mxu0
      %1485 = vmatprep.mubr.f32.mxu0 0.0
      %1486 = vmatmul.mubr.f32.gmra.mrb[0].mxu0 %v1309
      %v1487 = vpop.f32.mrb[0].mxu0
      %v1488 = vadd.f32 %v1164, %v1487
      %v1489 = vpop.f32.mrb[0].mxu0
      %1490 = vmatprep.mubr.f32.mxu0 0.0
      %1491 = vmatmul.mubr.f32.gmra.mrb[0].mxu0 %v1312
      %v1492 = vpop.f32.mrb[0].mxu0
      %v1493 = vadd.f32 %v1169, %v1492
      %v1494 = vpop.f32.mrb[0].mxu0
      %1495 = vmatprep.mubr.f32.mxu0 0.0
      %1496 = vmatmul.mubr.f32.gmra.mrb[0].mxu0 %v1315
      %v1497 = vpop.f32.mrb[0].mxu0
      %v1498 = vadd.f32 %v1174, %v1497
      %v1499 = vpop.f32.mrb[0].mxu0
      %1500 = vmatprep.mubr.f32.mxu0 0.0
      %1501 = vmatmul.mubr.f32.gmra.mrb[0].mxu0 %v1318
      %v1502 = vpop.f32.mrb[0].mxu0
      %v1503 = vadd.f32 %v1179, %v1502
      %v1504 = vpop.f32.mrb[0].mxu0
      %1505 = vmatprep.mubr.f32.mxu0 0.0
      %1506 = vmatmul.mubr.f32.gmra.mrb[0].mxu0 %v1321
      %v1507 = vpop.f32.mrb[0].mxu0
      %v1508 = vadd.f32 %v1184, %v1507
      %v1509 = vpop.f32.mrb[0].mxu0
      %1510 = vmatprep.mubr.f32.mxu0 0.0
      %1511 = vmatmul.mubr.f32.gmra.mrb[0].mxu0 %v1324
      %v1512 = vpop.f32.mrb[0].mxu0
      %v1513 = vadd.f32 %v1189, %v1512
      %v1514 = vpop.f32.mrb[0].mxu0
      %1515 = vmatprep.mubr.f32.mxu0 0.0
      %1516 = vmatmul.mubr.f32.gmra.mrb[0].mxu0 %v1327
      %v1517 = vpop.f32.mrb[0].mxu0
      %v1518 = vadd.f32 %v1194, %v1517
      %v1519 = vpop.f32.mrb[0].mxu0
      %1520 = vmatprep.mubr.f32.mxu0 0.0
      %1521 = vmatmul.mubr.f32.gmra.mrb[0].mxu0 %v1330
      %v1522 = vpop.f32.mrb[0].mxu0
      %v1523 = vadd.f32 %v1199, %v1522
      %v1524 = vpop.f32.mrb[0].mxu0
      %1525 = vmatprep.mubr.f32.mxu0 0.0
      %1526 = vmatmul.mubr.f32.gmra.mrb[0].mxu0 %v1333
      %v1527 = vpop.f32.mrb[0].mxu0
      %v1528 = vadd.f32 %v1204, %v1527
      %v1529 = vpop.f32.mrb[0].mxu0
      %1530 = vmatprep.mubr.f32.mxu0 0.0
      %1531 = vmatmul.mubr.f32.gmra.mrb[0].mxu0 %v1336
      %v1532 = vpop.f32.mrb[0].mxu0
      %v1533 = vadd.f32 %v1209, %v1532
      %v1534 = vpop.f32.mrb[0].mxu0
      %1535 = vmatprep.mubr.f32.mxu0 0.0
      %1536 = vmatmul.mubr.f32.gmra.mrb[0].mxu0 %v1339
      %v1537 = vpop.f32.mrb[0].mxu0
      %v1538 = vadd.f32 %v1214, %v1537
      %v1539 = vpop.f32.mrb[0].mxu0
      %1540 = vmatprep.mubr.f32.mxu0 0.0
      %1541 = vmatmul.mubr.f32.gmra.mrb[0].mxu0 %v1342
      %v1542 = vpop.f32.mrb[0].mxu0
      %v1543 = vadd.f32 %v1219, %v1542
      %v1544 = vpop.f32.mrb[0].mxu0
      %1545 = vmatprep.mubr.f32.mxu0 0.0
      %1546 = vmatmul.mubr.f32.gmra.mrb[0].mxu0 %v1345
      %v1547 = vpop.f32.mrb[0].mxu0
      %v1548 = vadd.f32 %v1224, %v1547
      %v1549 = vpop.f32.mrb[0].mxu0
      %1550 = vmatprep.mubr.f32.mxu0 0.0
      %1551 = vmatmul.mubr.f32.gmra.mrb[0].mxu0 %v1348
      %v1552 = vpop.f32.mrb[0].mxu0
      %v1553 = vadd.f32 %v1229, %v1552
      %v1554 = vpop.f32.mrb[0].mxu0
      %1555 = vmatprep.mubr.f32.mxu0 0.0
      %1556 = vmatmul.mubr.f32.gmra.mrb[0].mxu0 %v1351
      %v1557 = vpop.f32.mrb[0].mxu0
      %v1558 = vadd.f32 %v1234, %v1557
      %v1559 = vpop.f32.mrb[0].mxu0
      %1560 = vmatprep.mubr.f32.mxu0 0.0
      %1561 = vmatmul.mubr.f32.gmra.mrb[0].mxu0 %v1354
      %v1562 = vpop.f32.mrb[0].mxu0
      %v1563 = vadd.f32 %v1239, %v1562
      %v1564 = vpop.f32.mrb[0].mxu0
      %1565 = vmatprep.mubr.f32.mxu0 0.0
      %1566 = vmatmul.mubr.f32.gmra.mrb[0].mxu0 %v1357
      %v1567 = vpop.f32.mrb[0].mxu0
      %v1568 = vadd.f32 %v1244, %v1567
      %v1569 = vpop.f32.mrb[0].mxu0
      %1570 = vmatprep.mubr.f32.mxu0 0.0
      %1571 = vmatmul.mubr.f32.gmra.mrb[0].mxu0 %v1360
      %v1572 = vpop.f32.mrb[0].mxu0
      %v1573 = vadd.f32 %v1249, %v1572
      %v1574 = vpop.f32.mrb[0].mxu0
      %1575 = vmatprep.mubr.f32.mxu0 0.0
      %1576 = vmatmul.mubr.f32.gmra.mrb[0].mxu0 %v1363
      %v1577 = vpop.f32.mrb[0].mxu0
      %v1578 = vadd.f32 %v1254, %v1577
      %v1579 = vpop.f32.mrb[0].mxu0
      %1580 = vmatprep.mubr.f32.mxu0 0.0
      %1581 = vmatmul.mubr.f32.gmra.mrb[0].mxu0 %v1366
      %v1582 = vpop.f32.mrb[0].mxu0
      %v1583 = vadd.f32 %v1259, %v1582
      %v1584 = vpop.f32.mrb[0].mxu0
      %1585 = vmatprep.mubr.f32.mxu0 0.0
      %1586 = vmatmul.mubr.f32.gmra.mrb[0].mxu0 %v1369
      %v1587 = vpop.f32.mrb[0].mxu0
      %v1588 = vadd.f32 %v1264, %v1587
      %v1589 = vpop.f32.mrb[0].mxu0
      %1590 = vmatprep.mubr.f32.mxu0 0.0
      %1591 = vmatmul.mubr.f32.gmra.mrb[0].mxu0 %v1372
      %v1592 = vpop.f32.mrb[0].mxu0
      %v1593 = vadd.f32 %v1269, %v1592
      %v1594 = vpop.f32.mrb[0].mxu0
      %1595 = vmatprep.mubr.f32.mxu0 0.0
      %1596 = vmatmul.mubr.f32.gmra.mrb[0].mxu0 %v1375
      %v1597 = vpop.f32.mrb[0].mxu0
      %v1598 = vadd.f32 %v1274, %v1597
      %v1599 = vpop.f32.mrb[0].mxu0
      %1600 = vmatprep.mubr.f32.mxu0 0.0
      %1601 = vmatmul.mubr.f32.gmra.mrb[0].mxu0 %v1378
      %v1602 = vpop.f32.mrb[0].mxu0
      %v1603 = vadd.f32 %v1279, %v1602
      %v1604 = vpop.f32.mrb[0].mxu0
      %1605 = vmatprep.mubr.f32.mxu0 0.0
      %1606 = vmatmul.mubr.f32.gmra.mrb[0].mxu0 %v1381
      %v1607 = vpop.f32.mrb[0].mxu0
      %v1608 = vadd.f32 %v1284, %v1607
      %v1609 = vpop.f32.mrb[0].mxu0
      %1610 = vdwg.mxu0
      %s1611 = scalar_lea.vmem [#allocation3], 32
      %v1612 = vld [vmem:[%s1611] sm:$0xff]
      %v1613 = vld [vmem:[%s1611 + $0x8] sm:$0xff]
      %v1614 = vld [vmem:[%s1611 + $0x10] sm:$0xff]
      %v1615 = vld [vmem:[%s1611 + $0x18] sm:$0xff]
      %v1616 = vld [vmem:[%s1611 + $0x20] sm:$0xff]
      %v1617 = vld [vmem:[%s1611 + $0x28] sm:$0xff]
      %v1618 = vld [vmem:[%s1611 + $0x30] sm:$0xff]
      %v1619 = vld [vmem:[%s1611 + $0x38] sm:$0xff]
      %v1620 = vld [vmem:[%s1611 + $0x40] sm:$0xff]
      %v1621 = vld [vmem:[%s1611 + $0x48] sm:$0xff]
      %v1622 = vld [vmem:[%s1611 + $0x50] sm:$0xff]
      %v1623 = vld [vmem:[%s1611 + $0x58] sm:$0xff]
      %v1624 = vld [vmem:[%s1611 + $0x60] sm:$0xff]
      %v1625 = vld [vmem:[%s1611 + $0x68] sm:$0xff]
      %v1626 = vld [vmem:[%s1611 + $0x70] sm:$0xff]
      %v1627 = vld [vmem:[%s1611 + $0x78] sm:$0xff]
      %v1628 = vld [vmem:[%s1611 + $0x80] sm:$0xff]
      %v1629 = vld [vmem:[%s1611 + $0x88] sm:$0xff]
      %v1630 = vld [vmem:[%s1611 + $0x90] sm:$0xff]
      %v1631 = vld [vmem:[%s1611 + $0x98] sm:$0xff]
      %v1632 = vld [vmem:[%s1611 + $0xa0] sm:$0xff]
      %v1633 = vld [vmem:[%s1611 + $0xa8] sm:$0xff]
      %v1634 = vld [vmem:[%s1611 + $0xb0] sm:$0xff]
      %v1635 = vld [vmem:[%s1611 + $0xb8] sm:$0xff]
      %v1636 = vld [vmem:[%s1611 + $0xc0] sm:$0xff]
      %v1637 = vld [vmem:[%s1611 + $0xc8] sm:$0xff]
      %v1638 = vld [vmem:[%s1611 + $0xd0] sm:$0xff]
      %v1639 = vld [vmem:[%s1611 + $0xd8] sm:$0xff]
      %v1640 = vld [vmem:[%s1611 + $0xe0] sm:$0xff]
      %v1641 = vld [vmem:[%s1611 + $0xe8] sm:$0xff]
      %v1642 = vld [vmem:[%s1611 + $0xf0] sm:$0xff]
      %v1643 = vld [vmem:[%s1611 + $0xf8] sm:$0xff]
      %v1644 = vld [vmem:[%s1 + $0x18] sm:$0xff]
      %v1645 = vld [vmem:[%s1 + $0x20] sm:$0xf]
      %v1647 = vsel %vm961, %v1612, 0
      %v1650 = vsel %vm961, %v1613, 0
      %v1653 = vsel %vm961, %v1614, 0
      %v1656 = vsel %vm961, %v1615, 0
      %v1659 = vsel %vm961, %v1616, 0
      %v1662 = vsel %vm961, %v1617, 0
      %v1665 = vsel %vm961, %v1618, 0
      %v1668 = vsel %vm961, %v1619, 0
      %v1671 = vsel %vm961, %v1620, 0
      %v1674 = vsel %vm961, %v1621, 0
      %v1677 = vsel %vm961, %v1622, 0
      %v1680 = vsel %vm961, %v1623, 0
      %v1683 = vsel %vm961, %v1624, 0
      %v1686 = vsel %vm961, %v1625, 0
      %v1689 = vsel %vm961, %v1626, 0
      %v1692 = vsel %vm961, %v1627, 0
      %v1695 = vsel %vm961, %v1628, 0
      %v1698 = vsel %vm961, %v1629, 0
      %v1701 = vsel %vm961, %v1630, 0
      %v1704 = vsel %vm961, %v1631, 0
      %v1707 = vsel %vm961, %v1632, 0
      %v1710 = vsel %vm961, %v1633, 0
      %v1713 = vsel %vm961, %v1634, 0
      %v1716 = vsel %vm961, %v1635, 0
      %v1719 = vsel %vm961, %v1636, 0
      %v1722 = vsel %vm961, %v1637, 0
      %v1725 = vsel %vm961, %v1638, 0
      %v1728 = vsel %vm961, %v1639, 0
      %v1731 = vsel %vm961, %v1640, 0
      %v1734 = vsel %vm961, %v1641, 0
      %v1737 = vsel %vm961, %v1642, 0
      %v1740 = vsel %vm961, %v1643, 0
      %v1743 = vsel %vm1058, %v1645, 0
      %1745 = vmatprep.subr.mxu0 0.0
      %1746 = vmatpush1.msra.mxu0 %v1644
      %1747 = vmatprep.subr.mxu0 0.0
      %1748 = vmatpush1.msra.mxu0 %v1743
      %1749 = vmatprep.subr.mxu0 0.0
      %1750 = vmatpush1.msra.mxu0 0.0
      %1751 = vmatprep.subr.mxu0 0.0
      %1752 = vmatpush1.msra.mxu0 0.0
      %1753 = vmatprep.subr.mxu0 0.0
      %1754 = vmatpush1.msra.mxu0 0.0
      %1755 = vmatprep.subr.mxu0 0.0
      %1756 = vmatpush1.msra.mxu0 0.0
      %1757 = vmatprep.subr.mxu0 0.0
      %1758 = vmatpush1.msra.mxu0 0.0
      %1759 = vmatprep.subr.mxu0 0.0
      %1760 = vmatpush1.msra.mxu0 0.0
      %1761 = vmatprep.subr.mxu0 0.0
      %1762 = vmatpush1.msra.mxu0 0.0
      %1763 = vmatprep.subr.mxu0 0.0
      %1764 = vmatpush1.msra.mxu0 0.0
      %1765 = vmatprep.subr.mxu0 0.0
      %1766 = vmatpush1.msra.mxu0 0.0
      %1767 = vmatprep.subr.mxu0 0.0
      %1768 = vmatpush1.msra.mxu0 0.0
      %1769 = vmatprep.subr.mxu0 0.0
      %1770 = vmatpush1.msra.mxu0 0.0
      %1771 = vmatprep.subr.mxu0 0.0
      %1772 = vmatpush1.msra.mxu0 0.0
      %1773 = vmatprep.subr.mxu0 0.0
      %1774 = vmatpush1.msra.mxu0 0.0
      %1775 = vmatprep.subr.mxu0 0.0
      %1776 = vmatpush1.msra.mxu0 0.0
      %1777 = vmatprep.subr.mxu0 0.0
      %1778 = vmatpush1.msra.mxu0 0.0
      %1779 = vmatprep.subr.mxu0 0.0
      %1780 = vmatpush1.msra.mxu0 0.0
      %1781 = vmatprep.subr.mxu0 0.0
      %1782 = vmatpush1.msra.mxu0 0.0
      %1783 = vmatprep.subr.mxu0 0.0
      %1784 = vmatpush1.msra.mxu0 0.0
      %1785 = vmatprep.subr.mxu0 0.0
      %1786 = vmatpush1.msra.mxu0 0.0
      %1787 = vmatprep.subr.mxu0 0.0
      %1788 = vmatpush1.msra.mxu0 0.0
      %1789 = vmatprep.subr.mxu0 0.0
      %1790 = vmatpush1.msra.mxu0 0.0
      %1791 = vmatprep.subr.mxu0 0.0
      %1792 = vmatpush1.msra.mxu0 0.0
      %1793 = vmatprep.subr.mxu0 0.0
      %1794 = vmatpush1.msra.mxu0 0.0
      %1795 = vmatprep.subr.mxu0 0.0
      %1796 = vmatpush1.msra.mxu0 0.0
      %1797 = vmatprep.subr.mxu0 0.0
      %1798 = vmatpush1.msra.mxu0 0.0
      %1799 = vmatprep.subr.mxu0 0.0
      %1800 = vmatpush1.msra.mxu0 0.0
      %1801 = vmatprep.subr.mxu0 0.0
      %1802 = vmatpush1.msra.mxu0 0.0
      %1803 = vmatprep.subr.mxu0 0.0
      %1804 = vmatpush1.msra.mxu0 0.0
      %1805 = vmatprep.subr.mxu0 0.0
      %1806 = vmatpush1.msra.mxu0 0.0
      %1807 = vmatprep.subr.mxu0 0.0
      %1808 = vmatpush1.msra.mxu0 0.0
      %1809 = vmatprep.mubr.f32.mxu0 0.0
      %1810 = vmatmul.mubr.f32.gmra.mrb[0].mxu0 %v1647
      %v1811 = vpop.f32.mrb[0].mxu0
      %v1812 = vadd.f32 0.0, %v1811
      %v1813 = vpop.f32.mrb[0].mxu0
      %1814 = vmatprep.mubr.f32.mxu0 0.0
      %1815 = vmatmul.mubr.f32.gmra.mrb[0].mxu0 %v1650
      %v1816 = vpop.f32.mrb[0].mxu0
      %v1817 = vadd.f32 0.0, %v1816
      %v1818 = vpop.f32.mrb[0].mxu0
      %1819 = vmatprep.mubr.f32.mxu0 0.0
      %1820 = vmatmul.mubr.f32.gmra.mrb[0].mxu0 %v1653
      %v1821 = vpop.f32.mrb[0].mxu0
      %v1822 = vadd.f32 0.0, %v1821
      %v1823 = vpop.f32.mrb[0].mxu0
      %1824 = vmatprep.mubr.f32.mxu0 0.0
      %1825 = vmatmul.mubr.f32.gmra.mrb[0].mxu0 %v1656
      %v1826 = vpop.f32.mrb[0].mxu0
      %v1827 = vadd.f32 0.0, %v1826
      %v1828 = vpop.f32.mrb[0].mxu0
      %1829 = vmatprep.mubr.f32.mxu0 0.0
      %1830 = vmatmul.mubr.f32.gmra.mrb[0].mxu0 %v1659
      %v1831 = vpop.f32.mrb[0].mxu0
      %v1832 = vadd.f32 0.0, %v1831
      %v1833 = vpop.f32.mrb[0].mxu0
      %1834 = vmatprep.mubr.f32.mxu0 0.0
      %1835 = vmatmul.mubr.f32.gmra.mrb[0].mxu0 %v1662
      %v1836 = vpop.f32.mrb[0].mxu0
      %v1837 = vadd.f32 0.0, %v1836
      %v1838 = vpop.f32.mrb[0].mxu0
      %1839 = vmatprep.mubr.f32.mxu0 0.0
      %1840 = vmatmul.mubr.f32.gmra.mrb[0].mxu0 %v1665
      %v1841 = vpop.f32.mrb[0].mxu0
      %v1842 = vadd.f32 0.0, %v1841
      %v1843 = vpop.f32.mrb[0].mxu0
      %1844 = vmatprep.mubr.f32.mxu0 0.0
      %1845 = vmatmul.mubr.f32.gmra.mrb[0].mxu0 %v1668
      %v1846 = vpop.f32.mrb[0].mxu0
      %v1847 = vadd.f32 0.0, %v1846
      %v1848 = vpop.f32.mrb[0].mxu0
      %1849 = vmatprep.mubr.f32.mxu0 0.0
      %1850 = vmatmul.mubr.f32.gmra.mrb[0].mxu0 %v1671
      %v1851 = vpop.f32.mrb[0].mxu0
      %v1852 = vadd.f32 0.0, %v1851
      %v1853 = vpop.f32.mrb[0].mxu0
      %1854 = vmatprep.mubr.f32.mxu0 0.0
      %1855 = vmatmul.mubr.f32.gmra.mrb[0].mxu0 %v1674
      %v1856 = vpop.f32.mrb[0].mxu0
      %v1857 = vadd.f32 0.0, %v1856
      %v1858 = vpop.f32.mrb[0].mxu0
      %1859 = vmatprep.mubr.f32.mxu0 0.0
      %1860 = vmatmul.mubr.f32.gmra.mrb[0].mxu0 %v1677
      %v1861 = vpop.f32.mrb[0].mxu0
      %v1862 = vadd.f32 0.0, %v1861
      %v1863 = vpop.f32.mrb[0].mxu0
      %1864 = vmatprep.mubr.f32.mxu0 0.0
      %1865 = vmatmul.mubr.f32.gmra.mrb[0].mxu0 %v1680
      %v1866 = vpop.f32.mrb[0].mxu0
      %v1867 = vadd.f32 0.0, %v1866
      %v1868 = vpop.f32.mrb[0].mxu0
      %1869 = vmatprep.mubr.f32.mxu0 0.0
      %1870 = vmatmul.mubr.f32.gmra.mrb[0].mxu0 %v1683
      %v1871 = vpop.f32.mrb[0].mxu0
      %v1872 = vadd.f32 0.0, %v1871
      %v1873 = vpop.f32.mrb[0].mxu0
      %1874 = vmatprep.mubr.f32.mxu0 0.0
      %1875 = vmatmul.mubr.f32.gmra.mrb[0].mxu0 %v1686
      %v1876 = vpop.f32.mrb[0].mxu0
      %v1877 = vadd.f32 0.0, %v1876
      %v1878 = vpop.f32.mrb[0].mxu0
      %1879 = vmatprep.mubr.f32.mxu0 0.0
      %1880 = vmatmul.mubr.f32.gmra.mrb[0].mxu0 %v1689
      %v1881 = vpop.f32.mrb[0].mxu0
      %v1882 = vadd.f32 0.0, %v1881
      %v1883 = vpop.f32.mrb[0].mxu0
      %1884 = vmatprep.mubr.f32.mxu0 0.0
      %1885 = vmatmul.mubr.f32.gmra.mrb[0].mxu0 %v1692
      %v1886 = vpop.f32.mrb[0].mxu0
      %v1887 = vadd.f32 0.0, %v1886
      %v1888 = vpop.f32.mrb[0].mxu0
      %1889 = vmatprep.mubr.f32.mxu0 0.0
      %1890 = vmatmul.mubr.f32.gmra.mrb[0].mxu0 %v1695
      %v1891 = vpop.f32.mrb[0].mxu0
      %v1892 = vadd.f32 0.0, %v1891
      %v1893 = vpop.f32.mrb[0].mxu0
      %1894 = vmatprep.mubr.f32.mxu0 0.0
      %1895 = vmatmul.mubr.f32.gmra.mrb[0].mxu0 %v1698
      %v1896 = vpop.f32.mrb[0].mxu0
      %v1897 = vadd.f32 0.0, %v1896
      %v1898 = vpop.f32.mrb[0].mxu0
      %1899 = vmatprep.mubr.f32.mxu0 0.0
      %1900 = vmatmul.mubr.f32.gmra.mrb[0].mxu0 %v1701
      %v1901 = vpop.f32.mrb[0].mxu0
      %v1902 = vadd.f32 0.0, %v1901
      %v1903 = vpop.f32.mrb[0].mxu0
      %1904 = vmatprep.mubr.f32.mxu0 0.0
      %1905 = vmatmul.mubr.f32.gmra.mrb[0].mxu0 %v1704
      %v1906 = vpop.f32.mrb[0].mxu0
      %v1907 = vadd.f32 0.0, %v1906
      %v1908 = vpop.f32.mrb[0].mxu0
      %1909 = vmatprep.mubr.f32.mxu0 0.0
      %1910 = vmatmul.mubr.f32.gmra.mrb[0].mxu0 %v1707
      %v1911 = vpop.f32.mrb[0].mxu0
      %v1912 = vadd.f32 0.0, %v1911
      %v1913 = vpop.f32.mrb[0].mxu0
      %1914 = vmatprep.mubr.f32.mxu0 0.0
      %1915 = vmatmul.mubr.f32.gmra.mrb[0].mxu0 %v1710
      %v1916 = vpop.f32.mrb[0].mxu0
      %v1917 = vadd.f32 0.0, %v1916
      %v1918 = vpop.f32.mrb[0].mxu0
      %1919 = vmatprep.mubr.f32.mxu0 0.0
      %1920 = vmatmul.mubr.f32.gmra.mrb[0].mxu0 %v1713
      %v1921 = vpop.f32.mrb[0].mxu0
      %v1922 = vadd.f32 0.0, %v1921
      %v1923 = vpop.f32.mrb[0].mxu0
      %1924 = vmatprep.mubr.f32.mxu0 0.0
      %1925 = vmatmul.mubr.f32.gmra.mrb[0].mxu0 %v1716
      %v1926 = vpop.f32.mrb[0].mxu0
      %v1927 = vadd.f32 0.0, %v1926
      %v1928 = vpop.f32.mrb[0].mxu0
      %1929 = vmatprep.mubr.f32.mxu0 0.0
      %1930 = vmatmul.mubr.f32.gmra.mrb[0].mxu0 %v1719
      %v1931 = vpop.f32.mrb[0].mxu0
      %v1932 = vadd.f32 0.0, %v1931
      %v1933 = vpop.f32.mrb[0].mxu0
      %1934 = vmatprep.mubr.f32.mxu0 0.0
      %1935 = vmatmul.mubr.f32.gmra.mrb[0].mxu0 %v1722
      %v1936 = vpop.f32.mrb[0].mxu0
      %v1937 = vadd.f32 0.0, %v1936
      %v1938 = vpop.f32.mrb[0].mxu0
      %1939 = vmatprep.mubr.f32.mxu0 0.0
      %1940 = vmatmul.mubr.f32.gmra.mrb[0].mxu0 %v1725
      %v1941 = vpop.f32.mrb[0].mxu0
      %v1942 = vadd.f32 0.0, %v1941
      %v1943 = vpop.f32.mrb[0].mxu0
      %1944 = vmatprep.mubr.f32.mxu0 0.0
      %1945 = vmatmul.mubr.f32.gmra.mrb[0].mxu0 %v1728
      %v1946 = vpop.f32.mrb[0].mxu0
      %v1947 = vadd.f32 0.0, %v1946
      %v1948 = vpop.f32.mrb[0].mxu0
      %1949 = vmatprep.mubr.f32.mxu0 0.0
      %1950 = vmatmul.mubr.f32.gmra.mrb[0].mxu0 %v1731
      %v1951 = vpop.f32.mrb[0].mxu0
      %v1952 = vadd.f32 0.0, %v1951
      %v1953 = vpop.f32.mrb[0].mxu0
      %1954 = vmatprep.mubr.f32.mxu0 0.0
      %1955 = vmatmul.mubr.f32.gmra.mrb[0].mxu0 %v1734
      %v1956 = vpop.f32.mrb[0].mxu0
      %v1957 = vadd.f32 0.0, %v1956
      %v1958 = vpop.f32.mrb[0].mxu0
      %1959 = vmatprep.mubr.f32.mxu0 0.0
      %1960 = vmatmul.mubr.f32.gmra.mrb[0].mxu0 %v1737
      %v1961 = vpop.f32.mrb[0].mxu0
      %v1962 = vadd.f32 0.0, %v1961
      %v1963 = vpop.f32.mrb[0].mxu0
      %1964 = vmatprep.mubr.f32.mxu0 0.0
      %1965 = vmatmul.mubr.f32.gmra.mrb[0].mxu0 %v1740
      %v1966 = vpop.f32.mrb[0].mxu0
      %v1967 = vadd.f32 0.0, %v1966
      %v1968 = vpop.f32.mrb[0].mxu0
      %1969 = vdwg.mxu0
      %v1970 = vadd.f32 %v1453, %v1812
      %v1971 = vadd.f32 %v1458, %v1817
      %v1972 = vadd.f32 %v1463, %v1822
      %v1973 = vadd.f32 %v1468, %v1827
      %v1974 = vadd.f32 %v1473, %v1832
      %v1975 = vadd.f32 %v1478, %v1837
      %v1976 = vadd.f32 %v1483, %v1842
      %v1977 = vadd.f32 %v1488, %v1847
      %v1978 = vadd.f32 %v1493, %v1852
      %v1979 = vadd.f32 %v1498, %v1857
      %v1980 = vadd.f32 %v1503, %v1862
      %v1981 = vadd.f32 %v1508, %v1867
      %v1982 = vadd.f32 %v1513, %v1872
      %v1983 = vadd.f32 %v1518, %v1877
      %v1984 = vadd.f32 %v1523, %v1882
      %v1985 = vadd.f32 %v1528, %v1887
      %v1986 = vadd.f32 %v1533, %v1892
      %v1987 = vadd.f32 %v1538, %v1897
      %v1988 = vadd.f32 %v1543, %v1902
      %v1989 = vadd.f32 %v1548, %v1907
      %v1990 = vadd.f32 %v1553, %v1912
      %v1991 = vadd.f32 %v1558, %v1917
      %v1992 = vadd.f32 %v1563, %v1922
      %v1993 = vadd.f32 %v1568, %v1927
      %v1994 = vadd.f32 %v1573, %v1932
      %v1995 = vadd.f32 %v1578, %v1937
      %v1996 = vadd.f32 %v1583, %v1942
      %v1997 = vadd.f32 %v1588, %v1947
      %v1998 = vadd.f32 %v1593, %v1952
      %v1999 = vadd.f32 %v1598, %v1957
      %v2000 = vadd.f32 %v1603, %v1962
      %v2001 = vadd.f32 %v1608, %v1967
      %v2002 = vld [vmem:[%s3] sm:$0x1]
      %v2004 = vlaneseq
      %v2005 = vshrl.u32 %v2004, 7
      %v2006 = vsub.s32 0, %v2005
      %v2007 = vrot.slane %v2002, %v2006
      %v2009 = vmul.f32 %v1970, %v2007
      %v2010 = vmul.f32 %v1971, %v2007
      %v2011 = vmul.f32 %v1972, %v2007
      %v2012 = vmul.f32 %v1973, %v2007
      %v2013 = vmul.f32 %v1974, %v2007
      %v2014 = vmul.f32 %v1975, %v2007
      %v2015 = vmul.f32 %v1976, %v2007
      %v2016 = vmul.f32 %v1977, %v2007
      %v2017 = vmul.f32 %v1978, %v2007
      %v2018 = vmul.f32 %v1979, %v2007
      %v2019 = vmul.f32 %v1980, %v2007
      %v2020 = vmul.f32 %v1981, %v2007
      %v2021 = vmul.f32 %v1982, %v2007
      %v2022 = vmul.f32 %v1983, %v2007
      %v2023 = vmul.f32 %v1984, %v2007
      %v2024 = vmul.f32 %v1985, %v2007
      %v2025 = vmul.f32 %v1986, %v2007
      %v2026 = vmul.f32 %v1987, %v2007
      %v2027 = vmul.f32 %v1988, %v2007
      %v2028 = vmul.f32 %v1989, %v2007
      %v2029 = vmul.f32 %v1990, %v2007
      %v2030 = vmul.f32 %v1991, %v2007
      %v2031 = vmul.f32 %v1992, %v2007
      %v2032 = vmul.f32 %v1993, %v2007
      %v2033 = vmul.f32 %v1994, %v2007
      %v2034 = vmul.f32 %v1995, %v2007
      %v2035 = vmul.f32 %v1996, %v2007
      %v2036 = vmul.f32 %v1997, %v2007
      %v2037 = vmul.f32 %v1998, %v2007
      %v2038 = vmul.f32 %v1999, %v2007
      %v2039 = vmul.f32 %v2000, %v2007
      %v2040 = vmul.f32 %v2001, %v2007
      %v2041 = vld [vmem:[%s4] sm:$0x1]
      %v2043 = vlaneseq
      %v2044 = vshrl.u32 %v2043, 7
      %v2045 = vsub.s32 0, %v2044
      %v2046 = vrot.slane %v2041, %v2045
      %v2048 = vadd.f32 %v2009, %v2046
      %v2049 = vadd.f32 %v2010, %v2046
      %v2050 = vadd.f32 %v2011, %v2046
      %v2051 = vadd.f32 %v2012, %v2046
      %v2052 = vadd.f32 %v2013, %v2046
      %v2053 = vadd.f32 %v2014, %v2046
      %v2054 = vadd.f32 %v2015, %v2046
      %v2055 = vadd.f32 %v2016, %v2046
      %v2056 = vadd.f32 %v2017, %v2046
      %v2057 = vadd.f32 %v2018, %v2046
      %v2058 = vadd.f32 %v2019, %v2046
      %v2059 = vadd.f32 %v2020, %v2046
      %v2060 = vadd.f32 %v2021, %v2046
      %v2061 = vadd.f32 %v2022, %v2046
      %v2062 = vadd.f32 %v2023, %v2046
      %v2063 = vadd.f32 %v2024, %v2046
      %v2064 = vadd.f32 %v2025, %v2046
      %v2065 = vadd.f32 %v2026, %v2046
      %v2066 = vadd.f32 %v2027, %v2046
      %v2067 = vadd.f32 %v2028, %v2046
      %v2068 = vadd.f32 %v2029, %v2046
      %v2069 = vadd.f32 %v2030, %v2046
      %v2070 = vadd.f32 %v2031, %v2046
      %v2071 = vadd.f32 %v2032, %v2046
      %v2072 = vadd.f32 %v2033, %v2046
      %v2073 = vadd.f32 %v2034, %v2046
      %v2074 = vadd.f32 %v2035, %v2046
      %v2075 = vadd.f32 %v2036, %v2046
      %v2076 = vadd.f32 %v2037, %v2046
      %v2077 = vadd.f32 %v2038, %v2046
      %v2078 = vadd.f32 %v2039, %v2046
      %v2079 = vadd.f32 %v2040, %v2046
      %v2080 = vmax.f32 %v2048, 0.0
      %v2081 = vmax.f32 %v2049, 0.0
      %v2082 = vmax.f32 %v2050, 0.0
      %v2083 = vmax.f32 %v2051, 0.0
      %v2084 = vmax.f32 %v2052, 0.0
      %v2085 = vmax.f32 %v2053, 0.0
      %v2086 = vmax.f32 %v2054, 0.0
      %v2087 = vmax.f32 %v2055, 0.0
      %v2088 = vmax.f32 %v2056, 0.0
      %v2089 = vmax.f32 %v2057, 0.0
      %v2090 = vmax.f32 %v2058, 0.0
      %v2091 = vmax.f32 %v2059, 0.0
      %v2092 = vmax.f32 %v2060, 0.0
      %v2093 = vmax.f32 %v2061, 0.0
      %v2094 = vmax.f32 %v2062, 0.0
      %v2095 = vmax.f32 %v2063, 0.0
      %v2096 = vmax.f32 %v2064, 0.0
      %v2097 = vmax.f32 %v2065, 0.0
      %v2098 = vmax.f32 %v2066, 0.0
      %v2099 = vmax.f32 %v2067, 0.0
      %v2100 = vmax.f32 %v2068, 0.0
      %v2101 = vmax.f32 %v2069, 0.0
      %v2102 = vmax.f32 %v2070, 0.0
      %v2103 = vmax.f32 %v2071, 0.0
      %v2104 = vmax.f32 %v2072, 0.0
      %v2105 = vmax.f32 %v2073, 0.0
      %v2106 = vmax.f32 %v2074, 0.0
      %v2107 = vmax.f32 %v2075, 0.0
      %v2108 = vmax.f32 %v2076, 0.0
      %v2109 = vmax.f32 %v2077, 0.0
      %v2110 = vmax.f32 %v2078, 0.0
      %v2111 = vmax.f32 %v2079, 0.0
      %2112 = vst.msk [vmem:[%s288 + $0x1] sm:$0xff] %vm279, %v2080
      %2113 = vst.msk [vmem:[%s288 + $0x9] sm:$0xff] %vm279, %v2081
      %2114 = vst.msk [vmem:[%s288 + $0x19] sm:$0xff] %vm279, %v2082
      %2115 = vst.msk [vmem:[%s288 + $0x21] sm:$0xff] %vm279, %v2083
      %2116 = vst.msk [vmem:[%s288 + $0x31] sm:$0xff] %vm279, %v2084
      %2117 = vst.msk [vmem:[%s288 + $0x39] sm:$0xff] %vm279, %v2085
      %2118 = vst.msk [vmem:[%s288 + $0x49] sm:$0xff] %vm279, %v2086
      %2119 = vst.msk [vmem:[%s288 + $0x51] sm:$0xff] %vm279, %v2087
      %2120 = vst.msk [vmem:[%s288 + $0x61] sm:$0xff] %vm279, %v2088
      %2121 = vst.msk [vmem:[%s288 + $0x69] sm:$0xff] %vm279, %v2089
      %2122 = vst.msk [vmem:[%s288 + $0x79] sm:$0xff] %vm279, %v2090
      %2123 = vst.msk [vmem:[%s288 + $0x81] sm:$0xff] %vm279, %v2091
      %2124 = vst.msk [vmem:[%s288 + $0x91] sm:$0xff] %vm279, %v2092
      %2125 = vst.msk [vmem:[%s288 + $0x99] sm:$0xff] %vm279, %v2093
      %2126 = vst.msk [vmem:[%s288 + $0xa9] sm:$0xff] %vm279, %v2094
      %2127 = vst.msk [vmem:[%s288 + $0xb1] sm:$0xff] %vm279, %v2095
      %2128 = vst.msk [vmem:[%s288 + $0xc1] sm:$0xff] %vm279, %v2096
      %2129 = vst.msk [vmem:[%s288 + $0xc9] sm:$0xff] %vm279, %v2097
      %2130 = vst.msk [vmem:[%s288 + $0xd9] sm:$0xff] %vm279, %v2098
      %2131 = vst.msk [vmem:[%s288 + $0xe1] sm:$0xff] %vm279, %v2099
      %2132 = vst.msk [vmem:[%s288 + $0xf1] sm:$0xff] %vm279, %v2100
      %2133 = vst.msk [vmem:[%s288 + $0xf9] sm:$0xff] %vm279, %v2101
      %2134 = vst.msk [vmem:[%s288 + $0x109] sm:$0xff] %vm279, %v2102
      %2135 = vst.msk [vmem:[%s288 + $0x111] sm:$0xff] %vm279, %v2103
      %2136 = vst.msk [vmem:[%s288 + $0x121] sm:$0xff] %vm279, %v2104
      %2137 = vst.msk [vmem:[%s288 + $0x129] sm:$0xff] %vm279, %v2105
      %2138 = vst.msk [vmem:[%s288 + $0x139] sm:$0xff] %vm279, %v2106
      %2139 = vst.msk [vmem:[%s288 + $0x141] sm:$0xff] %vm279, %v2107
      %2140 = vst.msk [vmem:[%s288 + $0x151] sm:$0xff] %vm279, %v2108
      %2141 = vst.msk [vmem:[%s288 + $0x159] sm:$0xff] %vm279, %v2109
      %2142 = vst.msk [vmem:[%s288 + $0x169] sm:$0xff] %vm279, %v2110
      %2143 = vst.msk [vmem:[%s288 + $0x171] sm:$0xff] %vm279, %v2111
      %v2144 = vld [vmem:[#allocation2] sm:$0xff]
      %v2145 = vld [vmem:[#allocation2 + $0x8] sm:$0xff]
      %v2146 = vld [vmem:[#allocation2 + $0x18] sm:$0xff]
      %v2147 = vld [vmem:[#allocation2 + $0x20] sm:$0xff]
      %v2148 = vld [vmem:[#allocation2 + $0x30] sm:$0xff]
      %v2149 = vld [vmem:[#allocation2 + $0x38] sm:$0xff]
      %v2150 = vld [vmem:[#allocation2 + $0x48] sm:$0xff]
      %v2151 = vld [vmem:[#allocation2 + $0x50] sm:$0xff]
      %v2152 = vld [vmem:[#allocation2 + $0x60] sm:$0xff]
      %v2153 = vld [vmem:[#allocation2 + $0x68] sm:$0xff]
      %v2154 = vld [vmem:[#allocation2 + $0x78] sm:$0xff]
      %v2155 = vld [vmem:[#allocation2 + $0x80] sm:$0xff]
      %v2156 = vld [vmem:[#allocation2 + $0x90] sm:$0xff]
      %v2157 = vld [vmem:[#allocation2 + $0x98] sm:$0xff]
      %v2158 = vld [vmem:[#allocation2 + $0xa8] sm:$0xff]
      %v2159 = vld [vmem:[#allocation2 + $0xb0] sm:$0xff]
      %v2160 = vld [vmem:[#allocation2 + $0xc0] sm:$0xff]
      %v2161 = vld [vmem:[#allocation2 + $0xc8] sm:$0xff]
      %v2162 = vld [vmem:[#allocation2 + $0xd8] sm:$0xff]
      %v2163 = vld [vmem:[#allocation2 + $0xe0] sm:$0xff]
      %v2164 = vld [vmem:[#allocation2 + $0xf0] sm:$0xff]
      %v2165 = vld [vmem:[#allocation2 + $0xf8] sm:$0xff]
      %v2166 = vld [vmem:[#allocation2 + $0x108] sm:$0xff]
      %v2167 = vld [vmem:[#allocation2 + $0x110] sm:$0xff]
      %v2168 = vld [vmem:[#allocation2 + $0x120] sm:$0xff]
      %v2169 = vld [vmem:[#allocation2 + $0x128] sm:$0xff]
      %v2170 = vld [vmem:[#allocation2 + $0x138] sm:$0xff]
      %v2171 = vld [vmem:[#allocation2 + $0x140] sm:$0xff]
      %v2172 = vld [vmem:[#allocation2 + $0x150] sm:$0xff]
      %v2173 = vld [vmem:[#allocation2 + $0x158] sm:$0xff]
      %v2174 = vld [vmem:[#allocation2 + $0x168] sm:$0xff]
      %v2175 = vld [vmem:[#allocation2 + $0x170] sm:$0xff]
      %v2176 = vld [vmem:[#allocation2 + $0x180] sm:$0xff]
      %v2177 = vld [vmem:[#allocation2 + $0x188] sm:$0xff]
      %v2178 = vld [vmem:[#allocation2 + $0x198] sm:$0xff]
      %v2179 = vld [vmem:[#allocation2 + $0x1a0] sm:$0xff]
      %2180 = vst.msk [vmem:[#allocation3] sm:$0xff] %vm279, %v2144
      %2181 = vst.msk [vmem:[#allocation3 + $0x8] sm:$0xff] %vm279, %v2145
      %2182 = vst.msk [vmem:[#allocation3 + $0x10] sm:$0xff] %vm279, %v2146
      %2183 = vst.msk [vmem:[#allocation3 + $0x18] sm:$0xff] %vm279, %v2147
      %2184 = vst.msk [vmem:[#allocation3 + $0x20] sm:$0xff] %vm279, %v2148
      %2185 = vst.msk [vmem:[#allocation3 + $0x28] sm:$0xff] %vm279, %v2149
      %2186 = vst.msk [vmem:[#allocation3 + $0x30] sm:$0xff] %vm279, %v2150
      %2187 = vst.msk [vmem:[#allocation3 + $0x38] sm:$0xff] %vm279, %v2151
      %2188 = vst.msk [vmem:[#allocation3 + $0x40] sm:$0xff] %vm279, %v2152
      %2189 = vst.msk [vmem:[#allocation3 + $0x48] sm:$0xff] %vm279, %v2153
      %2190 = vst.msk [vmem:[#allocation3 + $0x50] sm:$0xff] %vm279, %v2154
      %2191 = vst.msk [vmem:[#allocation3 + $0x58] sm:$0xff] %vm279, %v2155
      %2192 = vst.msk [vmem:[#allocation3 + $0x60] sm:$0xff] %vm279, %v2156
      %2193 = vst.msk [vmem:[#allocation3 + $0x68] sm:$0xff] %vm279, %v2157
      %2194 = vst.msk [vmem:[#allocation3 + $0x70] sm:$0xff] %vm279, %v2158
      %2195 = vst.msk [vmem:[#allocation3 + $0x78] sm:$0xff] %vm279, %v2159
      %2196 = vst.msk [vmem:[#allocation3 + $0x80] sm:$0xff] %vm279, %v2160
      %2197 = vst.msk [vmem:[#allocation3 + $0x88] sm:$0xff] %vm279, %v2161
      %2198 = vst.msk [vmem:[#allocation3 + $0x90] sm:$0xff] %vm279, %v2162
      %2199 = vst.msk [vmem:[#allocation3 + $0x98] sm:$0xff] %vm279, %v2163
      %2200 = vst.msk [vmem:[#allocation3 + $0xa0] sm:$0xff] %vm279, %v2164
      %2201 = vst.msk [vmem:[#allocation3 + $0xa8] sm:$0xff] %vm279, %v2165
      %2202 = vst.msk [vmem:[#allocation3 + $0xb0] sm:$0xff] %vm279, %v2166
      %2203 = vst.msk [vmem:[#allocation3 + $0xb8] sm:$0xff] %vm279, %v2167
      %2204 = vst.msk [vmem:[#allocation3 + $0xc0] sm:$0xff] %vm279, %v2168
      %2205 = vst.msk [vmem:[#allocation3 + $0xc8] sm:$0xff] %vm279, %v2169
      %2206 = vst.msk [vmem:[#allocation3 + $0xd0] sm:$0xff] %vm279, %v2170
      %2207 = vst.msk [vmem:[#allocation3 + $0xd8] sm:$0xff] %vm279, %v2171
      %2208 = vst.msk [vmem:[#allocation3 + $0xe0] sm:$0xff] %vm279, %v2172
      %2209 = vst.msk [vmem:[#allocation3 + $0xe8] sm:$0xff] %vm279, %v2173
      %2210 = vst.msk [vmem:[#allocation3 + $0xf0] sm:$0xff] %vm279, %v2174
      %2211 = vst.msk [vmem:[#allocation3 + $0xf8] sm:$0xff] %vm279, %v2175
      %2212 = vst.msk [vmem:[#allocation3 + $0x100] sm:$0xff] %vm279, %v2176
      %2213 = vst.msk [vmem:[#allocation3 + $0x108] sm:$0xff] %vm279, %v2177
      %2214 = vst.msk [vmem:[#allocation3 + $0x110] sm:$0xff] %vm279, %v2178
      %2215 = vst.msk [vmem:[#allocation3 + $0x118] sm:$0xff] %vm279, %v2179
      %v2216 = vld [vmem:[#allocation2 + $0x1] sm:$0xff]
      %v2217 = vld [vmem:[#allocation2 + $0x9] sm:$0xff]
      %v2218 = vld [vmem:[#allocation2 + $0x19] sm:$0xff]
      %v2219 = vld [vmem:[#allocation2 + $0x21] sm:$0xff]
      %v2220 = vld [vmem:[#allocation2 + $0x31] sm:$0xff]
      %v2221 = vld [vmem:[#allocation2 + $0x39] sm:$0xff]
      %v2222 = vld [vmem:[#allocation2 + $0x49] sm:$0xff]
      %v2223 = vld [vmem:[#allocation2 + $0x51] sm:$0xff]
      %v2224 = vld [vmem:[#allocation2 + $0x61] sm:$0xff]
      %v2225 = vld [vmem:[#allocation2 + $0x69] sm:$0xff]
      %v2226 = vld [vmem:[#allocation2 + $0x79] sm:$0xff]
      %v2227 = vld [vmem:[#allocation2 + $0x81] sm:$0xff]
      %v2228 = vld [vmem:[#allocation2 + $0x91] sm:$0xff]
      %v2229 = vld [vmem:[#allocation2 + $0x99] sm:$0xff]
      %v2230 = vld [vmem:[#allocation2 + $0xa9] sm:$0xff]
      %v2231 = vld [vmem:[#allocation2 + $0xb1] sm:$0xff]
      %v2232 = vld [vmem:[#allocation2 + $0xc1] sm:$0xff]
      %v2233 = vld [vmem:[#allocation2 + $0xc9] sm:$0xff]
      %v2234 = vld [vmem:[#allocation2 + $0xd9] sm:$0xff]
      %v2235 = vld [vmem:[#allocation2 + $0xe1] sm:$0xff]
      %v2236 = vld [vmem:[#allocation2 + $0xf1] sm:$0xff]
      %v2237 = vld [vmem:[#allocation2 + $0xf9] sm:$0xff]
      %v2238 = vld [vmem:[#allocation2 + $0x109] sm:$0xff]
      %v2239 = vld [vmem:[#allocation2 + $0x111] sm:$0xff]
      %v2240 = vld [vmem:[#allocation2 + $0x121] sm:$0xff]
      %v2241 = vld [vmem:[#allocation2 + $0x129] sm:$0xff]
      %v2242 = vld [vmem:[#allocation2 + $0x139] sm:$0xff]
      %v2243 = vld [vmem:[#allocation2 + $0x141] sm:$0xff]
      %v2244 = vld [vmem:[#allocation2 + $0x151] sm:$0xff]
      %v2245 = vld [vmem:[#allocation2 + $0x159] sm:$0xff]
      %v2246 = vld [vmem:[#allocation2 + $0x169] sm:$0xff]
      %v2247 = vld [vmem:[#allocation2 + $0x171] sm:$0xff]
      %v2248 = vld [vmem:[#allocation2 + $0x181] sm:$0xff]
      %v2249 = vld [vmem:[#allocation2 + $0x189] sm:$0xff]
      %v2250 = vld [vmem:[#allocation2 + $0x199] sm:$0xff]
      %v2251 = vld [vmem:[#allocation2 + $0x1a1] sm:$0xff]
      %2288 = vrot.lane.b32.xlu0 %v2216, 4
      %v2289 = vpop.permute.xlu0 %2288
      %2290 = vrot.lane.b32.xlu0 %v2217, 4
      %v2291 = vpop.permute.xlu0 %2290
      %2292 = vrot.lane.b32.xlu0 %v2218, 4
      %v2293 = vpop.permute.xlu0 %2292
      %2294 = vrot.lane.b32.xlu0 %v2219, 4
      %v2295 = vpop.permute.xlu0 %2294
      %2296 = vrot.lane.b32.xlu0 %v2220, 4
      %v2297 = vpop.permute.xlu0 %2296
      %2298 = vrot.lane.b32.xlu0 %v2221, 4
      %v2299 = vpop.permute.xlu0 %2298
      %2300 = vrot.lane.b32.xlu0 %v2222, 4
      %v2301 = vpop.permute.xlu0 %2300
      %2302 = vrot.lane.b32.xlu0 %v2223, 4
      %v2303 = vpop.permute.xlu0 %2302
      %2304 = vrot.lane.b32.xlu0 %v2224, 4
      %v2305 = vpop.permute.xlu0 %2304
      %2306 = vrot.lane.b32.xlu0 %v2225, 4
      %v2307 = vpop.permute.xlu0 %2306
      %2308 = vrot.lane.b32.xlu0 %v2226, 4
      %v2309 = vpop.permute.xlu0 %2308
      %2310 = vrot.lane.b32.xlu0 %v2227, 4
      %v2311 = vpop.permute.xlu0 %2310
      %2312 = vrot.lane.b32.xlu0 %v2228, 4
      %v2313 = vpop.permute.xlu0 %2312
      %2314 = vrot.lane.b32.xlu0 %v2229, 4
      %v2315 = vpop.permute.xlu0 %2314
      %2316 = vrot.lane.b32.xlu0 %v2230, 4
      %v2317 = vpop.permute.xlu0 %2316
      %2318 = vrot.lane.b32.xlu0 %v2231, 4
      %v2319 = vpop.permute.xlu0 %2318
      %2320 = vrot.lane.b32.xlu0 %v2232, 4
      %v2321 = vpop.permute.xlu0 %2320
      %2322 = vrot.lane.b32.xlu0 %v2233, 4
      %v2323 = vpop.permute.xlu0 %2322
      %2324 = vrot.lane.b32.xlu0 %v2234, 4
      %v2325 = vpop.permute.xlu0 %2324
      %2326 = vrot.lane.b32.xlu0 %v2235, 4
      %v2327 = vpop.permute.xlu0 %2326
      %2328 = vrot.lane.b32.xlu0 %v2236, 4
      %v2329 = vpop.permute.xlu0 %2328
      %2330 = vrot.lane.b32.xlu0 %v2237, 4
      %v2331 = vpop.permute.xlu0 %2330
      %2332 = vrot.lane.b32.xlu0 %v2238, 4
      %v2333 = vpop.permute.xlu0 %2332
      %2334 = vrot.lane.b32.xlu0 %v2239, 4
      %v2335 = vpop.permute.xlu0 %2334
      %2336 = vrot.lane.b32.xlu0 %v2240, 4
      %v2337 = vpop.permute.xlu0 %2336
      %2338 = vrot.lane.b32.xlu0 %v2241, 4
      %v2339 = vpop.permute.xlu0 %2338
      %2340 = vrot.lane.b32.xlu0 %v2242, 4
      %v2341 = vpop.permute.xlu0 %2340
      %2342 = vrot.lane.b32.xlu0 %v2243, 4
      %v2343 = vpop.permute.xlu0 %2342
      %2344 = vrot.lane.b32.xlu0 %v2244, 4
      %v2345 = vpop.permute.xlu0 %2344
      %2346 = vrot.lane.b32.xlu0 %v2245, 4
      %v2347 = vpop.permute.xlu0 %2346
      %2348 = vrot.lane.b32.xlu0 %v2246, 4
      %v2349 = vpop.permute.xlu0 %2348
      %2350 = vrot.lane.b32.xlu0 %v2247, 4
      %v2351 = vpop.permute.xlu0 %2350
      %2352 = vrot.lane.b32.xlu0 %v2248, 4
      %v2353 = vpop.permute.xlu0 %2352
      %2354 = vrot.lane.b32.xlu0 %v2249, 4
      %v2355 = vpop.permute.xlu0 %2354
      %2356 = vrot.lane.b32.xlu0 %v2250, 4
      %v2357 = vpop.permute.xlu0 %2356
      %2358 = vrot.lane.b32.xlu0 %v2251, 4
      %v2359 = vpop.permute.xlu0 %2358
      %2396 = vst.msk [vmem:[#allocation3] sm:$0xff] %vm638, %v2289
      %2397 = vst.msk [vmem:[#allocation3 + $0x8] sm:$0xff] %vm638, %v2291
      %2398 = vst.msk [vmem:[#allocation3 + $0x10] sm:$0xff] %vm638, %v2293
      %2399 = vst.msk [vmem:[#allocation3 + $0x18] sm:$0xff] %vm638, %v2295
      %2400 = vst.msk [vmem:[#allocation3 + $0x20] sm:$0xff] %vm638, %v2297
      %2401 = vst.msk [vmem:[#allocation3 + $0x28] sm:$0xff] %vm638, %v2299
      %2402 = vst.msk [vmem:[#allocation3 + $0x30] sm:$0xff] %vm638, %v2301
      %2403 = vst.msk [vmem:[#allocation3 + $0x38] sm:$0xff] %vm638, %v2303
      %2404 = vst.msk [vmem:[#allocation3 + $0x40] sm:$0xff] %vm638, %v2305
      %2405 = vst.msk [vmem:[#allocation3 + $0x48] sm:$0xff] %vm638, %v2307
      %2406 = vst.msk [vmem:[#allocation3 + $0x50] sm:$0xff] %vm638, %v2309
      %2407 = vst.msk [vmem:[#allocation3 + $0x58] sm:$0xff] %vm638, %v2311
      %2408 = vst.msk [vmem:[#allocation3 + $0x60] sm:$0xff] %vm638, %v2313
      %2409 = vst.msk [vmem:[#allocation3 + $0x68] sm:$0xff] %vm638, %v2315
      %2410 = vst.msk [vmem:[#allocation3 + $0x70] sm:$0xff] %vm638, %v2317
      %2411 = vst.msk [vmem:[#allocation3 + $0x78] sm:$0xff] %vm638, %v2319
      %2412 = vst.msk [vmem:[#allocation3 + $0x80] sm:$0xff] %vm638, %v2321
      %2413 = vst.msk [vmem:[#allocation3 + $0x88] sm:$0xff] %vm638, %v2323
      %2414 = vst.msk [vmem:[#allocation3 + $0x90] sm:$0xff] %vm638, %v2325
      %2415 = vst.msk [vmem:[#allocation3 + $0x98] sm:$0xff] %vm638, %v2327
      %2416 = vst.msk [vmem:[#allocation3 + $0xa0] sm:$0xff] %vm638, %v2329
      %2417 = vst.msk [vmem:[#allocation3 + $0xa8] sm:$0xff] %vm638, %v2331
      %2418 = vst.msk [vmem:[#allocation3 + $0xb0] sm:$0xff] %vm638, %v2333
      %2419 = vst.msk [vmem:[#allocation3 + $0xb8] sm:$0xff] %vm638, %v2335
      %2420 = vst.msk [vmem:[#allocation3 + $0xc0] sm:$0xff] %vm638, %v2337
      %2421 = vst.msk [vmem:[#allocation3 + $0xc8] sm:$0xff] %vm638, %v2339
      %2422 = vst.msk [vmem:[#allocation3 + $0xd0] sm:$0xff] %vm638, %v2341
      %2423 = vst.msk [vmem:[#allocation3 + $0xd8] sm:$0xff] %vm638, %v2343
      %2424 = vst.msk [vmem:[#allocation3 + $0xe0] sm:$0xff] %vm638, %v2345
      %2425 = vst.msk [vmem:[#allocation3 + $0xe8] sm:$0xff] %vm638, %v2347
      %2426 = vst.msk [vmem:[#allocation3 + $0xf0] sm:$0xff] %vm638, %v2349
      %2427 = vst.msk [vmem:[#allocation3 + $0xf8] sm:$0xff] %vm638, %v2351
      %2428 = vst.msk [vmem:[#allocation3 + $0x100] sm:$0xff] %vm638, %v2353
      %2429 = vst.msk [vmem:[#allocation3 + $0x108] sm:$0xff] %vm638, %v2355
      %2430 = vst.msk [vmem:[#allocation3 + $0x110] sm:$0xff] %vm638, %v2357
      %2431 = vst.msk [vmem:[#allocation3 + $0x118] sm:$0xff] %vm638, %v2359
      %v2432 = vld [vmem:[#allocation2 + $0x2] sm:$0xff]
      %v2433 = vld [vmem:[#allocation2 + $0xa] sm:$0xff]
      %v2434 = vld [vmem:[#allocation2 + $0x1a] sm:$0xff]
      %v2435 = vld [vmem:[#allocation2 + $0x22] sm:$0xff]
      %v2436 = vld [vmem:[#allocation2 + $0x32] sm:$0xff]
      %v2437 = vld [vmem:[#allocation2 + $0x3a] sm:$0xff]
      %v2438 = vld [vmem:[#allocation2 + $0x4a] sm:$0xff]
      %v2439 = vld [vmem:[#allocation2 + $0x52] sm:$0xff]
      %v2440 = vld [vmem:[#allocation2 + $0x62] sm:$0xff]
      %v2441 = vld [vmem:[#allocation2 + $0x6a] sm:$0xff]
      %v2442 = vld [vmem:[#allocation2 + $0x7a] sm:$0xff]
      %v2443 = vld [vmem:[#allocation2 + $0x82] sm:$0xff]
      %v2444 = vld [vmem:[#allocation2 + $0x92] sm:$0xff]
      %v2445 = vld [vmem:[#allocation2 + $0x9a] sm:$0xff]
      %v2446 = vld [vmem:[#allocation2 + $0xaa] sm:$0xff]
      %v2447 = vld [vmem:[#allocation2 + $0xb2] sm:$0xff]
      %v2448 = vld [vmem:[#allocation2 + $0xc2] sm:$0xff]
      %v2449 = vld [vmem:[#allocation2 + $0xca] sm:$0xff]
      %v2450 = vld [vmem:[#allocation2 + $0xda] sm:$0xff]
      %v2451 = vld [vmem:[#allocation2 + $0xe2] sm:$0xff]
      %v2452 = vld [vmem:[#allocation2 + $0xf2] sm:$0xff]
      %v2453 = vld [vmem:[#allocation2 + $0xfa] sm:$0xff]
      %v2454 = vld [vmem:[#allocation2 + $0x10a] sm:$0xff]
      %v2455 = vld [vmem:[#allocation2 + $0x112] sm:$0xff]
      %v2456 = vld [vmem:[#allocation2 + $0x122] sm:$0xff]
      %v2457 = vld [vmem:[#allocation2 + $0x12a] sm:$0xff]
      %v2458 = vld [vmem:[#allocation2 + $0x13a] sm:$0xff]
      %v2459 = vld [vmem:[#allocation2 + $0x142] sm:$0xff]
      %v2460 = vld [vmem:[#allocation2 + $0x152] sm:$0xff]
      %v2461 = vld [vmem:[#allocation2 + $0x15a] sm:$0xff]
      %v2462 = vld [vmem:[#allocation2 + $0x16a] sm:$0xff]
      %v2463 = vld [vmem:[#allocation2 + $0x172] sm:$0xff]
      %v2464 = vld [vmem:[#allocation2 + $0x182] sm:$0xff]
      %v2465 = vld [vmem:[#allocation2 + $0x18a] sm:$0xff]
      %v2466 = vld [vmem:[#allocation2 + $0x19a] sm:$0xff]
      %v2467 = vld [vmem:[#allocation2 + $0x1a2] sm:$0xff]
      %2504 = vrot.lane.b32.xlu0 %v2432, 8
      %v2505 = vpop.permute.xlu0 %2504
      %2506 = vrot.lane.b32.xlu0 %v2433, 8
      %v2507 = vpop.permute.xlu0 %2506
      %2508 = vrot.lane.b32.xlu0 %v2434, 8
      %v2509 = vpop.permute.xlu0 %2508
      %2510 = vrot.lane.b32.xlu0 %v2435, 8
      %v2511 = vpop.permute.xlu0 %2510
      %2512 = vrot.lane.b32.xlu0 %v2436, 8
      %v2513 = vpop.permute.xlu0 %2512
      %2514 = vrot.lane.b32.xlu0 %v2437, 8
      %v2515 = vpop.permute.xlu0 %2514
      %2516 = vrot.lane.b32.xlu0 %v2438, 8
      %v2517 = vpop.permute.xlu0 %2516
      %2518 = vrot.lane.b32.xlu0 %v2439, 8
      %v2519 = vpop.permute.xlu0 %2518
      %2520 = vrot.lane.b32.xlu0 %v2440, 8
      %v2521 = vpop.permute.xlu0 %2520
      %2522 = vrot.lane.b32.xlu0 %v2441, 8
      %v2523 = vpop.permute.xlu0 %2522
      %2524 = vrot.lane.b32.xlu0 %v2442, 8
      %v2525 = vpop.permute.xlu0 %2524
      %2526 = vrot.lane.b32.xlu0 %v2443, 8
      %v2527 = vpop.permute.xlu0 %2526
      %2528 = vrot.lane.b32.xlu0 %v2444, 8
      %v2529 = vpop.permute.xlu0 %2528
      %2530 = vrot.lane.b32.xlu0 %v2445, 8
      %v2531 = vpop.permute.xlu0 %2530
      %2532 = vrot.lane.b32.xlu0 %v2446, 8
      %v2533 = vpop.permute.xlu0 %2532
      %2534 = vrot.lane.b32.xlu0 %v2447, 8
      %v2535 = vpop.permute.xlu0 %2534
      %2536 = vrot.lane.b32.xlu0 %v2448, 8
      %v2537 = vpop.permute.xlu0 %2536
      %2538 = vrot.lane.b32.xlu0 %v2449, 8
      %v2539 = vpop.permute.xlu0 %2538
      %2540 = vrot.lane.b32.xlu0 %v2450, 8
      %v2541 = vpop.permute.xlu0 %2540
      %2542 = vrot.lane.b32.xlu0 %v2451, 8
      %v2543 = vpop.permute.xlu0 %2542
      %2544 = vrot.lane.b32.xlu0 %v2452, 8
      %v2545 = vpop.permute.xlu0 %2544
      %2546 = vrot.lane.b32.xlu0 %v2453, 8
      %v2547 = vpop.permute.xlu0 %2546
      %2548 = vrot.lane.b32.xlu0 %v2454, 8
      %v2549 = vpop.permute.xlu0 %2548
      %2550 = vrot.lane.b32.xlu0 %v2455, 8
      %v2551 = vpop.permute.xlu0 %2550
      %2552 = vrot.lane.b32.xlu0 %v2456, 8
      %v2553 = vpop.permute.xlu0 %2552
      %2554 = vrot.lane.b32.xlu0 %v2457, 8
      %v2555 = vpop.permute.xlu0 %2554
      %2556 = vrot.lane.b32.xlu0 %v2458, 8
      %v2557 = vpop.permute.xlu0 %2556
      %2558 = vrot.lane.b32.xlu0 %v2459, 8
      %v2559 = vpop.permute.xlu0 %2558
      %2560 = vrot.lane.b32.xlu0 %v2460, 8
      %v2561 = vpop.permute.xlu0 %2560
      %2562 = vrot.lane.b32.xlu0 %v2461, 8
      %v2563 = vpop.permute.xlu0 %2562
      %2564 = vrot.lane.b32.xlu0 %v2462, 8
      %v2565 = vpop.permute.xlu0 %2564
      %2566 = vrot.lane.b32.xlu0 %v2463, 8
      %v2567 = vpop.permute.xlu0 %2566
      %2568 = vrot.lane.b32.xlu0 %v2464, 8
      %v2569 = vpop.permute.xlu0 %2568
      %2570 = vrot.lane.b32.xlu0 %v2465, 8
      %v2571 = vpop.permute.xlu0 %2570
      %2572 = vrot.lane.b32.xlu0 %v2466, 8
      %v2573 = vpop.permute.xlu0 %2572
      %2574 = vrot.lane.b32.xlu0 %v2467, 8
      %v2575 = vpop.permute.xlu0 %2574
      %2612 = vst.msk [vmem:[#allocation3] sm:$0xff] %vm855, %v2505
      %2613 = vst.msk [vmem:[#allocation3 + $0x8] sm:$0xff] %vm855, %v2507
      %2614 = vst.msk [vmem:[#allocation3 + $0x10] sm:$0xff] %vm855, %v2509
      %2615 = vst.msk [vmem:[#allocation3 + $0x18] sm:$0xff] %vm855, %v2511
      %2616 = vst.msk [vmem:[#allocation3 + $0x20] sm:$0xff] %vm855, %v2513
      %2617 = vst.msk [vmem:[#allocation3 + $0x28] sm:$0xff] %vm855, %v2515
      %2618 = vst.msk [vmem:[#allocation3 + $0x30] sm:$0xff] %vm855, %v2517
      %2619 = vst.msk [vmem:[#allocation3 + $0x38] sm:$0xff] %vm855, %v2519
      %2620 = vst.msk [vmem:[#allocation3 + $0x40] sm:$0xff] %vm855, %v2521
      %2621 = vst.msk [vmem:[#allocation3 + $0x48] sm:$0xff] %vm855, %v2523
      %2622 = vst.msk [vmem:[#allocation3 + $0x50] sm:$0xff] %vm855, %v2525
      %2623 = vst.msk [vmem:[#allocation3 + $0x58] sm:$0xff] %vm855, %v2527
      %2624 = vst.msk [vmem:[#allocation3 + $0x60] sm:$0xff] %vm855, %v2529
      %2625 = vst.msk [vmem:[#allocation3 + $0x68] sm:$0xff] %vm855, %v2531
      %2626 = vst.msk [vmem:[#allocation3 + $0x70] sm:$0xff] %vm855, %v2533
      %2627 = vst.msk [vmem:[#allocation3 + $0x78] sm:$0xff] %vm855, %v2535
      %2628 = vst.msk [vmem:[#allocation3 + $0x80] sm:$0xff] %vm855, %v2537
      %2629 = vst.msk [vmem:[#allocation3 + $0x88] sm:$0xff] %vm855, %v2539
      %2630 = vst.msk [vmem:[#allocation3 + $0x90] sm:$0xff] %vm855, %v2541
      %2631 = vst.msk [vmem:[#allocation3 + $0x98] sm:$0xff] %vm855, %v2543
      %2632 = vst.msk [vmem:[#allocation3 + $0xa0] sm:$0xff] %vm855, %v2545
      %2633 = vst.msk [vmem:[#allocation3 + $0xa8] sm:$0xff] %vm855, %v2547
      %2634 = vst.msk [vmem:[#allocation3 + $0xb0] sm:$0xff] %vm855, %v2549
      %2635 = vst.msk [vmem:[#allocation3 + $0xb8] sm:$0xff] %vm855, %v2551
      %2636 = vst.msk [vmem:[#allocation3 + $0xc0] sm:$0xff] %vm855, %v2553
      %2637 = vst.msk [vmem:[#allocation3 + $0xc8] sm:$0xff] %vm855, %v2555
      %2638 = vst.msk [vmem:[#allocation3 + $0xd0] sm:$0xff] %vm855, %v2557
      %2639 = vst.msk [vmem:[#allocation3 + $0xd8] sm:$0xff] %vm855, %v2559
      %2640 = vst.msk [vmem:[#allocation3 + $0xe0] sm:$0xff] %vm855, %v2561
      %2641 = vst.msk [vmem:[#allocation3 + $0xe8] sm:$0xff] %vm855, %v2563
      %2642 = vst.msk [vmem:[#allocation3 + $0xf0] sm:$0xff] %vm855, %v2565
      %2643 = vst.msk [vmem:[#allocation3 + $0xf8] sm:$0xff] %vm855, %v2567
      %2644 = vst.msk [vmem:[#allocation3 + $0x100] sm:$0xff] %vm855, %v2569
      %2645 = vst.msk [vmem:[#allocation3 + $0x108] sm:$0xff] %vm855, %v2571
      %2646 = vst.msk [vmem:[#allocation3 + $0x110] sm:$0xff] %vm855, %v2573
      %2647 = vst.msk [vmem:[#allocation3 + $0x118] sm:$0xff] %vm855, %v2575
      %v2648 = vld [vmem:[#allocation3] sm:$0xff]
      %v2649 = vld [vmem:[#allocation3 + $0x8] sm:$0xff]
      %v2650 = vld [vmem:[#allocation3 + $0x10] sm:$0xff]
      %v2651 = vld [vmem:[#allocation3 + $0x18] sm:$0xff]
      %v2652 = vld [vmem:[#allocation3 + $0x20] sm:$0xff]
      %v2653 = vld [vmem:[#allocation3 + $0x28] sm:$0xff]
      %v2654 = vld [vmem:[#allocation3 + $0x30] sm:$0xff]
      %v2655 = vld [vmem:[#allocation3 + $0x38] sm:$0xff]
      %v2656 = vld [vmem:[#allocation3 + $0x40] sm:$0xff]
      %v2657 = vld [vmem:[#allocation3 + $0x48] sm:$0xff]
      %v2658 = vld [vmem:[#allocation3 + $0x50] sm:$0xff]
      %v2659 = vld [vmem:[#allocation3 + $0x58] sm:$0xff]
      %v2660 = vld [vmem:[#allocation3 + $0x60] sm:$0xff]
      %v2661 = vld [vmem:[#allocation3 + $0x68] sm:$0xff]
      %v2662 = vld [vmem:[#allocation3 + $0x70] sm:$0xff]
      %v2663 = vld [vmem:[#allocation3 + $0x78] sm:$0xff]
      %v2664 = vld [vmem:[#allocation3 + $0x80] sm:$0xff]
      %v2665 = vld [vmem:[#allocation3 + $0x88] sm:$0xff]
      %v2666 = vld [vmem:[#allocation3 + $0x90] sm:$0xff]
      %v2667 = vld [vmem:[#allocation3 + $0x98] sm:$0xff]
      %v2668 = vld [vmem:[#allocation3 + $0xa0] sm:$0xff]
      %v2669 = vld [vmem:[#allocation3 + $0xa8] sm:$0xff]
      %v2670 = vld [vmem:[#allocation3 + $0xb0] sm:$0xff]
      %v2671 = vld [vmem:[#allocation3 + $0xb8] sm:$0xff]
      %v2672 = vld [vmem:[#allocation3 + $0xc0] sm:$0xff]
      %v2673 = vld [vmem:[#allocation3 + $0xc8] sm:$0xff]
      %v2674 = vld [vmem:[#allocation3 + $0xd0] sm:$0xff]
      %v2675 = vld [vmem:[#allocation3 + $0xd8] sm:$0xff]
      %v2676 = vld [vmem:[#allocation3 + $0xe0] sm:$0xff]
      %v2677 = vld [vmem:[#allocation3 + $0xe8] sm:$0xff]
      %v2678 = vld [vmem:[#allocation3 + $0xf0] sm:$0xff]
      %v2679 = vld [vmem:[#allocation3 + $0xf8] sm:$0xff]
      %v2680 = vld [vmem:[%s2] sm:$0xff]
      %v2681 = vld [vmem:[%s2 + $0x8] sm:$0xf]
      %v2682 = vld [vmem:[%s926] sm:$0xff]
      %v2683 = vld [vmem:[%s926 + $0x8] sm:$0xff]
      %v2684 = vld [vmem:[%s926 + $0x10] sm:$0xff]
      %v2685 = vld [vmem:[%s926 + $0x18] sm:$0xff]
      %v2686 = vld [vmem:[%s926 + $0x20] sm:$0xff]
      %v2687 = vld [vmem:[%s926 + $0x28] sm:$0xff]
      %v2688 = vld [vmem:[%s926 + $0x30] sm:$0xff]
      %v2689 = vld [vmem:[%s926 + $0x38] sm:$0xff]
      %v2690 = vld [vmem:[%s926 + $0x40] sm:$0xff]
      %v2691 = vld [vmem:[%s926 + $0x48] sm:$0xff]
      %v2692 = vld [vmem:[%s926 + $0x50] sm:$0xff]
      %v2693 = vld [vmem:[%s926 + $0x58] sm:$0xff]
      %v2694 = vld [vmem:[%s926 + $0x60] sm:$0xff]
      %v2695 = vld [vmem:[%s926 + $0x68] sm:$0xff]
      %v2696 = vld [vmem:[%s926 + $0x70] sm:$0xff]
      %v2697 = vld [vmem:[%s926 + $0x78] sm:$0xff]
      %v2698 = vld [vmem:[%s926 + $0x80] sm:$0xff]
      %v2699 = vld [vmem:[%s926 + $0x88] sm:$0xff]
      %v2700 = vld [vmem:[%s926 + $0x90] sm:$0xff]
      %v2701 = vld [vmem:[%s926 + $0x98] sm:$0xff]
      %v2702 = vld [vmem:[%s926 + $0xa0] sm:$0xff]
      %v2703 = vld [vmem:[%s926 + $0xa8] sm:$0xff]
      %v2704 = vld [vmem:[%s926 + $0xb0] sm:$0xff]
      %v2705 = vld [vmem:[%s926 + $0xb8] sm:$0xff]
      %v2706 = vld [vmem:[%s926 + $0xc0] sm:$0xff]
      %v2707 = vld [vmem:[%s926 + $0xc8] sm:$0xff]
      %v2708 = vld [vmem:[%s926 + $0xd0] sm:$0xff]
      %v2709 = vld [vmem:[%s926 + $0xd8] sm:$0xff]
      %v2710 = vld [vmem:[%s926 + $0xe0] sm:$0xff]
      %v2711 = vld [vmem:[%s926 + $0xe8] sm:$0xff]
      %v2712 = vld [vmem:[%s926 + $0xf0] sm:$0xff]
      %v2713 = vld [vmem:[%s926 + $0xf8] sm:$0xff]
      %v2714 = vld [vmem:[%s2 + $0xc] sm:$0xff]
      %v2715 = vld [vmem:[%s2 + $0x14] sm:$0xf]
      %v2717 = vsel %vm961, %v2682, 0
      %v2720 = vsel %vm961, %v2683, 0
      %v2723 = vsel %vm961, %v2684, 0
      %v2726 = vsel %vm961, %v2685, 0
      %v2729 = vsel %vm961, %v2686, 0
      %v2732 = vsel %vm961, %v2687, 0
      %v2735 = vsel %vm961, %v2688, 0
      %v2738 = vsel %vm961, %v2689, 0
      %v2741 = vsel %vm961, %v2690, 0
      %v2744 = vsel %vm961, %v2691, 0
      %v2747 = vsel %vm961, %v2692, 0
      %v2750 = vsel %vm961, %v2693, 0
      %v2753 = vsel %vm961, %v2694, 0
      %v2756 = vsel %vm961, %v2695, 0
      %v2759 = vsel %vm961, %v2696, 0
      %v2762 = vsel %vm961, %v2697, 0
      %v2765 = vsel %vm961, %v2698, 0
      %v2768 = vsel %vm961, %v2699, 0
      %v2771 = vsel %vm961, %v2700, 0
      %v2774 = vsel %vm961, %v2701, 0
      %v2777 = vsel %vm961, %v2702, 0
      %v2780 = vsel %vm961, %v2703, 0
      %v2783 = vsel %vm961, %v2704, 0
      %v2786 = vsel %vm961, %v2705, 0
      %v2789 = vsel %vm961, %v2706, 0
      %v2792 = vsel %vm961, %v2707, 0
      %v2795 = vsel %vm961, %v2708, 0
      %v2798 = vsel %vm961, %v2709, 0
      %v2801 = vsel %vm961, %v2710, 0
      %v2804 = vsel %vm961, %v2711, 0
      %v2807 = vsel %vm961, %v2712, 0
      %v2810 = vsel %vm961, %v2713, 0
      %v2813 = vsel %vm1058, %v2715, 0
      %2815 = vmatprep.subr.mxu0 0.0
      %2816 = vmatpush1.msra.mxu0 %v2714
      %2817 = vmatprep.subr.mxu0 0.0
      %2818 = vmatpush1.msra.mxu0 %v2813
      %2819 = vmatprep.subr.mxu0 0.0
      %2820 = vmatpush1.msra.mxu0 0.0
      %2821 = vmatprep.subr.mxu0 0.0
      %2822 = vmatpush1.msra.mxu0 0.0
      %2823 = vmatprep.subr.mxu0 0.0
      %2824 = vmatpush1.msra.mxu0 0.0
      %2825 = vmatprep.subr.mxu0 0.0
      %2826 = vmatpush1.msra.mxu0 0.0
      %2827 = vmatprep.subr.mxu0 0.0
      %2828 = vmatpush1.msra.mxu0 0.0
      %2829 = vmatprep.subr.mxu0 0.0
      %2830 = vmatpush1.msra.mxu0 0.0
      %2831 = vmatprep.subr.mxu0 0.0
      %2832 = vmatpush1.msra.mxu0 0.0
      %2833 = vmatprep.subr.mxu0 0.0
      %2834 = vmatpush1.msra.mxu0 0.0
      %2835 = vmatprep.subr.mxu0 0.0
      %2836 = vmatpush1.msra.mxu0 0.0
      %2837 = vmatprep.subr.mxu0 0.0
      %2838 = vmatpush1.msra.mxu0 0.0
      %2839 = vmatprep.subr.mxu0 0.0
      %2840 = vmatpush1.msra.mxu0 0.0
      %2841 = vmatprep.subr.mxu0 0.0
      %2842 = vmatpush1.msra.mxu0 0.0
      %2843 = vmatprep.subr.mxu0 0.0
      %2844 = vmatpush1.msra.mxu0 0.0
      %2845 = vmatprep.subr.mxu0 0.0
      %2846 = vmatpush1.msra.mxu0 0.0
      %2847 = vmatprep.subr.mxu0 0.0
      %2848 = vmatpush1.msra.mxu0 0.0
      %2849 = vmatprep.subr.mxu0 0.0
      %2850 = vmatpush1.msra.mxu0 0.0
      %2851 = vmatprep.subr.mxu0 0.0
      %2852 = vmatpush1.msra.mxu0 0.0
      %2853 = vmatprep.subr.mxu0 0.0
      %2854 = vmatpush1.msra.mxu0 0.0
      %2855 = vmatprep.subr.mxu0 0.0
      %2856 = vmatpush1.msra.mxu0 0.0
      %2857 = vmatprep.subr.mxu0 0.0
      %2858 = vmatpush1.msra.mxu0 0.0
      %2859 = vmatprep.subr.mxu0 0.0
      %2860 = vmatpush1.msra.mxu0 0.0
      %2861 = vmatprep.subr.mxu0 0.0
      %2862 = vmatpush1.msra.mxu0 0.0
      %2863 = vmatprep.subr.mxu0 0.0
      %2864 = vmatpush1.msra.mxu0 0.0
      %2865 = vmatprep.subr.mxu0 0.0
      %2866 = vmatpush1.msra.mxu0 0.0
      %2867 = vmatprep.subr.mxu0 0.0
      %2868 = vmatpush1.msra.mxu0 0.0
      %2869 = vmatprep.subr.mxu0 0.0
      %2870 = vmatpush1.msra.mxu0 0.0
      %2871 = vmatprep.subr.mxu0 0.0
      %2872 = vmatpush1.msra.mxu0 0.0
      %2873 = vmatprep.subr.mxu0 0.0
      %2874 = vmatpush1.msra.mxu0 0.0
      %2875 = vmatprep.subr.mxu0 0.0
      %2876 = vmatpush1.msra.mxu0 0.0
      %2877 = vmatprep.subr.mxu0 0.0
      %2878 = vmatpush1.msra.mxu0 0.0
      %2879 = vmatprep.mubr.f32.mxu0 0.0
      %2880 = vmatmul.mubr.f32.gmra.mrb[0].mxu0 %v2717
      %v2881 = vpop.f32.mrb[0].mxu0
      %v2882 = vadd.f32 0.0, %v2881
      %v2883 = vpop.f32.mrb[0].mxu0
      %2884 = vmatprep.mubr.f32.mxu0 0.0
      %2885 = vmatmul.mubr.f32.gmra.mrb[0].mxu0 %v2720
      %v2886 = vpop.f32.mrb[0].mxu0
      %v2887 = vadd.f32 0.0, %v2886
      %v2888 = vpop.f32.mrb[0].mxu0
      %2889 = vmatprep.mubr.f32.mxu0 0.0
      %2890 = vmatmul.mubr.f32.gmra.mrb[0].mxu0 %v2723
      %v2891 = vpop.f32.mrb[0].mxu0
      %v2892 = vadd.f32 0.0, %v2891
      %v2893 = vpop.f32.mrb[0].mxu0
      %2894 = vmatprep.mubr.f32.mxu0 0.0
      %2895 = vmatmul.mubr.f32.gmra.mrb[0].mxu0 %v2726
      %v2896 = vpop.f32.mrb[0].mxu0
      %v2897 = vadd.f32 0.0, %v2896
      %v2898 = vpop.f32.mrb[0].mxu0
      %2899 = vmatprep.mubr.f32.mxu0 0.0
      %2900 = vmatmul.mubr.f32.gmra.mrb[0].mxu0 %v2729
      %v2901 = vpop.f32.mrb[0].mxu0
      %v2902 = vadd.f32 0.0, %v2901
      %v2903 = vpop.f32.mrb[0].mxu0
      %2904 = vmatprep.mubr.f32.mxu0 0.0
      %2905 = vmatmul.mubr.f32.gmra.mrb[0].mxu0 %v2732
      %v2906 = vpop.f32.mrb[0].mxu0
      %v2907 = vadd.f32 0.0, %v2906
      %v2908 = vpop.f32.mrb[0].mxu0
      %2909 = vmatprep.mubr.f32.mxu0 0.0
      %2910 = vmatmul.mubr.f32.gmra.mrb[0].mxu0 %v2735
      %v2911 = vpop.f32.mrb[0].mxu0
      %v2912 = vadd.f32 0.0, %v2911
      %v2913 = vpop.f32.mrb[0].mxu0
      %2914 = vmatprep.mubr.f32.mxu0 0.0
      %2915 = vmatmul.mubr.f32.gmra.mrb[0].mxu0 %v2738
      %v2916 = vpop.f32.mrb[0].mxu0
      %v2917 = vadd.f32 0.0, %v2916
      %v2918 = vpop.f32.mrb[0].mxu0
      %2919 = vmatprep.mubr.f32.mxu0 0.0
      %2920 = vmatmul.mubr.f32.gmra.mrb[0].mxu0 %v2741
      %v2921 = vpop.f32.mrb[0].mxu0
      %v2922 = vadd.f32 0.0, %v2921
      %v2923 = vpop.f32.mrb[0].mxu0
      %2924 = vmatprep.mubr.f32.mxu0 0.0
      %2925 = vmatmul.mubr.f32.gmra.mrb[0].mxu0 %v2744
      %v2926 = vpop.f32.mrb[0].mxu0
      %v2927 = vadd.f32 0.0, %v2926
      %v2928 = vpop.f32.mrb[0].mxu0
      %2929 = vmatprep.mubr.f32.mxu0 0.0
      %2930 = vmatmul.mubr.f32.gmra.mrb[0].mxu0 %v2747
      %v2931 = vpop.f32.mrb[0].mxu0
      %v2932 = vadd.f32 0.0, %v2931
      %v2933 = vpop.f32.mrb[0].mxu0
      %2934 = vmatprep.mubr.f32.mxu0 0.0
      %2935 = vmatmul.mubr.f32.gmra.mrb[0].mxu0 %v2750
      %v2936 = vpop.f32.mrb[0].mxu0
      %v2937 = vadd.f32 0.0, %v2936
      %v2938 = vpop.f32.mrb[0].mxu0
      %2939 = vmatprep.mubr.f32.mxu0 0.0
      %2940 = vmatmul.mubr.f32.gmra.mrb[0].mxu0 %v2753
      %v2941 = vpop.f32.mrb[0].mxu0
      %v2942 = vadd.f32 0.0, %v2941
      %v2943 = vpop.f32.mrb[0].mxu0
      %2944 = vmatprep.mubr.f32.mxu0 0.0
      %2945 = vmatmul.mubr.f32.gmra.mrb[0].mxu0 %v2756
      %v2946 = vpop.f32.mrb[0].mxu0
      %v2947 = vadd.f32 0.0, %v2946
      %v2948 = vpop.f32.mrb[0].mxu0
      %2949 = vmatprep.mubr.f32.mxu0 0.0
      %2950 = vmatmul.mubr.f32.gmra.mrb[0].mxu0 %v2759
      %v2951 = vpop.f32.mrb[0].mxu0
      %v2952 = vadd.f32 0.0, %v2951
      %v2953 = vpop.f32.mrb[0].mxu0
      %2954 = vmatprep.mubr.f32.mxu0 0.0
      %2955 = vmatmul.mubr.f32.gmra.mrb[0].mxu0 %v2762
      %v2956 = vpop.f32.mrb[0].mxu0
      %v2957 = vadd.f32 0.0, %v2956
      %v2958 = vpop.f32.mrb[0].mxu0
      %2959 = vmatprep.mubr.f32.mxu0 0.0
      %2960 = vmatmul.mubr.f32.gmra.mrb[0].mxu0 %v2765
      %v2961 = vpop.f32.mrb[0].mxu0
      %v2962 = vadd.f32 0.0, %v2961
      %v2963 = vpop.f32.mrb[0].mxu0
      %2964 = vmatprep.mubr.f32.mxu0 0.0
      %2965 = vmatmul.mubr.f32.gmra.mrb[0].mxu0 %v2768
      %v2966 = vpop.f32.mrb[0].mxu0
      %v2967 = vadd.f32 0.0, %v2966
      %v2968 = vpop.f32.mrb[0].mxu0
      %2969 = vmatprep.mubr.f32.mxu0 0.0
      %2970 = vmatmul.mubr.f32.gmra.mrb[0].mxu0 %v2771
      %v2971 = vpop.f32.mrb[0].mxu0
      %v2972 = vadd.f32 0.0, %v2971
      %v2973 = vpop.f32.mrb[0].mxu0
      %2974 = vmatprep.mubr.f32.mxu0 0.0
      %2975 = vmatmul.mubr.f32.gmra.mrb[0].mxu0 %v2774
      %v2976 = vpop.f32.mrb[0].mxu0
      %v2977 = vadd.f32 0.0, %v2976
      %v2978 = vpop.f32.mrb[0].mxu0
      %2979 = vmatprep.mubr.f32.mxu0 0.0
      %2980 = vmatmul.mubr.f32.gmra.mrb[0].mxu0 %v2777
      %v2981 = vpop.f32.mrb[0].mxu0
      %v2982 = vadd.f32 0.0, %v2981
      %v2983 = vpop.f32.mrb[0].mxu0
      %2984 = vmatprep.mubr.f32.mxu0 0.0
      %2985 = vmatmul.mubr.f32.gmra.mrb[0].mxu0 %v2780
      %v2986 = vpop.f32.mrb[0].mxu0
      %v2987 = vadd.f32 0.0, %v2986
      %v2988 = vpop.f32.mrb[0].mxu0
      %2989 = vmatprep.mubr.f32.mxu0 0.0
      %2990 = vmatmul.mubr.f32.gmra.mrb[0].mxu0 %v2783
      %v2991 = vpop.f32.mrb[0].mxu0
      %v2992 = vadd.f32 0.0, %v2991
      %v2993 = vpop.f32.mrb[0].mxu0
      %2994 = vmatprep.mubr.f32.mxu0 0.0
      %2995 = vmatmul.mubr.f32.gmra.mrb[0].mxu0 %v2786
      %v2996 = vpop.f32.mrb[0].mxu0
      %v2997 = vadd.f32 0.0, %v2996
      %v2998 = vpop.f32.mrb[0].mxu0
      %2999 = vmatprep.mubr.f32.mxu0 0.0
      %3000 = vmatmul.mubr.f32.gmra.mrb[0].mxu0 %v2789
      %v3001 = vpop.f32.mrb[0].mxu0
      %v3002 = vadd.f32 0.0, %v3001
      %v3003 = vpop.f32.mrb[0].mxu0
      %3004 = vmatprep.mubr.f32.mxu0 0.0
      %3005 = vmatmul.mubr.f32.gmra.mrb[0].mxu0 %v2792
      %v3006 = vpop.f32.mrb[0].mxu0
      %v3007 = vadd.f32 0.0, %v3006
      %v3008 = vpop.f32.mrb[0].mxu0
      %3009 = vmatprep.mubr.f32.mxu0 0.0
      %3010 = vmatmul.mubr.f32.gmra.mrb[0].mxu0 %v2795
      %v3011 = vpop.f32.mrb[0].mxu0
      %v3012 = vadd.f32 0.0, %v3011
      %v3013 = vpop.f32.mrb[0].mxu0
      %3014 = vmatprep.mubr.f32.mxu0 0.0
      %3015 = vmatmul.mubr.f32.gmra.mrb[0].mxu0 %v2798
      %v3016 = vpop.f32.mrb[0].mxu0
      %v3017 = vadd.f32 0.0, %v3016
      %v3018 = vpop.f32.mrb[0].mxu0
      %3019 = vmatprep.mubr.f32.mxu0 0.0
      %3020 = vmatmul.mubr.f32.gmra.mrb[0].mxu0 %v2801
      %v3021 = vpop.f32.mrb[0].mxu0
      %v3022 = vadd.f32 0.0, %v3021
      %v3023 = vpop.f32.mrb[0].mxu0
      %3024 = vmatprep.mubr.f32.mxu0 0.0
      %3025 = vmatmul.mubr.f32.gmra.mrb[0].mxu0 %v2804
      %v3026 = vpop.f32.mrb[0].mxu0
      %v3027 = vadd.f32 0.0, %v3026
      %v3028 = vpop.f32.mrb[0].mxu0
      %3029 = vmatprep.mubr.f32.mxu0 0.0
      %3030 = vmatmul.mubr.f32.gmra.mrb[0].mxu0 %v2807
      %v3031 = vpop.f32.mrb[0].mxu0
      %v3032 = vadd.f32 0.0, %v3031
      %v3033 = vpop.f32.mrb[0].mxu0
      %3034 = vmatprep.mubr.f32.mxu0 0.0
      %3035 = vmatmul.mubr.f32.gmra.mrb[0].mxu0 %v2810
      %v3036 = vpop.f32.mrb[0].mxu0
      %v3037 = vadd.f32 0.0, %v3036
      %v3038 = vpop.f32.mrb[0].mxu0
      %3039 = vdwg.mxu0
      %v3041 = vsel %vm961, %v2648, 0
      %v3044 = vsel %vm961, %v2649, 0
      %v3047 = vsel %vm961, %v2650, 0
      %v3050 = vsel %vm961, %v2651, 0
      %v3053 = vsel %vm961, %v2652, 0
      %v3056 = vsel %vm961, %v2653, 0
      %v3059 = vsel %vm961, %v2654, 0
      %v3062 = vsel %vm961, %v2655, 0
      %v3065 = vsel %vm961, %v2656, 0
      %v3068 = vsel %vm961, %v2657, 0
      %v3071 = vsel %vm961, %v2658, 0
      %v3074 = vsel %vm961, %v2659, 0
      %v3077 = vsel %vm961, %v2660, 0
      %v3080 = vsel %vm961, %v2661, 0
      %v3083 = vsel %vm961, %v2662, 0
      %v3086 = vsel %vm961, %v2663, 0
      %v3089 = vsel %vm961, %v2664, 0
      %v3092 = vsel %vm961, %v2665, 0
      %v3095 = vsel %vm961, %v2666, 0
      %v3098 = vsel %vm961, %v2667, 0
      %v3101 = vsel %vm961, %v2668, 0
      %v3104 = vsel %vm961, %v2669, 0
      %v3107 = vsel %vm961, %v2670, 0
      %v3110 = vsel %vm961, %v2671, 0
      %v3113 = vsel %vm961, %v2672, 0
      %v3116 = vsel %vm961, %v2673, 0
      %v3119 = vsel %vm961, %v2674, 0
      %v3122 = vsel %vm961, %v2675, 0
      %v3125 = vsel %vm961, %v2676, 0
      %v3128 = vsel %vm961, %v2677, 0
      %v3131 = vsel %vm961, %v2678, 0
      %v3134 = vsel %vm961, %v2679, 0
      %v3137 = vsel %vm1058, %v2681, 0
      %3139 = vmatprep.subr.mxu0 0.0
      %3140 = vmatpush1.msra.mxu0 %v2680
      %3141 = vmatprep.subr.mxu0 0.0
      %3142 = vmatpush1.msra.mxu0 %v3137
      %3143 = vmatprep.subr.mxu0 0.0
      %3144 = vmatpush1.msra.mxu0 0.0
      %3145 = vmatprep.subr.mxu0 0.0
      %3146 = vmatpush1.msra.mxu0 0.0
      %3147 = vmatprep.subr.mxu0 0.0
      %3148 = vmatpush1.msra.mxu0 0.0
      %3149 = vmatprep.subr.mxu0 0.0
      %3150 = vmatpush1.msra.mxu0 0.0
      %3151 = vmatprep.subr.mxu0 0.0
      %3152 = vmatpush1.msra.mxu0 0.0
      %3153 = vmatprep.subr.mxu0 0.0
      %3154 = vmatpush1.msra.mxu0 0.0
      %3155 = vmatprep.subr.mxu0 0.0
      %3156 = vmatpush1.msra.mxu0 0.0
      %3157 = vmatprep.subr.mxu0 0.0
      %3158 = vmatpush1.msra.mxu0 0.0
      %3159 = vmatprep.subr.mxu0 0.0
      %3160 = vmatpush1.msra.mxu0 0.0
      %3161 = vmatprep.subr.mxu0 0.0
      %3162 = vmatpush1.msra.mxu0 0.0
      %3163 = vmatprep.subr.mxu0 0.0
      %3164 = vmatpush1.msra.mxu0 0.0
      %3165 = vmatprep.subr.mxu0 0.0
      %3166 = vmatpush1.msra.mxu0 0.0
      %3167 = vmatprep.subr.mxu0 0.0
      %3168 = vmatpush1.msra.mxu0 0.0
      %3169 = vmatprep.subr.mxu0 0.0
      %3170 = vmatpush1.msra.mxu0 0.0
      %3171 = vmatprep.subr.mxu0 0.0
      %3172 = vmatpush1.msra.mxu0 0.0
      %3173 = vmatprep.subr.mxu0 0.0
      %3174 = vmatpush1.msra.mxu0 0.0
      %3175 = vmatprep.subr.mxu0 0.0
      %3176 = vmatpush1.msra.mxu0 0.0
      %3177 = vmatprep.subr.mxu0 0.0
      %3178 = vmatpush1.msra.mxu0 0.0
      %3179 = vmatprep.subr.mxu0 0.0
      %3180 = vmatpush1.msra.mxu0 0.0
      %3181 = vmatprep.subr.mxu0 0.0
      %3182 = vmatpush1.msra.mxu0 0.0
      %3183 = vmatprep.subr.mxu0 0.0
      %3184 = vmatpush1.msra.mxu0 0.0
      %3185 = vmatprep.subr.mxu0 0.0
      %3186 = vmatpush1.msra.mxu0 0.0
      %3187 = vmatprep.subr.mxu0 0.0
      %3188 = vmatpush1.msra.mxu0 0.0
      %3189 = vmatprep.subr.mxu0 0.0
      %3190 = vmatpush1.msra.mxu0 0.0
      %3191 = vmatprep.subr.mxu0 0.0
      %3192 = vmatpush1.msra.mxu0 0.0
      %3193 = vmatprep.subr.mxu0 0.0
      %3194 = vmatpush1.msra.mxu0 0.0
      %3195 = vmatprep.subr.mxu0 0.0
      %3196 = vmatpush1.msra.mxu0 0.0
      %3197 = vmatprep.subr.mxu0 0.0
      %3198 = vmatpush1.msra.mxu0 0.0
      %3199 = vmatprep.subr.mxu0 0.0
      %3200 = vmatpush1.msra.mxu0 0.0
      %3201 = vmatprep.subr.mxu0 0.0
      %3202 = vmatpush1.msra.mxu0 0.0
      %3203 = vmatprep.mubr.f32.mxu0 0.0
      %3204 = vmatmul.mubr.f32.gmra.mrb[0].mxu0 %v3041
      %v3205 = vpop.f32.mrb[0].mxu0
      %v3206 = vadd.f32 %v2882, %v3205
      %v3207 = vpop.f32.mrb[0].mxu0
      %3208 = vmatprep.mubr.f32.mxu0 0.0
      %3209 = vmatmul.mubr.f32.gmra.mrb[0].mxu0 %v3044
      %v3210 = vpop.f32.mrb[0].mxu0
      %v3211 = vadd.f32 %v2887, %v3210
      %v3212 = vpop.f32.mrb[0].mxu0
      %3213 = vmatprep.mubr.f32.mxu0 0.0
      %3214 = vmatmul.mubr.f32.gmra.mrb[0].mxu0 %v3047
      %v3215 = vpop.f32.mrb[0].mxu0
      %v3216 = vadd.f32 %v2892, %v3215
      %v3217 = vpop.f32.mrb[0].mxu0
      %3218 = vmatprep.mubr.f32.mxu0 0.0
      %3219 = vmatmul.mubr.f32.gmra.mrb[0].mxu0 %v3050
      %v3220 = vpop.f32.mrb[0].mxu0
      %v3221 = vadd.f32 %v2897, %v3220
      %v3222 = vpop.f32.mrb[0].mxu0
      %3223 = vmatprep.mubr.f32.mxu0 0.0
      %3224 = vmatmul.mubr.f32.gmra.mrb[0].mxu0 %v3053
      %v3225 = vpop.f32.mrb[0].mxu0
      %v3226 = vadd.f32 %v2902, %v3225
      %v3227 = vpop.f32.mrb[0].mxu0
      %3228 = vmatprep.mubr.f32.mxu0 0.0
      %3229 = vmatmul.mubr.f32.gmra.mrb[0].mxu0 %v3056
      %v3230 = vpop.f32.mrb[0].mxu0
      %v3231 = vadd.f32 %v2907, %v3230
      %v3232 = vpop.f32.mrb[0].mxu0
      %3233 = vmatprep.mubr.f32.mxu0 0.0
      %3234 = vmatmul.mubr.f32.gmra.mrb[0].mxu0 %v3059
      %v3235 = vpop.f32.mrb[0].mxu0
      %v3236 = vadd.f32 %v2912, %v3235
      %v3237 = vpop.f32.mrb[0].mxu0
      %3238 = vmatprep.mubr.f32.mxu0 0.0
      %3239 = vmatmul.mubr.f32.gmra.mrb[0].mxu0 %v3062
      %v3240 = vpop.f32.mrb[0].mxu0
      %v3241 = vadd.f32 %v2917, %v3240
      %v3242 = vpop.f32.mrb[0].mxu0
      %3243 = vmatprep.mubr.f32.mxu0 0.0
      %3244 = vmatmul.mubr.f32.gmra.mrb[0].mxu0 %v3065
      %v3245 = vpop.f32.mrb[0].mxu0
      %v3246 = vadd.f32 %v2922, %v3245
      %v3247 = vpop.f32.mrb[0].mxu0
      %3248 = vmatprep.mubr.f32.mxu0 0.0
      %3249 = vmatmul.mubr.f32.gmra.mrb[0].mxu0 %v3068
      %v3250 = vpop.f32.mrb[0].mxu0
      %v3251 = vadd.f32 %v2927, %v3250
      %v3252 = vpop.f32.mrb[0].mxu0
      %3253 = vmatprep.mubr.f32.mxu0 0.0
      %3254 = vmatmul.mubr.f32.gmra.mrb[0].mxu0 %v3071
      %v3255 = vpop.f32.mrb[0].mxu0
      %v3256 = vadd.f32 %v2932, %v3255
      %v3257 = vpop.f32.mrb[0].mxu0
      %3258 = vmatprep.mubr.f32.mxu0 0.0
      %3259 = vmatmul.mubr.f32.gmra.mrb[0].mxu0 %v3074
      %v3260 = vpop.f32.mrb[0].mxu0
      %v3261 = vadd.f32 %v2937, %v3260
      %v3262 = vpop.f32.mrb[0].mxu0
      %3263 = vmatprep.mubr.f32.mxu0 0.0
      %3264 = vmatmul.mubr.f32.gmra.mrb[0].mxu0 %v3077
      %v3265 = vpop.f32.mrb[0].mxu0
      %v3266 = vadd.f32 %v2942, %v3265
      %v3267 = vpop.f32.mrb[0].mxu0
      %3268 = vmatprep.mubr.f32.mxu0 0.0
      %3269 = vmatmul.mubr.f32.gmra.mrb[0].mxu0 %v3080
      %v3270 = vpop.f32.mrb[0].mxu0
      %v3271 = vadd.f32 %v2947, %v3270
      %v3272 = vpop.f32.mrb[0].mxu0
      %3273 = vmatprep.mubr.f32.mxu0 0.0
      %3274 = vmatmul.mubr.f32.gmra.mrb[0].mxu0 %v3083
      %v3275 = vpop.f32.mrb[0].mxu0
      %v3276 = vadd.f32 %v2952, %v3275
      %v3277 = vpop.f32.mrb[0].mxu0
      %3278 = vmatprep.mubr.f32.mxu0 0.0
      %3279 = vmatmul.mubr.f32.gmra.mrb[0].mxu0 %v3086
      %v3280 = vpop.f32.mrb[0].mxu0
      %v3281 = vadd.f32 %v2957, %v3280
      %v3282 = vpop.f32.mrb[0].mxu0
      %3283 = vmatprep.mubr.f32.mxu0 0.0
      %3284 = vmatmul.mubr.f32.gmra.mrb[0].mxu0 %v3089
      %v3285 = vpop.f32.mrb[0].mxu0
      %v3286 = vadd.f32 %v2962, %v3285
      %v3287 = vpop.f32.mrb[0].mxu0
      %3288 = vmatprep.mubr.f32.mxu0 0.0
      %3289 = vmatmul.mubr.f32.gmra.mrb[0].mxu0 %v3092
      %v3290 = vpop.f32.mrb[0].mxu0
      %v3291 = vadd.f32 %v2967, %v3290
      %v3292 = vpop.f32.mrb[0].mxu0
      %3293 = vmatprep.mubr.f32.mxu0 0.0
      %3294 = vmatmul.mubr.f32.gmra.mrb[0].mxu0 %v3095
      %v3295 = vpop.f32.mrb[0].mxu0
      %v3296 = vadd.f32 %v2972, %v3295
      %v3297 = vpop.f32.mrb[0].mxu0
      %3298 = vmatprep.mubr.f32.mxu0 0.0
      %3299 = vmatmul.mubr.f32.gmra.mrb[0].mxu0 %v3098
      %v3300 = vpop.f32.mrb[0].mxu0
      %v3301 = vadd.f32 %v2977, %v3300
      %v3302 = vpop.f32.mrb[0].mxu0
      %3303 = vmatprep.mubr.f32.mxu0 0.0
      %3304 = vmatmul.mubr.f32.gmra.mrb[0].mxu0 %v3101
      %v3305 = vpop.f32.mrb[0].mxu0
      %v3306 = vadd.f32 %v2982, %v3305
      %v3307 = vpop.f32.mrb[0].mxu0
      %3308 = vmatprep.mubr.f32.mxu0 0.0
      %3309 = vmatmul.mubr.f32.gmra.mrb[0].mxu0 %v3104
      %v3310 = vpop.f32.mrb[0].mxu0
      %v3311 = vadd.f32 %v2987, %v3310
      %v3312 = vpop.f32.mrb[0].mxu0
      %3313 = vmatprep.mubr.f32.mxu0 0.0
      %3314 = vmatmul.mubr.f32.gmra.mrb[0].mxu0 %v3107
      %v3315 = vpop.f32.mrb[0].mxu0
      %v3316 = vadd.f32 %v2992, %v3315
      %v3317 = vpop.f32.mrb[0].mxu0
      %3318 = vmatprep.mubr.f32.mxu0 0.0
      %3319 = vmatmul.mubr.f32.gmra.mrb[0].mxu0 %v3110
      %v3320 = vpop.f32.mrb[0].mxu0
      %v3321 = vadd.f32 %v2997, %v3320
      %v3322 = vpop.f32.mrb[0].mxu0
      %3323 = vmatprep.mubr.f32.mxu0 0.0
      %3324 = vmatmul.mubr.f32.gmra.mrb[0].mxu0 %v3113
      %v3325 = vpop.f32.mrb[0].mxu0
      %v3326 = vadd.f32 %v3002, %v3325
      %v3327 = vpop.f32.mrb[0].mxu0
      %3328 = vmatprep.mubr.f32.mxu0 0.0
      %3329 = vmatmul.mubr.f32.gmra.mrb[0].mxu0 %v3116
      %v3330 = vpop.f32.mrb[0].mxu0
      %v3331 = vadd.f32 %v3007, %v3330
      %v3332 = vpop.f32.mrb[0].mxu0
      %3333 = vmatprep.mubr.f32.mxu0 0.0
      %3334 = vmatmul.mubr.f32.gmra.mrb[0].mxu0 %v3119
      %v3335 = vpop.f32.mrb[0].mxu0
      %v3336 = vadd.f32 %v3012, %v3335
      %v3337 = vpop.f32.mrb[0].mxu0
      %3338 = vmatprep.mubr.f32.mxu0 0.0
      %3339 = vmatmul.mubr.f32.gmra.mrb[0].mxu0 %v3122
      %v3340 = vpop.f32.mrb[0].mxu0
      %v3341 = vadd.f32 %v3017, %v3340
      %v3342 = vpop.f32.mrb[0].mxu0
      %3343 = vmatprep.mubr.f32.mxu0 0.0
      %3344 = vmatmul.mubr.f32.gmra.mrb[0].mxu0 %v3125
      %v3345 = vpop.f32.mrb[0].mxu0
      %v3346 = vadd.f32 %v3022, %v3345
      %v3347 = vpop.f32.mrb[0].mxu0
      %3348 = vmatprep.mubr.f32.mxu0 0.0
      %3349 = vmatmul.mubr.f32.gmra.mrb[0].mxu0 %v3128
      %v3350 = vpop.f32.mrb[0].mxu0
      %v3351 = vadd.f32 %v3027, %v3350
      %v3352 = vpop.f32.mrb[0].mxu0
      %3353 = vmatprep.mubr.f32.mxu0 0.0
      %3354 = vmatmul.mubr.f32.gmra.mrb[0].mxu0 %v3131
      %v3355 = vpop.f32.mrb[0].mxu0
      %v3356 = vadd.f32 %v3032, %v3355
      %v3357 = vpop.f32.mrb[0].mxu0
      %3358 = vmatprep.mubr.f32.mxu0 0.0
      %3359 = vmatmul.mubr.f32.gmra.mrb[0].mxu0 %v3134
      %v3360 = vpop.f32.mrb[0].mxu0
      %v3361 = vadd.f32 %v3037, %v3360
      %v3362 = vpop.f32.mrb[0].mxu0
      %3363 = vdwg.mxu0
      %v3364 = vld [vmem:[%s1611] sm:$0xff]
      %v3365 = vld [vmem:[%s1611 + $0x8] sm:$0xff]
      %v3366 = vld [vmem:[%s1611 + $0x10] sm:$0xff]
      %v3367 = vld [vmem:[%s1611 + $0x18] sm:$0xff]
      %v3368 = vld [vmem:[%s1611 + $0x20] sm:$0xff]
      %v3369 = vld [vmem:[%s1611 + $0x28] sm:$0xff]
      %v3370 = vld [vmem:[%s1611 + $0x30] sm:$0xff]
      %v3371 = vld [vmem:[%s1611 + $0x38] sm:$0xff]
      %v3372 = vld [vmem:[%s1611 + $0x40] sm:$0xff]
      %v3373 = vld [vmem:[%s1611 + $0x48] sm:$0xff]
      %v3374 = vld [vmem:[%s1611 + $0x50] sm:$0xff]
      %v3375 = vld [vmem:[%s1611 + $0x58] sm:$0xff]
      %v3376 = vld [vmem:[%s1611 + $0x60] sm:$0xff]
      %v3377 = vld [vmem:[%s1611 + $0x68] sm:$0xff]
      %v3378 = vld [vmem:[%s1611 + $0x70] sm:$0xff]
      %v3379 = vld [vmem:[%s1611 + $0x78] sm:$0xff]
      %v3380 = vld [vmem:[%s1611 + $0x80] sm:$0xff]
      %v3381 = vld [vmem:[%s1611 + $0x88] sm:$0xff]
      %v3382 = vld [vmem:[%s1611 + $0x90] sm:$0xff]
      %v3383 = vld [vmem:[%s1611 + $0x98] sm:$0xff]
      %v3384 = vld [vmem:[%s1611 + $0xa0] sm:$0xff]
      %v3385 = vld [vmem:[%s1611 + $0xa8] sm:$0xff]
      %v3386 = vld [vmem:[%s1611 + $0xb0] sm:$0xff]
      %v3387 = vld [vmem:[%s1611 + $0xb8] sm:$0xff]
      %v3388 = vld [vmem:[%s1611 + $0xc0] sm:$0xff]
      %v3389 = vld [vmem:[%s1611 + $0xc8] sm:$0xff]
      %v3390 = vld [vmem:[%s1611 + $0xd0] sm:$0xff]
      %v3391 = vld [vmem:[%s1611 + $0xd8] sm:$0xff]
      %v3392 = vld [vmem:[%s1611 + $0xe0] sm:$0xff]
      %v3393 = vld [vmem:[%s1611 + $0xe8] sm:$0xff]
      %v3394 = vld [vmem:[%s1611 + $0xf0] sm:$0xff]
      %v3395 = vld [vmem:[%s1611 + $0xf8] sm:$0xff]
      %v3396 = vld [vmem:[%s2 + $0x18] sm:$0xff]
      %v3397 = vld [vmem:[%s2 + $0x20] sm:$0xf]
      %v3399 = vsel %vm961, %v3364, 0
      %v3402 = vsel %vm961, %v3365, 0
      %v3405 = vsel %vm961, %v3366, 0
      %v3408 = vsel %vm961, %v3367, 0
      %v3411 = vsel %vm961, %v3368, 0
      %v3414 = vsel %vm961, %v3369, 0
      %v3417 = vsel %vm961, %v3370, 0
      %v3420 = vsel %vm961, %v3371, 0
      %v3423 = vsel %vm961, %v3372, 0
      %v3426 = vsel %vm961, %v3373, 0
      %v3429 = vsel %vm961, %v3374, 0
      %v3432 = vsel %vm961, %v3375, 0
      %v3435 = vsel %vm961, %v3376, 0
      %v3438 = vsel %vm961, %v3377, 0
      %v3441 = vsel %vm961, %v3378, 0
      %v3444 = vsel %vm961, %v3379, 0
      %v3447 = vsel %vm961, %v3380, 0
      %v3450 = vsel %vm961, %v3381, 0
      %v3453 = vsel %vm961, %v3382, 0
      %v3456 = vsel %vm961, %v3383, 0
      %v3459 = vsel %vm961, %v3384, 0
      %v3462 = vsel %vm961, %v3385, 0
      %v3465 = vsel %vm961, %v3386, 0
      %v3468 = vsel %vm961, %v3387, 0
      %v3471 = vsel %vm961, %v3388, 0
      %v3474 = vsel %vm961, %v3389, 0
      %v3477 = vsel %vm961, %v3390, 0
      %v3480 = vsel %vm961, %v3391, 0
      %v3483 = vsel %vm961, %v3392, 0
      %v3486 = vsel %vm961, %v3393, 0
      %v3489 = vsel %vm961, %v3394, 0
      %v3492 = vsel %vm961, %v3395, 0
      %v3495 = vsel %vm1058, %v3397, 0
      %3497 = vmatprep.subr.mxu0 0.0
      %3498 = vmatpush1.msra.mxu0 %v3396
      %3499 = vmatprep.subr.mxu0 0.0
      %3500 = vmatpush1.msra.mxu0 %v3495
      %3501 = vmatprep.subr.mxu0 0.0
      %3502 = vmatpush1.msra.mxu0 0.0
      %3503 = vmatprep.subr.mxu0 0.0
      %3504 = vmatpush1.msra.mxu0 0.0
      %3505 = vmatprep.subr.mxu0 0.0
      %3506 = vmatpush1.msra.mxu0 0.0
      %3507 = vmatprep.subr.mxu0 0.0
      %3508 = vmatpush1.msra.mxu0 0.0
      %3509 = vmatprep.subr.mxu0 0.0
      %3510 = vmatpush1.msra.mxu0 0.0
      %3511 = vmatprep.subr.mxu0 0.0
      %3512 = vmatpush1.msra.mxu0 0.0
      %3513 = vmatprep.subr.mxu0 0.0
      %3514 = vmatpush1.msra.mxu0 0.0
      %3515 = vmatprep.subr.mxu0 0.0
      %3516 = vmatpush1.msra.mxu0 0.0
      %3517 = vmatprep.subr.mxu0 0.0
      %3518 = vmatpush1.msra.mxu0 0.0
      %3519 = vmatprep.subr.mxu0 0.0
      %3520 = vmatpush1.msra.mxu0 0.0
      %3521 = vmatprep.subr.mxu0 0.0
      %3522 = vmatpush1.msra.mxu0 0.0
      %3523 = vmatprep.subr.mxu0 0.0
      %3524 = vmatpush1.msra.mxu0 0.0
      %3525 = vmatprep.subr.mxu0 0.0
      %3526 = vmatpush1.msra.mxu0 0.0
      %3527 = vmatprep.subr.mxu0 0.0
      %3528 = vmatpush1.msra.mxu0 0.0
      %3529 = vmatprep.subr.mxu0 0.0
      %3530 = vmatpush1.msra.mxu0 0.0
      %3531 = vmatprep.subr.mxu0 0.0
      %3532 = vmatpush1.msra.mxu0 0.0
      %3533 = vmatprep.subr.mxu0 0.0
      %3534 = vmatpush1.msra.mxu0 0.0
      %3535 = vmatprep.subr.mxu0 0.0
      %3536 = vmatpush1.msra.mxu0 0.0
      %3537 = vmatprep.subr.mxu0 0.0
      %3538 = vmatpush1.msra.mxu0 0.0
      %3539 = vmatprep.subr.mxu0 0.0
      %3540 = vmatpush1.msra.mxu0 0.0
      %3541 = vmatprep.subr.mxu0 0.0
      %3542 = vmatpush1.msra.mxu0 0.0
      %3543 = vmatprep.subr.mxu0 0.0
      %3544 = vmatpush1.msra.mxu0 0.0
      %3545 = vmatprep.subr.mxu0 0.0
      %3546 = vmatpush1.msra.mxu0 0.0
      %3547 = vmatprep.subr.mxu0 0.0
      %3548 = vmatpush1.msra.mxu0 0.0
      %3549 = vmatprep.subr.mxu0 0.0
      %3550 = vmatpush1.msra.mxu0 0.0
      %3551 = vmatprep.subr.mxu0 0.0
      %3552 = vmatpush1.msra.mxu0 0.0
      %3553 = vmatprep.subr.mxu0 0.0
      %3554 = vmatpush1.msra.mxu0 0.0
      %3555 = vmatprep.subr.mxu0 0.0
      %3556 = vmatpush1.msra.mxu0 0.0
      %3557 = vmatprep.subr.mxu0 0.0
      %3558 = vmatpush1.msra.mxu0 0.0
      %3559 = vmatprep.subr.mxu0 0.0
      %3560 = vmatpush1.msra.mxu0 0.0
      %3561 = vmatprep.mubr.f32.mxu0 0.0
      %3562 = vmatmul.mubr.f32.gmra.mrb[0].mxu0 %v3399
      %v3563 = vpop.f32.mrb[0].mxu0
      %v3564 = vadd.f32 0.0, %v3563
      %v3565 = vpop.f32.mrb[0].mxu0
      %3566 = vmatprep.mubr.f32.mxu0 0.0
      %3567 = vmatmul.mubr.f32.gmra.mrb[0].mxu0 %v3402
      %v3568 = vpop.f32.mrb[0].mxu0
      %v3569 = vadd.f32 0.0, %v3568
      %v3570 = vpop.f32.mrb[0].mxu0
      %3571 = vmatprep.mubr.f32.mxu0 0.0
      %3572 = vmatmul.mubr.f32.gmra.mrb[0].mxu0 %v3405
      %v3573 = vpop.f32.mrb[0].mxu0
      %v3574 = vadd.f32 0.0, %v3573
      %v3575 = vpop.f32.mrb[0].mxu0
      %3576 = vmatprep.mubr.f32.mxu0 0.0
      %3577 = vmatmul.mubr.f32.gmra.mrb[0].mxu0 %v3408
      %v3578 = vpop.f32.mrb[0].mxu0
      %v3579 = vadd.f32 0.0, %v3578
      %v3580 = vpop.f32.mrb[0].mxu0
      %3581 = vmatprep.mubr.f32.mxu0 0.0
      %3582 = vmatmul.mubr.f32.gmra.mrb[0].mxu0 %v3411
      %v3583 = vpop.f32.mrb[0].mxu0
      %v3584 = vadd.f32 0.0, %v3583
      %v3585 = vpop.f32.mrb[0].mxu0
      %3586 = vmatprep.mubr.f32.mxu0 0.0
      %3587 = vmatmul.mubr.f32.gmra.mrb[0].mxu0 %v3414
      %v3588 = vpop.f32.mrb[0].mxu0
      %v3589 = vadd.f32 0.0, %v3588
      %v3590 = vpop.f32.mrb[0].mxu0
      %3591 = vmatprep.mubr.f32.mxu0 0.0
      %3592 = vmatmul.mubr.f32.gmra.mrb[0].mxu0 %v3417
      %v3593 = vpop.f32.mrb[0].mxu0
      %v3594 = vadd.f32 0.0, %v3593
      %v3595 = vpop.f32.mrb[0].mxu0
      %3596 = vmatprep.mubr.f32.mxu0 0.0
      %3597 = vmatmul.mubr.f32.gmra.mrb[0].mxu0 %v3420
      %v3598 = vpop.f32.mrb[0].mxu0
      %v3599 = vadd.f32 0.0, %v3598
      %v3600 = vpop.f32.mrb[0].mxu0
      %3601 = vmatprep.mubr.f32.mxu0 0.0
      %3602 = vmatmul.mubr.f32.gmra.mrb[0].mxu0 %v3423
      %v3603 = vpop.f32.mrb[0].mxu0
      %v3604 = vadd.f32 0.0, %v3603
      %v3605 = vpop.f32.mrb[0].mxu0
      %3606 = vmatprep.mubr.f32.mxu0 0.0
      %3607 = vmatmul.mubr.f32.gmra.mrb[0].mxu0 %v3426
      %v3608 = vpop.f32.mrb[0].mxu0
      %v3609 = vadd.f32 0.0, %v3608
      %v3610 = vpop.f32.mrb[0].mxu0
      %3611 = vmatprep.mubr.f32.mxu0 0.0
      %3612 = vmatmul.mubr.f32.gmra.mrb[0].mxu0 %v3429
      %v3613 = vpop.f32.mrb[0].mxu0
      %v3614 = vadd.f32 0.0, %v3613
      %v3615 = vpop.f32.mrb[0].mxu0
      %3616 = vmatprep.mubr.f32.mxu0 0.0
      %3617 = vmatmul.mubr.f32.gmra.mrb[0].mxu0 %v3432
      %v3618 = vpop.f32.mrb[0].mxu0
      %v3619 = vadd.f32 0.0, %v3618
      %v3620 = vpop.f32.mrb[0].mxu0
      %3621 = vmatprep.mubr.f32.mxu0 0.0
      %3622 = vmatmul.mubr.f32.gmra.mrb[0].mxu0 %v3435
      %v3623 = vpop.f32.mrb[0].mxu0
      %v3624 = vadd.f32 0.0, %v3623
      %v3625 = vpop.f32.mrb[0].mxu0
      %3626 = vmatprep.mubr.f32.mxu0 0.0
      %3627 = vmatmul.mubr.f32.gmra.mrb[0].mxu0 %v3438
      %v3628 = vpop.f32.mrb[0].mxu0
      %v3629 = vadd.f32 0.0, %v3628
      %v3630 = vpop.f32.mrb[0].mxu0
      %3631 = vmatprep.mubr.f32.mxu0 0.0
      %3632 = vmatmul.mubr.f32.gmra.mrb[0].mxu0 %v3441
      %v3633 = vpop.f32.mrb[0].mxu0
      %v3634 = vadd.f32 0.0, %v3633
      %v3635 = vpop.f32.mrb[0].mxu0
      %3636 = vmatprep.mubr.f32.mxu0 0.0
      %3637 = vmatmul.mubr.f32.gmra.mrb[0].mxu0 %v3444
      %v3638 = vpop.f32.mrb[0].mxu0
      %v3639 = vadd.f32 0.0, %v3638
      %v3640 = vpop.f32.mrb[0].mxu0
      %3641 = vmatprep.mubr.f32.mxu0 0.0
      %3642 = vmatmul.mubr.f32.gmra.mrb[0].mxu0 %v3447
      %v3643 = vpop.f32.mrb[0].mxu0
      %v3644 = vadd.f32 0.0, %v3643
      %v3645 = vpop.f32.mrb[0].mxu0
      %3646 = vmatprep.mubr.f32.mxu0 0.0
      %3647 = vmatmul.mubr.f32.gmra.mrb[0].mxu0 %v3450
      %v3648 = vpop.f32.mrb[0].mxu0
      %v3649 = vadd.f32 0.0, %v3648
      %v3650 = vpop.f32.mrb[0].mxu0
      %3651 = vmatprep.mubr.f32.mxu0 0.0
      %3652 = vmatmul.mubr.f32.gmra.mrb[0].mxu0 %v3453
      %v3653 = vpop.f32.mrb[0].mxu0
      %v3654 = vadd.f32 0.0, %v3653
      %v3655 = vpop.f32.mrb[0].mxu0
      %3656 = vmatprep.mubr.f32.mxu0 0.0
      %3657 = vmatmul.mubr.f32.gmra.mrb[0].mxu0 %v3456
      %v3658 = vpop.f32.mrb[0].mxu0
      %v3659 = vadd.f32 0.0, %v3658
      %v3660 = vpop.f32.mrb[0].mxu0
      %3661 = vmatprep.mubr.f32.mxu0 0.0
      %3662 = vmatmul.mubr.f32.gmra.mrb[0].mxu0 %v3459
      %v3663 = vpop.f32.mrb[0].mxu0
      %v3664 = vadd.f32 0.0, %v3663
      %v3665 = vpop.f32.mrb[0].mxu0
      %3666 = vmatprep.mubr.f32.mxu0 0.0
      %3667 = vmatmul.mubr.f32.gmra.mrb[0].mxu0 %v3462
      %v3668 = vpop.f32.mrb[0].mxu0
      %v3669 = vadd.f32 0.0, %v3668
      %v3670 = vpop.f32.mrb[0].mxu0
      %3671 = vmatprep.mubr.f32.mxu0 0.0
      %3672 = vmatmul.mubr.f32.gmra.mrb[0].mxu0 %v3465
      %v3673 = vpop.f32.mrb[0].mxu0
      %v3674 = vadd.f32 0.0, %v3673
      %v3675 = vpop.f32.mrb[0].mxu0
      %3676 = vmatprep.mubr.f32.mxu0 0.0
      %3677 = vmatmul.mubr.f32.gmra.mrb[0].mxu0 %v3468
      %v3678 = vpop.f32.mrb[0].mxu0
      %v3679 = vadd.f32 0.0, %v3678
      %v3680 = vpop.f32.mrb[0].mxu0
      %3681 = vmatprep.mubr.f32.mxu0 0.0
      %3682 = vmatmul.mubr.f32.gmra.mrb[0].mxu0 %v3471
      %v3683 = vpop.f32.mrb[0].mxu0
      %v3684 = vadd.f32 0.0, %v3683
      %v3685 = vpop.f32.mrb[0].mxu0
      %3686 = vmatprep.mubr.f32.mxu0 0.0
      %3687 = vmatmul.mubr.f32.gmra.mrb[0].mxu0 %v3474
      %v3688 = vpop.f32.mrb[0].mxu0
      %v3689 = vadd.f32 0.0, %v3688
      %v3690 = vpop.f32.mrb[0].mxu0
      %3691 = vmatprep.mubr.f32.mxu0 0.0
      %3692 = vmatmul.mubr.f32.gmra.mrb[0].mxu0 %v3477
      %v3693 = vpop.f32.mrb[0].mxu0
      %v3694 = vadd.f32 0.0, %v3693
      %v3695 = vpop.f32.mrb[0].mxu0
      %3696 = vmatprep.mubr.f32.mxu0 0.0
      %3697 = vmatmul.mubr.f32.gmra.mrb[0].mxu0 %v3480
      %v3698 = vpop.f32.mrb[0].mxu0
      %v3699 = vadd.f32 0.0, %v3698
      %v3700 = vpop.f32.mrb[0].mxu0
      %3701 = vmatprep.mubr.f32.mxu0 0.0
      %3702 = vmatmul.mubr.f32.gmra.mrb[0].mxu0 %v3483
      %v3703 = vpop.f32.mrb[0].mxu0
      %v3704 = vadd.f32 0.0, %v3703
      %v3705 = vpop.f32.mrb[0].mxu0
      %3706 = vmatprep.mubr.f32.mxu0 0.0
      %3707 = vmatmul.mubr.f32.gmra.mrb[0].mxu0 %v3486
      %v3708 = vpop.f32.mrb[0].mxu0
      %v3709 = vadd.f32 0.0, %v3708
      %v3710 = vpop.f32.mrb[0].mxu0
      %3711 = vmatprep.mubr.f32.mxu0 0.0
      %3712 = vmatmul.mubr.f32.gmra.mrb[0].mxu0 %v3489
      %v3713 = vpop.f32.mrb[0].mxu0
      %v3714 = vadd.f32 0.0, %v3713
      %v3715 = vpop.f32.mrb[0].mxu0
      %3716 = vmatprep.mubr.f32.mxu0 0.0
      %3717 = vmatmul.mubr.f32.gmra.mrb[0].mxu0 %v3492
      %v3718 = vpop.f32.mrb[0].mxu0
      %v3719 = vadd.f32 0.0, %v3718
      %v3720 = vpop.f32.mrb[0].mxu0
      %3721 = vdwg.mxu0
      %v3722 = vadd.f32 %v3206, %v3564
      %v3723 = vadd.f32 %v3211, %v3569
      %v3724 = vadd.f32 %v3216, %v3574
      %v3725 = vadd.f32 %v3221, %v3579
      %v3726 = vadd.f32 %v3226, %v3584
      %v3727 = vadd.f32 %v3231, %v3589
      %v3728 = vadd.f32 %v3236, %v3594
      %v3729 = vadd.f32 %v3241, %v3599
      %v3730 = vadd.f32 %v3246, %v3604
      %v3731 = vadd.f32 %v3251, %v3609
      %v3732 = vadd.f32 %v3256, %v3614
      %v3733 = vadd.f32 %v3261, %v3619
      %v3734 = vadd.f32 %v3266, %v3624
      %v3735 = vadd.f32 %v3271, %v3629
      %v3736 = vadd.f32 %v3276, %v3634
      %v3737 = vadd.f32 %v3281, %v3639
      %v3738 = vadd.f32 %v3286, %v3644
      %v3739 = vadd.f32 %v3291, %v3649
      %v3740 = vadd.f32 %v3296, %v3654
      %v3741 = vadd.f32 %v3301, %v3659
      %v3742 = vadd.f32 %v3306, %v3664
      %v3743 = vadd.f32 %v3311, %v3669
      %v3744 = vadd.f32 %v3316, %v3674
      %v3745 = vadd.f32 %v3321, %v3679
      %v3746 = vadd.f32 %v3326, %v3684
      %v3747 = vadd.f32 %v3331, %v3689
      %v3748 = vadd.f32 %v3336, %v3694
      %v3749 = vadd.f32 %v3341, %v3699
      %v3750 = vadd.f32 %v3346, %v3704
      %v3751 = vadd.f32 %v3351, %v3709
      %v3752 = vadd.f32 %v3356, %v3714
      %v3753 = vadd.f32 %v3361, %v3719
      %v3754 = vld [vmem:[%s5] sm:$0x1]
      %v3756 = vlaneseq
      %v3757 = vshrl.u32 %v3756, 7
      %v3758 = vsub.s32 0, %v3757
      %v3759 = vrot.slane %v3754, %v3758
      %v3761 = vmul.f32 %v3722, %v3759
      %v3762 = vmul.f32 %v3723, %v3759
      %v3763 = vmul.f32 %v3724, %v3759
      %v3764 = vmul.f32 %v3725, %v3759
      %v3765 = vmul.f32 %v3726, %v3759
      %v3766 = vmul.f32 %v3727, %v3759
      %v3767 = vmul.f32 %v3728, %v3759
      %v3768 = vmul.f32 %v3729, %v3759
      %v3769 = vmul.f32 %v3730, %v3759
      %v3770 = vmul.f32 %v3731, %v3759
      %v3771 = vmul.f32 %v3732, %v3759
      %v3772 = vmul.f32 %v3733, %v3759
      %v3773 = vmul.f32 %v3734, %v3759
      %v3774 = vmul.f32 %v3735, %v3759
      %v3775 = vmul.f32 %v3736, %v3759
      %v3776 = vmul.f32 %v3737, %v3759
      %v3777 = vmul.f32 %v3738, %v3759
      %v3778 = vmul.f32 %v3739, %v3759
      %v3779 = vmul.f32 %v3740, %v3759
      %v3780 = vmul.f32 %v3741, %v3759
      %v3781 = vmul.f32 %v3742, %v3759
      %v3782 = vmul.f32 %v3743, %v3759
      %v3783 = vmul.f32 %v3744, %v3759
      %v3784 = vmul.f32 %v3745, %v3759
      %v3785 = vmul.f32 %v3746, %v3759
      %v3786 = vmul.f32 %v3747, %v3759
      %v3787 = vmul.f32 %v3748, %v3759
      %v3788 = vmul.f32 %v3749, %v3759
      %v3789 = vmul.f32 %v3750, %v3759
      %v3790 = vmul.f32 %v3751, %v3759
      %v3791 = vmul.f32 %v3752, %v3759
      %v3792 = vmul.f32 %v3753, %v3759
      %v3793 = vld [vmem:[%s6] sm:$0x1]
      %v3795 = vlaneseq
      %v3796 = vshrl.u32 %v3795, 7
      %v3797 = vsub.s32 0, %v3796
      %v3798 = vrot.slane %v3793, %v3797
      %v3800 = vadd.f32 %v3761, %v3798
      %v3801 = vadd.f32 %v3762, %v3798
      %v3802 = vadd.f32 %v3763, %v3798
      %v3803 = vadd.f32 %v3764, %v3798
      %v3804 = vadd.f32 %v3765, %v3798
      %v3805 = vadd.f32 %v3766, %v3798
      %v3806 = vadd.f32 %v3767, %v3798
      %v3807 = vadd.f32 %v3768, %v3798
      %v3808 = vadd.f32 %v3769, %v3798
      %v3809 = vadd.f32 %v3770, %v3798
      %v3810 = vadd.f32 %v3771, %v3798
      %v3811 = vadd.f32 %v3772, %v3798
      %v3812 = vadd.f32 %v3773, %v3798
      %v3813 = vadd.f32 %v3774, %v3798
      %v3814 = vadd.f32 %v3775, %v3798
      %v3815 = vadd.f32 %v3776, %v3798
      %v3816 = vadd.f32 %v3777, %v3798
      %v3817 = vadd.f32 %v3778, %v3798
      %v3818 = vadd.f32 %v3779, %v3798
      %v3819 = vadd.f32 %v3780, %v3798
      %v3820 = vadd.f32 %v3781, %v3798
      %v3821 = vadd.f32 %v3782, %v3798
      %v3822 = vadd.f32 %v3783, %v3798
      %v3823 = vadd.f32 %v3784, %v3798
      %v3824 = vadd.f32 %v3785, %v3798
      %v3825 = vadd.f32 %v3786, %v3798
      %v3826 = vadd.f32 %v3787, %v3798
      %v3827 = vadd.f32 %v3788, %v3798
      %v3828 = vadd.f32 %v3789, %v3798
      %v3829 = vadd.f32 %v3790, %v3798
      %v3830 = vadd.f32 %v3791, %v3798
      %v3831 = vadd.f32 %v3792, %v3798
      %v3832 = vld [vmem:[%s273] sm:$0xff]
      %v3833 = vld [vmem:[%s273 + $0x8] sm:$0xff]
      %v3834 = vld [vmem:[%s273 + $0x10] sm:$0xff]
      %v3835 = vld [vmem:[%s273 + $0x18] sm:$0xff]
      %v3836 = vld [vmem:[%s273 + $0x20] sm:$0xff]
      %v3837 = vld [vmem:[%s273 + $0x28] sm:$0xff]
      %v3838 = vld [vmem:[%s273 + $0x30] sm:$0xff]
      %v3839 = vld [vmem:[%s273 + $0x38] sm:$0xff]
      %v3840 = vld [vmem:[%s273 + $0x40] sm:$0xff]
      %v3841 = vld [vmem:[%s273 + $0x48] sm:$0xff]
      %v3842 = vld [vmem:[%s273 + $0x50] sm:$0xff]
      %v3843 = vld [vmem:[%s273 + $0x58] sm:$0xff]
      %v3844 = vld [vmem:[%s273 + $0x60] sm:$0xff]
      %v3845 = vld [vmem:[%s273 + $0x68] sm:$0xff]
      %v3846 = vld [vmem:[%s273 + $0x70] sm:$0xff]
      %v3847 = vld [vmem:[%s273 + $0x78] sm:$0xff]
      %v3848 = vld [vmem:[%s273 + $0x80] sm:$0xff]
      %v3849 = vld [vmem:[%s273 + $0x88] sm:$0xff]
      %v3850 = vld [vmem:[%s273 + $0x90] sm:$0xff]
      %v3851 = vld [vmem:[%s273 + $0x98] sm:$0xff]
      %v3852 = vld [vmem:[%s273 + $0xa0] sm:$0xff]
      %v3853 = vld [vmem:[%s273 + $0xa8] sm:$0xff]
      %v3854 = vld [vmem:[%s273 + $0xb0] sm:$0xff]
      %v3855 = vld [vmem:[%s273 + $0xb8] sm:$0xff]
      %v3856 = vld [vmem:[%s273 + $0xc0] sm:$0xff]
      %v3857 = vld [vmem:[%s273 + $0xc8] sm:$0xff]
      %v3858 = vld [vmem:[%s273 + $0xd0] sm:$0xff]
      %v3859 = vld [vmem:[%s273 + $0xd8] sm:$0xff]
      %v3860 = vld [vmem:[%s273 + $0xe0] sm:$0xff]
      %v3861 = vld [vmem:[%s273 + $0xe8] sm:$0xff]
      %v3862 = vld [vmem:[%s273 + $0xf0] sm:$0xff]
      %v3863 = vld [vmem:[%s273 + $0xf8] sm:$0xff]
      %v3864 = vadd.f32 %v3800, %v3832
      %v3865 = vadd.f32 %v3801, %v3833
      %v3866 = vadd.f32 %v3802, %v3834
      %v3867 = vadd.f32 %v3803, %v3835
      %v3868 = vadd.f32 %v3804, %v3836
      %v3869 = vadd.f32 %v3805, %v3837
      %v3870 = vadd.f32 %v3806, %v3838
      %v3871 = vadd.f32 %v3807, %v3839
      %v3872 = vadd.f32 %v3808, %v3840
      %v3873 = vadd.f32 %v3809, %v3841
      %v3874 = vadd.f32 %v3810, %v3842
      %v3875 = vadd.f32 %v3811, %v3843
      %v3876 = vadd.f32 %v3812, %v3844
      %v3877 = vadd.f32 %v3813, %v3845
      %v3878 = vadd.f32 %v3814, %v3846
      %v3879 = vadd.f32 %v3815, %v3847
      %v3880 = vadd.f32 %v3816, %v3848
      %v3881 = vadd.f32 %v3817, %v3849
      %v3882 = vadd.f32 %v3818, %v3850
      %v3883 = vadd.f32 %v3819, %v3851
      %v3884 = vadd.f32 %v3820, %v3852
      %v3885 = vadd.f32 %v3821, %v3853
      %v3886 = vadd.f32 %v3822, %v3854
      %v3887 = vadd.f32 %v3823, %v3855
      %v3888 = vadd.f32 %v3824, %v3856
      %v3889 = vadd.f32 %v3825, %v3857
      %v3890 = vadd.f32 %v3826, %v3858
      %v3891 = vadd.f32 %v3827, %v3859
      %v3892 = vadd.f32 %v3828, %v3860
      %v3893 = vadd.f32 %v3829, %v3861
      %v3894 = vadd.f32 %v3830, %v3862
      %v3895 = vadd.f32 %v3831, %v3863
      %v3896 = vmax.f32 %v3864, 0.0
      %v3897 = vmax.f32 %v3865, 0.0
      %v3898 = vmax.f32 %v3866, 0.0
      %v3899 = vmax.f32 %v3867, 0.0
      %v3900 = vmax.f32 %v3868, 0.0
      %v3901 = vmax.f32 %v3869, 0.0
      %v3902 = vmax.f32 %v3870, 0.0
      %v3903 = vmax.f32 %v3871, 0.0
      %v3904 = vmax.f32 %v3872, 0.0
      %v3905 = vmax.f32 %v3873, 0.0
      %v3906 = vmax.f32 %v3874, 0.0
      %v3907 = vmax.f32 %v3875, 0.0
      %v3908 = vmax.f32 %v3876, 0.0
      %v3909 = vmax.f32 %v3877, 0.0
      %v3910 = vmax.f32 %v3878, 0.0
      %v3911 = vmax.f32 %v3879, 0.0
      %v3912 = vmax.f32 %v3880, 0.0
      %v3913 = vmax.f32 %v3881, 0.0
      %v3914 = vmax.f32 %v3882, 0.0
      %v3915 = vmax.f32 %v3883, 0.0
      %v3916 = vmax.f32 %v3884, 0.0
      %v3917 = vmax.f32 %v3885, 0.0
      %v3918 = vmax.f32 %v3886, 0.0
      %v3919 = vmax.f32 %v3887, 0.0
      %v3920 = vmax.f32 %v3888, 0.0
      %v3921 = vmax.f32 %v3889, 0.0
      %v3922 = vmax.f32 %v3890, 0.0
      %v3923 = vmax.f32 %v3891, 0.0
      %v3924 = vmax.f32 %v3892, 0.0
      %v3925 = vmax.f32 %v3893, 0.0
      %v3926 = vmax.f32 %v3894, 0.0
      %v3927 = vmax.f32 %v3895, 0.0
      %3928 = vst.msk [vmem:[%s278] sm:$0xff] %vm279, %v3896
      %3929 = vst.msk [vmem:[%s278 + $0x8] sm:$0xff] %vm279, %v3897
      %3930 = vst.msk [vmem:[%s278 + $0x10] sm:$0xff] %vm279, %v3898
      %3931 = vst.msk [vmem:[%s278 + $0x18] sm:$0xff] %vm279, %v3899
      %3932 = vst.msk [vmem:[%s278 + $0x20] sm:$0xff] %vm279, %v3900
      %3933 = vst.msk [vmem:[%s278 + $0x28] sm:$0xff] %vm279, %v3901
      %3934 = vst.msk [vmem:[%s278 + $0x30] sm:$0xff] %vm279, %v3902
      %3935 = vst.msk [vmem:[%s278 + $0x38] sm:$0xff] %vm279, %v3903
      %3936 = vst.msk [vmem:[%s278 + $0x40] sm:$0xff] %vm279, %v3904
      %3937 = vst.msk [vmem:[%s278 + $0x48] sm:$0xff] %vm279, %v3905
      %3938 = vst.msk [vmem:[%s278 + $0x50] sm:$0xff] %vm279, %v3906
      %3939 = vst.msk [vmem:[%s278 + $0x58] sm:$0xff] %vm279, %v3907
      %3940 = vst.msk [vmem:[%s278 + $0x60] sm:$0xff] %vm279, %v3908
      %3941 = vst.msk [vmem:[%s278 + $0x68] sm:$0xff] %vm279, %v3909
      %3942 = vst.msk [vmem:[%s278 + $0x70] sm:$0xff] %vm279, %v3910
      %3943 = vst.msk [vmem:[%s278 + $0x78] sm:$0xff] %vm279, %v3911
      %3944 = vst.msk [vmem:[%s278 + $0x80] sm:$0xff] %vm279, %v3912
      %3945 = vst.msk [vmem:[%s278 + $0x88] sm:$0xff] %vm279, %v3913
      %3946 = vst.msk [vmem:[%s278 + $0x90] sm:$0xff] %vm279, %v3914
      %3947 = vst.msk [vmem:[%s278 + $0x98] sm:$0xff] %vm279, %v3915
      %3948 = vst.msk [vmem:[%s278 + $0xa0] sm:$0xff] %vm279, %v3916
      %3949 = vst.msk [vmem:[%s278 + $0xa8] sm:$0xff] %vm279, %v3917
      %3950 = vst.msk [vmem:[%s278 + $0xb0] sm:$0xff] %vm279, %v3918
      %3951 = vst.msk [vmem:[%s278 + $0xb8] sm:$0xff] %vm279, %v3919
      %3952 = vst.msk [vmem:[%s278 + $0xc0] sm:$0xff] %vm279, %v3920
      %3953 = vst.msk [vmem:[%s278 + $0xc8] sm:$0xff] %vm279, %v3921
      %3954 = vst.msk [vmem:[%s278 + $0xd0] sm:$0xff] %vm279, %v3922
      %3955 = vst.msk [vmem:[%s278 + $0xd8] sm:$0xff] %vm279, %v3923
      %3956 = vst.msk [vmem:[%s278 + $0xe0] sm:$0xff] %vm279, %v3924
      %3957 = vst.msk [vmem:[%s278 + $0xe8] sm:$0xff] %vm279, %v3925
      %3958 = vst.msk [vmem:[%s278 + $0xf0] sm:$0xff] %vm279, %v3926
      %3959 = vst.msk [vmem:[%s278 + $0xf8] sm:$0xff] %vm279, %v3927
      %p3960 = scmp.lt.s32.totalorder %s18, 1
      %s3961 = scalar_select %p3960, %s18, 1
      %s3962 = smul.addr %s3961, 32
      %s3963 = smul.addr %s3962, 8
      %s3964 = scalar_lea.vmem %s7, %s3963
      // Predicated region
      $region49: #{tpu_custom_call.1} parent=47 // pred_check
        %p3965 = pneg %p188
      $region50: #{tpu_custom_call.1} parent=47 // pred_check_branch
        %3967 = sbr.rel (%p3965) target = $region52
      $region51: #{tpu_custom_call.1} parent=47 // pred_region
        _
      $region52: #{tpu_custom_call.1} parent=47 // pred_fallthru
        _
    $region48: #{tpu_custom_call.1} parent=5 // pred_fallthru
      _
    %p3968 = scmp.le.s32.totalorder 2, %s13
    // Predicated region
    $region53: #{tpu_custom_call.1} parent=5 // pred_check
      %p3969 = pneg %p3968
    $region54: #{tpu_custom_call.1} parent=5 // pred_check_branch
      %3971 = sbr.rel (%p3969) target = $region56
    $region55: #{tpu_custom_call.1} parent=5 // pred_region
      %s3972 = ssub.s32 %s13, 2
      // Predicated region
      $region57: #{tpu_custom_call.1} parent=55 // pred_check
        %p3973 = pneg %p194
      $region58: #{tpu_custom_call.1} parent=55 // pred_check_branch
        %3975 = sbr.rel (%p3973) target = $region60
      $region59: #{tpu_custom_call.1} parent=55 // pred_region
        %p3976 = scmp.lt.s32.totalorder %s19, 1
        %s3977 = scalar_select %p3976, %s19, 1
        %s3978 = smul.addr %s3977, 32
        %s3979 = smul.addr %s3978, 8
        %s3980 = scalar_lea.vmem %s7, %s3979
      $region60: #{tpu_custom_call.1} parent=55 // pred_fallthru
        _
    $region56: #{tpu_custom_call.1} parent=5 // pred_fallthru
      _
  $region6: #{tpu_custom_call.1} parent=0 // loop_footer
    %s17 = sadd.s32 1, %s13
  $region7: #{tpu_custom_call.1} parent=0 // loop_footer_branch
    %12 = sbr.rel target = $region3
  $region8: #{tpu_custom_call.1} parent=0 // loop_exit
    _

</llo_original>
